<compile_context>
chip_gen: v5e
topology: v5e:2x2
jax: 0.10.0
libtpu: 0.0.40
codegen_flags: <defaults>
</compile_context>

<pallas_src>
import functools

import jax
import jax.numpy as jnp
from jax import lax
from jax.experimental import pallas as pl
from jax.experimental.pallas import tpu as pltpu

EPS_BN = 1e-5
_VMEM_LIMIT = 48 * 1024 * 1024  # <= v7x 64 MiB physical VMEM


def _round_up(x, m):
    return (x + m - 1) // m * m


def _cparams(sem=None):
    return pltpu.CompilerParams(dimension_semantics=sem,
                                vmem_limit_bytes=_VMEM_LIMIT)


# ----------------------------------------------------------------------------
# Generic tiled MXU matmul (bf16 operands, f32 accumulation)
# ----------------------------------------------------------------------------
def _matmul_kernel(a_ref, b_ref, o_ref, acc_ref):
    @pl.when(pl.program_id(2) == 0)
    def _():
        acc_ref[...] = jnp.zeros_like(acc_ref)

    acc_ref[...] += jnp.dot(a_ref[...], b_ref[...],
                            preferred_element_type=jnp.float32)

    @pl.when(pl.program_id(2) == pl.num_programs(2) - 1)
    def _():
        o_ref[...] = acc_ref[...].astype(o_ref.dtype)


def matmul(a, b, out_dtype=jnp.bfloat16):
    """a (M,K) @ b (K,N); inputs cast to bf16, accumulate f32."""
    M, K = a.shape
    _, N = b.shape
    tm = 256 if M >= 256 else _round_up(M, 8)
    tn = 256 if N >= 256 else _round_up(N, 128)
    Kp = _round_up(K, 128)
    tk = next(c for c in (512, 256, 128) if Kp % c == 0)
    Mp, Np = _round_up(M, tm), _round_up(N, tn)
    a = a.astype(jnp.bfloat16)
    b = b.astype(jnp.bfloat16)
    if (Mp, Kp) != (M, K):
        a = jnp.pad(a, ((0, Mp - M), (0, Kp - K)))
    if (Kp, Np) != (K, N):
        b = jnp.pad(b, ((0, Kp - K), (0, Np - N)))
    out = pl.pallas_call(
        _matmul_kernel,
        out_shape=jax.ShapeDtypeStruct((Mp, Np), out_dtype),
        grid_spec=pltpu.PrefetchScalarGridSpec(
            num_scalar_prefetch=0,
            grid=(Mp // tm, Np // tn, Kp // tk),
            in_specs=[pl.BlockSpec((tm, tk), lambda i, j, k: (i, k)),
                      pl.BlockSpec((tk, tn), lambda i, j, k: (k, j))],
            out_specs=pl.BlockSpec((tm, tn), lambda i, j, k: (i, j)),
            scratch_shapes=[pltpu.VMEM((tm, tn), jnp.float32)]),
        compiler_params=_cparams(("parallel", "parallel", "arbitrary")),
    )(a, b)
    if (Mp, Np) != (M, N):
        out = out[:M, :N]
    return out


# ----------------------------------------------------------------------------
# Fused direct 3x3 stride-1 convolution (no im2col materialization)
# ----------------------------------------------------------------------------
def _conv3x3_kernel(x0_ref, x1_ref, w_ref, o_ref, xbuf, *, th, wo):
    # x0_ref/x1_ref: (1, th, Wp, Cin) bf16 -- consecutive th-row slabs of the
    #   zero-padded input (x1 is the halo slab directly below x0).
    # w_ref: (3, 3, Cin, tn) bf16 ; o_ref: (1, th, wo, tn) bf16
    # xbuf : (2*th, Wp, Cin) VMEM scratch combining the two slabs.
    xbuf[0:th] = x0_ref[0]
    xbuf[th:2 * th] = x1_ref[0]

    def row(r, carry):
        acc = jnp.zeros((wo, o_ref.shape[-1]), jnp.float32)
        for di in range(3):
            for dj in range(3):
                a = xbuf[r + di, dj:dj + wo, :]            # (wo, Cin)
                acc = acc + jnp.dot(a, w_ref[di, dj],
                                    preferred_element_type=jnp.float32)
        o_ref[0, r] = acc.astype(o_ref.dtype)
        return carry

    lax.fori_loop(0, th, row, 0)


@functools.partial(jax.jit, static_argnames=("th",))
def conv3x3_s1(x, w, th):
    """3x3 stride-1 'same' conv, NHWC.  w: (3, 3, Cin, Cout) bf16."""
    N, H, W, Cin = x.shape
    Cout = w.shape[-1]
    assert H % th == 0 and th >= 2
    x = x.astype(jnp.bfloat16)
    # 1 zero row on top, (th-1) below (covers the conv halo + keeps the halo
    # slab in bounds), 1 zero column each side.
    xp = jnp.pad(x, ((0, 0), (1, th - 1), (1, 1), (0, 0)))
    Wp = W + 2
    tn = Cout if Cout <= 256 else 256
    nj, nhb = Cout // tn, H // th
    kern = functools.partial(_conv3x3_kernel, th=th, wo=W)
    return pl.pallas_call(
        kern,
        out_shape=jax.ShapeDtypeStruct((N, H, W, Cout), jnp.bfloat16),
        grid_spec=pltpu.PrefetchScalarGridSpec(
            num_scalar_prefetch=0,
            grid=(nj, N, nhb),
            in_specs=[
                pl.BlockSpec((1, th, Wp, Cin), lambda j, n, h: (n, h, 0, 0)),
                pl.BlockSpec((1, th, Wp, Cin), lambda j, n, h: (n, h + 1, 0, 0)),
                pl.BlockSpec((3, 3, Cin, tn), lambda j, n, h: (0, 0, 0, j)),
            ],
            out_specs=pl.BlockSpec((1, th, W, tn),
                                   lambda j, n, h: (n, h, 0, j)),
            scratch_shapes=[pltpu.VMEM((2 * th, Wp, Cin), jnp.bfloat16)]),
        compiler_params=_cparams(("parallel", "parallel", "parallel")),
    )(xp, xp, w)


# ----------------------------------------------------------------------------
# Stride-2 convolutions (only 4 of 99 convs): im2col + tiled matmul
# ----------------------------------------------------------------------------
@jax.jit
def conv3x3_s2(x, w):
    N, H, W, Cin = x.shape
    Cout = w.shape[-1]
    Ho, Wo = H // 2, W // 2
    x = x.astype(jnp.bfloat16)
    xp = jnp.pad(x, ((0, 0), (1, 1), (1, 1), (0, 0)))
    cols = []
    for di in range(3):
        for dj in range(3):
            cols.append(xp[:, di:di + 2 * Ho:2, dj:dj + 2 * Wo:2, :])
    patches = jnp.concatenate(cols, axis=-1).reshape(N * Ho * Wo, 9 * Cin)
    y = matmul(patches, w.reshape(9 * Cin, Cout), out_dtype=jnp.bfloat16)
    return y.reshape(N, Ho, Wo, Cout)


@jax.jit
def conv1x1_s2(x, w):
    xs = x[:, ::2, ::2, :].astype(jnp.bfloat16)
    N, Ho, Wo, Cin = xs.shape
    y = matmul(xs.reshape(N * Ho * Wo, Cin), w, out_dtype=jnp.bfloat16)
    return y.reshape(N, Ho, Wo, w.shape[-1])


# ----------------------------------------------------------------------------
# BatchNorm (training-mode batch stats) / PReLU / residual-add kernels,
# channel-tiled ('parallel' grid), f32 internal math
# ----------------------------------------------------------------------------
def _bn_normalize(x):
    x = x.astype(jnp.float32)
    mean = jnp.mean(x, axis=0, keepdims=True)
    xc = x - mean
    var = jnp.mean(xc * xc, axis=0, keepdims=True)   # biased var, like torch BN
    return xc * lax.rsqrt(var + EPS_BN)


def _bn_kernel(x_ref, g_ref, b_ref, o_ref):
    z = _bn_normalize(x_ref[...]) * g_ref[...] + b_ref[...]
    o_ref[...] = z.astype(o_ref.dtype)


def _bn_prelu_kernel(x_ref, g_ref, b_ref, a_ref, o_ref):
    z = _bn_normalize(x_ref[...]) * g_ref[...] + b_ref[...]
    z = jnp.where(z >= 0.0, z, a_ref[...] * z)
    o_ref[...] = z.astype(o_ref.dtype)


def _bn_add_kernel(x_ref, r_ref, g_ref, b_ref, o_ref):
    z = _bn_normalize(x_ref[...]) * g_ref[...] + b_ref[...]
    z = z + r_ref[...].astype(jnp.float32)
    o_ref[...] = z.astype(o_ref.dtype)


def _channelwise_call(kernel, out_dtype, args, M, C):
    cb = C if C <= 128 else 128
    in_specs = [pl.BlockSpec((a.shape[0], cb), lambda c: (0, c)) for a in args]
    return pl.pallas_call(
        kernel,
        out_shape=jax.ShapeDtypeStruct((M, C), out_dtype),
        grid_spec=pltpu.PrefetchScalarGridSpec(
            num_scalar_prefetch=0,
            grid=(C // cb,),
            in_specs=in_specs,
            out_specs=pl.BlockSpec((M, cb), lambda c: (0, c))),
        compiler_params=_cparams(("parallel",)),
    )(*args)


@functools.partial(jax.jit, static_argnames=("out_dtype",))
def bn_nd(x, g, b, out_dtype=jnp.bfloat16):
    shape = x.shape
    C = shape[-1]
    x2 = x.reshape(-1, C)
    out = _channelwise_call(_bn_kernel, out_dtype, (x2, g, b), x2.shape[0], C)
    return out.reshape(shape)


@jax.jit
def bn_prelu_nd(x, g, b, a):
    shape = x.shape
    C = shape[-1]
    x2 = x.reshape(-1, C)
    out = _channelwise_call(_bn_prelu_kernel, jnp.bfloat16, (x2, g, b, a),
                            x2.shape[0], C)
    return out.reshape(shape)


@jax.jit
def bn_add_nd(x, res, g, b):
    shape = x.shape
    C = shape[-1]
    x2 = x.reshape(-1, C)
    r2 = res.reshape(-1, C)
    out = _channelwise_call(_bn_add_kernel, jnp.bfloat16, (x2, r2, g, b),
                            x2.shape[0], C)
    return out.reshape(shape)


# ----------------------------------------------------------------------------
# ElasticFaceD_block small head: age_trans / age_classify / g / sub / normalize
# fused into one kernel (tiny, all-f32)
# ----------------------------------------------------------------------------
def _dblock_head_kernel(f_ref, wt_ref, bt_ref, wg_ref, bg_ref, wc_ref, bc_ref,
                        idf_ref, age_ref):
    f = f_ref[...].astype(jnp.float32)
    age_feat = jnp.dot(f, wt_ref[...],
                       preferred_element_type=jnp.float32) + bt_ref[...]
    age_ref[...] = jnp.dot(age_feat, wc_ref[...],
                           preferred_element_type=jnp.float32) + bc_ref[...]
    idf = f - (jnp.dot(age_feat, wg_ref[...],
                       preferred_element_type=jnp.float32) + bg_ref[...])
    # nn.functional.normalize(idf, p=2, dim=1, eps=1e-12)
    n = jnp.sqrt(jnp.sum(idf * idf, axis=1, keepdims=True))
    idf_ref[...] = idf / jnp.maximum(n, 1e-12)


@jax.jit
def dblock_head(feat, wt, bt, wg, bg, wc, bc):
    B = feat.shape[0]
    idf, age = pl.pallas_call(
        _dblock_head_kernel,
        out_shape=(jax.ShapeDtypeStruct((B, 512), jnp.float32),
                   jax.ShapeDtypeStruct((B, wc.shape[1]), jnp.float32)),
        in_specs=[pl.BlockSpec(memory_space=pltpu.MemorySpace.VMEM)] * 7,
        out_specs=(pl.BlockSpec(memory_space=pltpu.MemorySpace.VMEM),
                   pl.BlockSpec(memory_space=pltpu.MemorySpace.VMEM)),
        compiler_params=_cparams(),
    )(feat, wt, bt, wg, bg, wc, bc)
    return idf, age[:, :1]


# ----------------------------------------------------------------------------
# ElasticArcFace head, class-tiled
# ----------------------------------------------------------------------------
def _arcface_kernel(emb_ref, w_ref, lab_ref, cm_ref, sm_ref, o_ref, *, s, tn):
    j = pl.program_id(0)
    emb = emb_ref[...].astype(jnp.float32)
    # l2_norm(embeddings, axis=1) -- plain divide, as in ElasticFace's l2_norm
    emb = emb / jnp.sqrt(jnp.sum(emb * emb, axis=1, keepdims=True))
    w = w_ref[...].astype(jnp.float32)
    wn = jnp.sqrt(jnp.sum(w * w, axis=0, keepdims=True))
    w = w / jnp.where(wn > 0.0, wn, 1.0)        # guard zero-padded class cols
    cos_t = jnp.clip(jnp.dot(emb, w, preferred_element_type=jnp.float32),
                     -1.0, 1.0)
    col = jax.lax.broadcasted_iota(jnp.int32, cos_t.shape, 1) + j * tn
    lab = lab_ref[...]                           # (B, 1) int32
    is_target = (col == lab) & (lab != -1)       # margin only where label != -1
    # cos(acos(c) + m) = c*cos(m) - sqrt(1-c^2)*sin(m)
    sin_t = jnp.sqrt(jnp.maximum(1.0 - cos_t * cos_t, 0.0))
    boosted = cos_t * cm_ref[...] - sin_t * sm_ref[...]
    o_ref[...] = jnp.where(is_target, boosted, cos_t) * s


@functools.partial(jax.jit, static_argnames=("s",))
def elastic_arcface(emb, kernel, labels, margin, s):
    B, D = emb.shape
    num_classes = kernel.shape[1]
    Cp = _round_up(num_classes, 128)
    tn = 256 if Cp % 256 == 0 else 128
    w = kernel.astype(jnp.float32)
    if Cp != num_classes:
        w = jnp.pad(w, ((0, 0), (0, Cp - num_classes)))
    lab = labels.astype(jnp.int32).reshape(B, 1)
    cm = jnp.cos(margin).reshape(B, 1).astype(jnp.float32)
    sm = jnp.sin(margin).reshape(B, 1).astype(jnp.float32)
    out = pl.pallas_call(
        functools.partial(_arcface_kernel, s=float(s), tn=tn),
        out_shape=jax.ShapeDtypeStruct((B, Cp), jnp.float32),
        grid_spec=pltpu.PrefetchScalarGridSpec(
            num_scalar_prefetch=0,
            grid=(Cp // tn,),
            in_specs=[pl.BlockSpec((B, D), lambda j: (0, 0)),
                      pl.BlockSpec((D, tn), lambda j: (0, j)),
                      pl.BlockSpec((B, 1), lambda j: (0, 0)),
                      pl.BlockSpec((B, 1), lambda j: (0, 0)),
                      pl.BlockSpec((B, 1), lambda j: (0, 0))],
            out_specs=pl.BlockSpec((B, tn), lambda j: (0, j))),
        compiler_params=_cparams(("parallel",)),
    )(emb, w, lab, cm, sm)
    return out[:, :num_classes]


# ----------------------------------------------------------------------------
# Final fc (25088 -> 512) + bias
# ----------------------------------------------------------------------------
@jax.jit
def fc_forward(x4, w, b):
    N, H, W, C = x4.shape
    # match torch.flatten(x, 1) on NCHW ordering
    flat = jnp.transpose(x4, (0, 3, 1, 2)).reshape(N, C * H * W)
    return matmul(flat, w, out_dtype=jnp.float32) + b[None, :]


# ----------------------------------------------------------------------------
# Parameters (deterministic synthetic init, kernel-ready layouts, bf16 weights)
# ----------------------------------------------------------------------------
_IRESNET100_CFG = [(64, 3), (128, 13), (256, 30), (512, 3)]   # (planes, blocks)
_TH_BY_H = {112: 16, 56: 8, 28: 14, 14: 14, 7: 7}


def init_iresnet100_params(key):
    keys = iter(jax.random.split(key, 512))

    def nk():
        return next(keys)

    def conv3_w(cin, cout):
        return (0.1 * jax.random.normal(nk(), (3, 3, cin, cout),
                                        jnp.float32)).astype(jnp.bfloat16)

    def conv1_w(cin, cout):
        return (0.1 * jax.random.normal(nk(), (cin, cout),
                                        jnp.float32)).astype(jnp.bfloat16)

    def bn_p(c):
        return {'g': jnp.ones((1, c), jnp.float32),
                'b': jnp.zeros((1, c), jnp.float32)}

    def prelu_p(c):
        return jnp.full((1, c), 0.25, jnp.float32)

    # stem conv weight: Cin padded 3 -> 8 (input channels are zero-padded too)
    c1 = 0.1 * jax.random.normal(nk(), (3, 3, 3, 64), jnp.float32)
    c1 = jnp.pad(c1, ((0, 0), (0, 0), (0, 5), (0, 0))).astype(jnp.bfloat16)

    params = {
        'conv1': c1, 'bn1': bn_p(64), 'prelu1': prelu_p(64),
        'layers': [], 'bn2': bn_p(512),
        'fc_w': (0.1 * jax.random.normal(nk(), (512 * 7 * 7, 512),
                                         jnp.float32)).astype(jnp.bfloat16),
        'fc_b': jnp.zeros((512,), jnp.float32),
        'features': bn_p(512),   # BatchNorm1d(512)
    }
    inplanes = 64
    for planes, nblocks in _IRESNET100_CFG:
        layer = []
        for bi in range(nblocks):
            stride = 2 if bi == 0 else 1
            blk = {'stride': stride,
                   'bn1': bn_p(inplanes),
                   'conv1': conv3_w(inplanes, planes),
                   'bn2': bn_p(planes),
                   'prelu': prelu_p(planes),
                   'conv2': conv3_w(planes, planes),
                   'bn3': bn_p(planes)}
            if stride != 1 or inplanes != planes:
                blk['ds_conv'] = conv1_w(inplanes, planes)
                blk['ds_bn'] = bn_p(planes)
            layer.append(blk)
            inplanes = planes
        params['layers'].append(layer)
    return params


def init_elasticfaced_backbone_params(key, num_classes):
    kb, k1, k2, k3, kh = jax.random.split(key, 5)
    sc = 512.0 ** -0.5

    def lin(k, o):
        return sc * jax.random.normal(k, (512, o), jnp.float32)

    return {
        'block': {
            'backbone': init_iresnet100_params(kb),
            'age_trans_w': lin(k1, 512),
            'age_trans_b': jnp.zeros((1, 512), jnp.float32),
            'g_w': lin(k2, 512),
            'g_b': jnp.zeros((1, 512), jnp.float32),
            # age_classify: 512 -> 1, padded to 128 output cols (col 0 is real)
            'age_cls_w': jnp.pad(lin(k3, 1), ((0, 0), (0, 127))),
            'age_cls_b': jnp.zeros((1, 128), jnp.float32),
        },
        # ElasticArcFace kernel: (in=512, out=num_classes), normal(0, 0.01)
        'head_kernel': 0.01 * jax.random.normal(kh, (512, num_classes),
                                                jnp.float32),
    }


# ----------------------------------------------------------------------------
# Forward passes
# ----------------------------------------------------------------------------
def _iblock_forward(x, blk):
    out = bn_nd(x, blk['bn1']['g'], blk['bn1']['b'])
    out = conv3x3_s1(out, blk['conv1'], th=_TH_BY_H[out.shape[1]])
    out = bn_prelu_nd(out, blk['bn2']['g'], blk['bn2']['b'], blk['prelu'])
    if blk['stride'] == 2:
        out = conv3x3_s2(out, blk['conv2'])
    else:
        out = conv3x3_s1(out, blk['conv2'], th=_TH_BY_H[out.shape[1]])
    if 'ds_conv' in blk:
        identity = conv1x1_s2(x, blk['ds_conv'])
        identity = bn_nd(identity, blk['ds_bn']['g'], blk['ds_bn']['b'])
    else:
        identity = x
    return bn_add_nd(out, identity, blk['bn3']['g'], blk['bn3']['b'])


def iresnet100_forward(p, x_nhwc):
    x = conv3x3_s1(x_nhwc, p['conv1'], th=_TH_BY_H[x_nhwc.shape[1]])
    x = bn_prelu_nd(x, p['bn1']['g'], p['bn1']['b'], p['prelu1'])
    for layer in p['layers']:
        for blk in layer:
            x = _iblock_forward(x, blk)
    x = bn_nd(x, p['bn2']['g'], p['bn2']['b'])
    feat = fc_forward(x, p['fc_w'], p['fc_b'])                  # nn.Linear
    feat = bn_nd(feat, p['features']['g'], p['features']['b'],
                 out_dtype=jnp.float32)                         # BatchNorm1d
    return feat


def elasticfaced_backbone_forward(p, x_nhwc, labels, margin_key,
                                  s=64.0, m=0.1, std=0.0125):
    feat = iresnet100_forward(p['block']['backbone'], x_nhwc)
    idf, age_out = dblock_head(feat,
                               p['block']['age_trans_w'], p['block']['age_trans_b'],
                               p['block']['g_w'], p['block']['g_b'],
                               p['block']['age_cls_w'], p['block']['age_cls_b'])
    # ElasticArcFace: per-sample margin ~ Normal(m, std), deterministic sample
    B = labels.shape[0]
    margin = m + std * jax.random.normal(margin_key, (B,), jnp.float32)
    id_class = elastic_arcface(idf, p['head_kernel'], labels, margin,
                               s=float(s))
    return idf, id_class, age_out


def adatranslearn_elasticd3_forward(params, x_nchw, labels, margin_key,
                                    s=64.0, m=0.1, std=0.0125):
    x = jnp.transpose(x_nchw, (0, 2, 3, 1)).astype(jnp.bfloat16)  # NCHW->NHWC
    x = jnp.pad(x, ((0, 0), (0, 0), (0, 0), (0, 8 - x.shape[-1])))  # Cin 3->8
    kt, ks = jax.random.split(margin_key)
    idf_t, idc_t, _ = elasticfaced_backbone_forward(
        params['teacher'], x, labels, kt, s, m, std)
    idf_s, idc_s, age_out = elasticfaced_backbone_forward(
        params['student'], x, labels, ks, s, m, std)
    return idf_s, idf_t, idc_s, idc_t, age_out


# ----------------------------------------------------------------------------
if __name__ == "__main__":
    num_classes = 100
    scale, margin, std = 64.0, 0.1, 0.0125

    key = jax.random.PRNGKey(0)
    k_teacher, k_student, k_x, k_lab, k_margin = jax.random.split(key, 5)

    params = {
        'teacher': init_elasticfaced_backbone_params(k_teacher, num_classes),
        'student': init_elasticfaced_backbone_params(k_student, num_classes),
    }

    # iresnet100's fc expects 512*7*7, which implies 112x112 input.
    x = jax.random.normal(k_x, (2, 3, 112, 112), jnp.float32)
    labels = jax.random.randint(k_lab, (2,), 0, num_classes, jnp.int32)

    outs = adatranslearn_elasticd3_forward(params, x, labels, k_margin,
                                           s=scale, m=margin, std=std)
    jax.block_until_ready(outs)
    idf_s, idf_t, idc_s, idc_t, age_out = outs

    assert idf_s.shape == (2, 512) and idf_t.shape == (2, 512)
    assert idc_s.shape == (2, num_classes) and idc_t.shape == (2, num_classes)
    assert age_out.shape == (2, 1)
    for t in outs:
        assert bool(jnp.all(jnp.isfinite(t.astype(jnp.float32)))), \
            "non-finite output"
    print("KERNEL_OK")
</pallas_src>

<mosaic_0001>
module attributes {stable_mosaic.version = 11 : i64} {
  func.func @_conv3x3_kernel(%arg0: i32, %arg1: i32, %arg2: i32, %arg3: memref<1x16x114x8xbf16, #tpu.memory_space<vmem>>, %arg4: memref<1x16x114x8xbf16, #tpu.memory_space<vmem>>, %arg5: memref<3x3x8x64xbf16, #tpu.memory_space<vmem>>, %arg6: memref<1x16x112x64xbf16, #tpu.memory_space<vmem>>, %arg7: memref<32x114x8xbf16, #tpu.memory_space<vmem>>) attributes {dimension_semantics = [#tpu.dimension_semantics<parallel>, #tpu.dimension_semantics<parallel>, #tpu.dimension_semantics<parallel>], iteration_bounds = array<i64: 1, 2, 7>, scalar_prefetch = 0 : i64, scratch_operands = 1 : i64, tpu.core_type = #tpu.core_type<tc>, window_params = [{transform_indices = @transform_0, window_bounds = array<i64: 1, 16, 114, 8>}, {transform_indices = @transform_1, window_bounds = array<i64: 1, 16, 114, 8>}, {transform_indices = @transform_2, window_bounds = array<i64: 3, 3, 8, 64>}, {transform_indices = @transform_3, window_bounds = array<i64: 1, 16, 112, 64>}]} {
    %c0 = arith.constant 0 : index
    %c0_0 = arith.constant 0 : index
    %c0_1 = arith.constant 0 : index
    %c0_2 = arith.constant 0 : index
    %0 = vector.load %arg3[%c0, %c0_0, %c0_1, %c0_2] : memref<1x16x114x8xbf16, #tpu.memory_space<vmem>>, vector<1x16x114x8xbf16>
    %1 = vector.shape_cast %0 : vector<1x16x114x8xbf16> to vector<16x114x8xbf16>
    %c0_3 = arith.constant 0 : index
    %c0_4 = arith.constant 0 : index
    %c0_5 = arith.constant 0 : index
    %2 = vector.load %arg7[%c0_3, %c0_4, %c0_5] : memref<32x114x8xbf16, #tpu.memory_space<vmem>>, vector<16x114x8xbf16>
    tpu.vector_store %arg7[%c0_3, %c0_4, %c0_5], %1 {strides = array<i32>} : memref<32x114x8xbf16, #tpu.memory_space<vmem>>, vector<16x114x8xbf16>,
    %c0_6 = arith.constant 0 : index
    %c0_7 = arith.constant 0 : index
    %c0_8 = arith.constant 0 : index
    %c0_9 = arith.constant 0 : index
    %3 = vector.load %arg4[%c0_6, %c0_7, %c0_8, %c0_9] : memref<1x16x114x8xbf16, #tpu.memory_space<vmem>>, vector<1x16x114x8xbf16>
    %4 = vector.shape_cast %3 : vector<1x16x114x8xbf16> to vector<16x114x8xbf16>
    %c16 = arith.constant 16 : index
    %c0_10 = arith.constant 0 : index
    %c0_11 = arith.constant 0 : index
    %5 = vector.load %arg7[%c16, %c0_10, %c0_11] : memref<32x114x8xbf16, #tpu.memory_space<vmem>>, vector<16x114x8xbf16>
    tpu.vector_store %arg7[%c16, %c0_10, %c0_11], %4 {strides = array<i32>} : memref<32x114x8xbf16, #tpu.memory_space<vmem>>, vector<16x114x8xbf16>,
    %c0_i32 = arith.constant 0 : i32
    %c16_i32 = arith.constant 16 : i32
    %6 = arith.addi %c0_i32, %c16_i32 : i32
    %c1_i32 = arith.constant 1 : i32
    scf.for %arg8 = %c0_i32 to %6 step %c1_i32  : i32 {
      %cst = arith.constant 0.000000e+00 : f32
      %7 = vector.broadcast %cst : f32 to vector<112x64xf32>
      %c0_i32_13 = arith.constant 0 : i32
      %8 = arith.addi %arg8, %c0_i32_13 : i32
      %9 = arith.index_cast %8 : i32 to index
      %c0_14 = arith.constant 0 : index
      %c0_15 = arith.constant 0 : index
      %10 = vector.load %arg7[%9, %c0_14, %c0_15] : memref<32x114x8xbf16, #tpu.memory_space<vmem>>, vector<1x112x8xbf16>
      %11 = vector.shape_cast %10 : vector<1x112x8xbf16> to vector<112x8xbf16>
      %c0_16 = arith.constant 0 : index
      %c0_17 = arith.constant 0 : index
      %c0_18 = arith.constant 0 : index
      %c0_19 = arith.constant 0 : index
      %12 = vector.load %arg5[%c0_16, %c0_17, %c0_18, %c0_19] : memref<3x3x8x64xbf16, #tpu.memory_space<vmem>>, vector<1x1x8x64xbf16>
      %13 = vector.shape_cast %12 : vector<1x1x8x64xbf16> to vector<8x64xbf16>
      %cst_20 = arith.constant dense<0.000000e+00> : vector<112x64xf32>
      %14 = tpu.matmul %11, %13, %cst_20 {dimension_numbers = #tpu.dot_dimension_numbers<[1], [0], [0], [1], [0, 0, 1, 1], [], []>} : vector<112x8xbf16>, vector<8x64xbf16>, vector<112x64xf32> -> vector<112x64xf32>
      %15 = arith.addf %7, %14 : vector<112x64xf32>
      %c0_i32_21 = arith.constant 0 : i32
      %16 = arith.addi %arg8, %c0_i32_21 : i32
      %17 = arith.index_cast %16 : i32 to index
      %c1 = arith.constant 1 : index
      %c0_22 = arith.constant 0 : index
      %18 = vector.load %arg7[%17, %c1, %c0_22] : memref<32x114x8xbf16, #tpu.memory_space<vmem>>, vector<1x112x8xbf16>
      %19 = vector.shape_cast %18 : vector<1x112x8xbf16> to vector<112x8xbf16>
      %c0_23 = arith.constant 0 : index
      %c1_24 = arith.constant 1 : index
      %c0_25 = arith.constant 0 : index
      %c0_26 = arith.constant 0 : index
      %20 = vector.load %arg5[%c0_23, %c1_24, %c0_25, %c0_26] : memref<3x3x8x64xbf16, #tpu.memory_space<vmem>>, vector<1x1x8x64xbf16>
      %21 = vector.shape_cast %20 : vector<1x1x8x64xbf16> to vector<8x64xbf16>
      %cst_27 = arith.constant dense<0.000000e+00> : vector<112x64xf32>
      %22 = tpu.matmul %19, %21, %cst_27 {dimension_numbers = #tpu.dot_dimension_numbers<[1], [0], [0], [1], [0, 0, 1, 1], [], []>} : vector<112x8xbf16>, vector<8x64xbf16>, vector<112x64xf32> -> vector<112x64xf32>
      %23 = arith.addf %15, %22 : vector<112x64xf32>
      %c0_i32_28 = arith.constant 0 : i32
      %24 = arith.addi %arg8, %c0_i32_28 : i32
      %25 = arith.index_cast %24 : i32 to index
      %c2 = arith.constant 2 : index
      %c0_29 = arith.constant 0 : index
      %26 = vector.load %arg7[%25, %c2, %c0_29] : memref<32x114x8xbf16, #tpu.memory_space<vmem>>, vector<1x112x8xbf16>
      %27 = vector.shape_cast %26 : vector<1x112x8xbf16> to vector<112x8xbf16>
      %c0_30 = arith.constant 0 : index
      %c2_31 = arith.constant 2 : index
      %c0_32 = arith.constant 0 : index
      %c0_33 = arith.constant 0 : index
      %28 = vector.load %arg5[%c0_30, %c2_31, %c0_32, %c0_33] : memref<3x3x8x64xbf16, #tpu.memory_space<vmem>>, vector<1x1x8x64xbf16>
      %29 = vector.shape_cast %28 : vector<1x1x8x64xbf16> to vector<8x64xbf16>
      %cst_34 = arith.constant dense<0.000000e+00> : vector<112x64xf32>
      %30 = tpu.matmul %27, %29, %cst_34 {dimension_numbers = #tpu.dot_dimension_numbers<[1], [0], [0], [1], [0, 0, 1, 1], [], []>} : vector<112x8xbf16>, vector<8x64xbf16>, vector<112x64xf32> -> vector<112x64xf32>
      %31 = arith.addf %23, %30 : vector<112x64xf32>
      %c1_i32_35 = arith.constant 1 : i32
      %32 = arith.addi %arg8, %c1_i32_35 : i32
      %33 = arith.index_cast %32 : i32 to index
      %c0_36 = arith.constant 0 : index
      %c0_37 = arith.constant 0 : index
      %34 = vector.load %arg7[%33, %c0_36, %c0_37] : memref<32x114x8xbf16, #tpu.memory_space<vmem>>, vector<1x112x8xbf16>
      %35 = vector.shape_cast %34 : vector<1x112x8xbf16> to vector<112x8xbf16>
      %c1_38 = arith.constant 1 : index
      %c0_39 = arith.constant 0 : index
      %c0_40 = arith.constant 0 : index
      %c0_41 = arith.constant 0 : index
      %36 = vector.load %arg5[%c1_38, %c0_39, %c0_40, %c0_41] : memref<3x3x8x64xbf16, #tpu.memory_space<vmem>>, vector<1x1x8x64xbf16>
      %37 = vector.shape_cast %36 : vector<1x1x8x64xbf16> to vector<8x64xbf16>
      %cst_42 = arith.constant dense<0.000000e+00> : vector<112x64xf32>
      %38 = tpu.matmul %35, %37, %cst_42 {dimension_numbers = #tpu.dot_dimension_numbers<[1], [0], [0], [1], [0, 0, 1, 1], [], []>} : vector<112x8xbf16>, vector<8x64xbf16>, vector<112x64xf32> -> vector<112x64xf32>
      %39 = arith.addf %31, %38 : vector<112x64xf32>
      %c1_i32_43 = arith.constant 1 : i32
      %40 = arith.addi %arg8, %c1_i32_43 : i32
      %41 = arith.index_cast %40 : i32 to index
      %c1_44 = arith.constant 1 : index
      %c0_45 = arith.constant 0 : index
      %42 = vector.load %arg7[%41, %c1_44, %c0_45] : memref<32x114x8xbf16, #tpu.memory_space<vmem>>, vector<1x112x8xbf16>
      %43 = vector.shape_cast %42 : vector<1x112x8xbf16> to vector<112x8xbf16>
      %c1_46 = arith.constant 1 : index
      %c1_47 = arith.constant 1 : index
      %c0_48 = arith.constant 0 : index
      %c0_49 = arith.constant 0 : index
      %44 = vector.load %arg5[%c1_46, %c1_47, %c0_48, %c0_49] : memref<3x3x8x64xbf16, #tpu.memory_space<vmem>>, vector<1x1x8x64xbf16>
      %45 = vector.shape_cast %44 : vector<1x1x8x64xbf16> to vector<8x64xbf16>
      %cst_50 = arith.constant dense<0.000000e+00> : vector<112x64xf32>
      %46 = tpu.matmul %43, %45, %cst_50 {dimension_numbers = #tpu.dot_dimension_numbers<[1], [0], [0], [1], [0, 0, 1, 1], [], []>} : vector<112x8xbf16>, vector<8x64xbf16>, vector<112x64xf32> -> vector<112x64xf32>
      %47 = arith.addf %39, %46 : vector<112x64xf32>
      %c1_i32_51 = arith.constant 1 : i32
      %48 = arith.addi %arg8, %c1_i32_51 : i32
      %49 = arith.index_cast %48 : i32 to index
      %c2_52 = arith.constant 2 : index
      %c0_53 = arith.constant 0 : index
      %50 = vector.load %arg7[%49, %c2_52, %c0_53] : memref<32x114x8xbf16, #tpu.memory_space<vmem>>, vector<1x112x8xbf16>
      %51 = vector.shape_cast %50 : vector<1x112x8xbf16> to vector<112x8xbf16>
      %c1_54 = arith.constant 1 : index
      %c2_55 = arith.constant 2 : index
      %c0_56 = arith.constant 0 : index
      %c0_57 = arith.constant 0 : index
      %52 = vector.load %arg5[%c1_54, %c2_55, %c0_56, %c0_57] : memref<3x3x8x64xbf16, #tpu.memory_space<vmem>>, vector<1x1x8x64xbf16>
      %53 = vector.shape_cast %52 : vector<1x1x8x64xbf16> to vector<8x64xbf16>
      %cst_58 = arith.constant dense<0.000000e+00> : vector<112x64xf32>
      %54 = tpu.matmul %51, %53, %cst_58 {dimension_numbers = #tpu.dot_dimension_numbers<[1], [0], [0], [1], [0, 0, 1, 1], [], []>} : vector<112x8xbf16>, vector<8x64xbf16>, vector<112x64xf32> -> vector<112x64xf32>
      %55 = arith.addf %47, %54 : vector<112x64xf32>
      %c2_i32 = arith.constant 2 : i32
      %56 = arith.addi %arg8, %c2_i32 : i32
      %57 = arith.index_cast %56 : i32 to index
      %c0_59 = arith.constant 0 : index
      %c0_60 = arith.constant 0 : index
      %58 = vector.load %arg7[%57, %c0_59, %c0_60] : memref<32x114x8xbf16, #tpu.memory_space<vmem>>, vector<1x112x8xbf16>
      %59 = vector.shape_cast %58 : vector<1x112x8xbf16> to vector<112x8xbf16>
      %c2_61 = arith.constant 2 : index
      %c0_62 = arith.constant 0 : index
      %c0_63 = arith.constant 0 : index
      %c0_64 = arith.constant 0 : index
      %60 = vector.load %arg5[%c2_61, %c0_62, %c0_63, %c0_64] : memref<3x3x8x64xbf16, #tpu.memory_space<vmem>>, vector<1x1x8x64xbf16>
      %61 = vector.shape_cast %60 : vector<1x1x8x64xbf16> to vector<8x64xbf16>
      %cst_65 = arith.constant dense<0.000000e+00> : vector<112x64xf32>
      %62 = tpu.matmul %59, %61, %cst_65 {dimension_numbers = #tpu.dot_dimension_numbers<[1], [0], [0], [1], [0, 0, 1, 1], [], []>} : vector<112x8xbf16>, vector<8x64xbf16>, vector<112x64xf32> -> vector<112x64xf32>
      %63 = arith.addf %55, %62 : vector<112x64xf32>
      %c2_i32_66 = arith.constant 2 : i32
      %64 = arith.addi %arg8, %c2_i32_66 : i32
      %65 = arith.index_cast %64 : i32 to index
      %c1_67 = arith.constant 1 : index
      %c0_68 = arith.constant 0 : index
      %66 = vector.load %arg7[%65, %c1_67, %c0_68] : memref<32x114x8xbf16, #tpu.memory_space<vmem>>, vector<1x112x8xbf16>
      %67 = vector.shape_cast %66 : vector<1x112x8xbf16> to vector<112x8xbf16>
      %c2_69 = arith.constant 2 : index
      %c1_70 = arith.constant 1 : index
      %c0_71 = arith.constant 0 : index
      %c0_72 = arith.constant 0 : index
      %68 = vector.load %arg5[%c2_69, %c1_70, %c0_71, %c0_72] : memref<3x3x8x64xbf16, #tpu.memory_space<vmem>>, vector<1x1x8x64xbf16>
      %69 = vector.shape_cast %68 : vector<1x1x8x64xbf16> to vector<8x64xbf16>
      %cst_73 = arith.constant dense<0.000000e+00> : vector<112x64xf32>
      %70 = tpu.matmul %67, %69, %cst_73 {dimension_numbers = #tpu.dot_dimension_numbers<[1], [0], [0], [1], [0, 0, 1, 1], [], []>} : vector<112x8xbf16>, vector<8x64xbf16>, vector<112x64xf32> -> vector<112x64xf32>
      %71 = arith.addf %63, %70 : vector<112x64xf32>
      %c2_i32_74 = arith.constant 2 : i32
      %72 = arith.addi %arg8, %c2_i32_74 : i32
      %73 = arith.index_cast %72 : i32 to index
      %c2_75 = arith.constant 2 : index
      %c0_76 = arith.constant 0 : index
      %74 = vector.load %arg7[%73, %c2_75, %c0_76] : memref<32x114x8xbf16, #tpu.memory_space<vmem>>, vector<1x112x8xbf16>
      %75 = vector.shape_cast %74 : vector<1x112x8xbf16> to vector<112x8xbf16>
      %c2_77 = arith.constant 2 : index
      %c2_78 = arith.constant 2 : index
      %c0_79 = arith.constant 0 : index
      %c0_80 = arith.constant 0 : index
      %76 = vector.load %arg5[%c2_77, %c2_78, %c0_79, %c0_80] : memref<3x3x8x64xbf16, #tpu.memory_space<vmem>>, vector<1x1x8x64xbf16>
      %77 = vector.shape_cast %76 : vector<1x1x8x64xbf16> to vector<8x64xbf16>
      %cst_81 = arith.constant dense<0.000000e+00> : vector<112x64xf32>
      %78 = tpu.matmul %75, %77, %cst_81 {dimension_numbers = #tpu.dot_dimension_numbers<[1], [0], [0], [1], [0, 0, 1, 1], [], []>} : vector<112x8xbf16>, vector<8x64xbf16>, vector<112x64xf32> -> vector<112x64xf32>
      %79 = arith.addf %71, %78 : vector<112x64xf32>
      %80 = arith.truncf %79 : vector<112x64xf32> to vector<112x64xbf16>
      %c0_82 = arith.constant 0 : index
      %81 = arith.index_cast %arg8 : i32 to index
      %c0_83 = arith.constant 0 : index
      %c0_84 = arith.constant 0 : index
      %82 = vector.load %arg6[%c0_82, %81, %c0_83, %c0_84] : memref<1x16x112x64xbf16, #tpu.memory_space<vmem>>, vector<1x1x112x64xbf16>
      %83 = vector.shape_cast %82 : vector<1x1x112x64xbf16> to vector<112x64xbf16>
      %84 = vector.shape_cast %80 : vector<112x64xbf16> to vector<1x1x112x64xbf16>
      tpu.vector_store %arg6[%c0_82, %81, %c0_83, %c0_84], %84 {strides = array<i32>} : memref<1x16x112x64xbf16, #tpu.memory_space<vmem>>, vector<1x1x112x64xbf16>,
    }
    %c16_i32_12 = arith.constant 16 : i32
    return
  }
  func.func @transform_0(%arg0: i32, %arg1: i32, %arg2: i32) -> (i32, i32, i32, i32) {
    %c0_i32 = arith.constant 0 : i32
    %c0_i32_0 = arith.constant 0 : i32
    %c0_i32_1 = arith.constant 0 : i32
    return %arg1, %arg2, %c0_i32, %c0_i32_0 : i32, i32, i32, i32
  }
  func.func @transform_1(%arg0: i32, %arg1: i32, %arg2: i32) -> (i32, i32, i32, i32) {
    %c1_i32 = arith.constant 1 : i32
    %0 = arith.addi %arg2, %c1_i32 : i32
    %c0_i32 = arith.constant 0 : i32
    %c0_i32_0 = arith.constant 0 : i32
    %c0_i32_1 = arith.constant 0 : i32
    return %arg1, %0, %c0_i32, %c0_i32_0 : i32, i32, i32, i32
  }
  func.func @transform_2(%arg0: i32, %arg1: i32, %arg2: i32) -> (i32, i32, i32, i32) {
    %c0_i32 = arith.constant 0 : i32
    %c0_i32_0 = arith.constant 0 : i32
    %c0_i32_1 = arith.constant 0 : i32
    %c0_i32_2 = arith.constant 0 : i32
    return %c0_i32, %c0_i32_0, %c0_i32_1, %arg0 : i32, i32, i32, i32
  }
  func.func @transform_3(%arg0: i32, %arg1: i32, %arg2: i32) -> (i32, i32, i32, i32) {
    %c0_i32 = arith.constant 0 : i32
    %c0_i32_0 = arith.constant 0 : i32
    return %arg1, %arg2, %c0_i32, %arg0 : i32, i32, i32, i32
  }
}

</mosaic_0001>

<llo_original>
// kernel: conv3x3_s1.1
$region0: #{conv3x3_s1.1}
  #allocation0 [shape = 'u32[]', space=smem, size = 0x4, offset = 0x4, fixed_abs, tag = 'smem constant byte address 0x4 - core index']
  #allocation1 [shape = 'u32[72,128]{1,0:T(1,128)}', space=vmem, size = 0x9000, scoped, tag = 'internal scratch']
  #allocation2 [shape = 'bf16[32,114,8]{2,1,0:T(8,128)(2,1)}', space=vmem, size = 0xf0000, scoped, tag = 'scratch operand']
  %s0 = inlined_call_operand.vmem [shape: bf16[2,128,114,8], index: 0, kind: input, shape index: {}, may-alias: {0,1}]
  %s1 = inlined_call_operand.vmem [shape: bf16[2,128,114,8], index: 1, kind: input, shape index: {}, may-alias: {0,1}]
  %s2 = inlined_call_operand.vmem [shape: bf16[3,3,8,64], index: 2, kind: input, shape index: {}]
  %s3 = inlined_call_operand.vmem [shape: bf16[2,112,112,64], index: 3, kind: output, shape index: {}]
  %s4 = sld [smem:[#allocation0]]
  $region52: #{conv3x3_s1.1} parent=0
    _
  %s6 = ssub.s32 1, %s4
  %s7 = scalar_select 0, %s6, %s4
  loop: start=0, step=1, limit=16
  $region2: #{conv3x3_s1.1} parent=0 // loop_pre_header
    _
  $region3: #{conv3x3_s1.1} parent=0 // loop_header
    %s9 = sphi 0, %s13
    %p10 = scmp.ge.s32.totalorder %s9, 16
    %s16 = sphi 0, %s35
    %s17 = sphi 0, %s31
    %s18 = sphi 0, %s27
    %s19 = sphi 0, %s16
    %s20 = sphi 0, %s17
    %s21 = sphi 0, %s18
    %s22 = sphi 0, %s19
    %s23 = sphi 0, %s20
    %s24 = sphi 0, %s21
    %s40 = sphi 0, %s42
    %s43 = sphi 0, %s40
    %s44 = sphi 0, %s43
    %s60 = sphi 0, %s44
    %s70 = sphi 0, %s72
    %s73 = sphi 0, %s70
    %s74 = sphi 0, %s73
    %s90 = sphi 0, %s74
    %s96 = sphi 0, %s98
    %s99 = sphi 0, %s96
    %s100 = sphi 0, %s99
    %s116 = sphi 0, %s100
    %s126 = sphi 0, %s128
    %s129 = sphi 0, %s126
    %s130 = sphi 0, %s129
    %s146 = sphi 0, %s130
  $region4: #{conv3x3_s1.1} parent=0 // loop_header_branch
    %12 = sbr.rel (%p10) target = $region8
  $region5: #{conv3x3_s1.1} parent=0 // loop_body
    %s14 = ssub.s32 %s9, 1
    %s15 = ssub.s32 %s9, 2
    %s25 = sadd.s32 1, %s18
    %p26 = scmp.ge.s32.totalorder %s25, 7
    %s27 = scalar_select %p26, 0, %s25
    %s28 = sadd.s32 1, %s17
    %s29 = scalar_select %p26, %s28, %s17
    %p30 = scmp.ge.s32.totalorder %s29, 2
    %s31 = scalar_select %p30, 0, %s29
    %s32 = sadd.s32 1, %s16
    %s33 = scalar_select %p30, %s32, %s16
    %p34 = scmp.ge.s32.totalorder %s33, 1
    %s35 = scalar_select %p34, 0, %s33
    %s36 = ssub.s32 %s17, %s31
    %s37 = ssub.s32 %s18, %s27
    %s38 = sor.u32 %s36, %s37
    %p39 = scmp.eq.s32.totalorder %s38, 0
    %s41 = sadd.s32 %s40, 1
    %s42 = scalar_select %p39, %s40, %s41
    %p45 = pneg %p39
    %p46 = scmp.eq.s32.totalorder %s9, 13
    %p47 = por %p45, %p46
    %p48 = scmp.ne.s32.totalorder %s40, %s43
    %p49 = scmp.eq.s32.totalorder %s9, 0
    %p50 = por %p48, %p49
    %p51 = scmp.ne.s32.totalorder %s40, %s43
    %p52 = scmp.eq.s32.totalorder %s14, 13
    %p53 = por %p51, %p52
    %p54 = scmp.ne.s32.totalorder %s43, %s44
    %p55 = scmp.eq.s32.totalorder %s14, 0
    %p56 = por %p54, %p55
    %p57 = scmp.ne.s32.totalorder %s43, %s44
    %p58 = scmp.eq.s32.totalorder %s15, 13
    %p59 = por %p57, %p58
    %p61 = scmp.ne.s32.totalorder %s44, %s60
    %p62 = scmp.eq.s32.totalorder %s15, 0
    %p63 = por %p61, %p62
    %s64 = sadd.s32 %s18, 1
    %s65 = sadd.s32 %s27, 1
    %s66 = ssub.s32 %s17, %s31
    %s67 = ssub.s32 %s64, %s65
    %s68 = sor.u32 %s66, %s67
    %p69 = scmp.eq.s32.totalorder %s68, 0
    %s71 = sadd.s32 %s70, 1
    %s72 = scalar_select %p69, %s70, %s71
    %p75 = pneg %p69
    %p76 = scmp.eq.s32.totalorder %s9, 13
    %p77 = por %p75, %p76
    %p78 = scmp.ne.s32.totalorder %s70, %s73
    %p79 = scmp.eq.s32.totalorder %s9, 0
    %p80 = por %p78, %p79
    %p81 = scmp.ne.s32.totalorder %s70, %s73
    %p82 = scmp.eq.s32.totalorder %s14, 13
    %p83 = por %p81, %p82
    %p84 = scmp.ne.s32.totalorder %s73, %s74
    %p85 = scmp.eq.s32.totalorder %s14, 0
    %p86 = por %p84, %p85
    %p87 = scmp.ne.s32.totalorder %s73, %s74
    %p88 = scmp.eq.s32.totalorder %s15, 13
    %p89 = por %p87, %p88
    %p91 = scmp.ne.s32.totalorder %s74, %s90
    %p92 = scmp.eq.s32.totalorder %s15, 0
    %p93 = por %p91, %p92
    %s94 = ssub.s32 %s16, %s35
    %p95 = scmp.eq.s32.totalorder %s94, 0
    %s97 = sadd.s32 %s96, 1
    %s98 = scalar_select %p95, %s96, %s97
    %p101 = pneg %p95
    %p102 = scmp.eq.s32.totalorder %s9, 13
    %p103 = por %p101, %p102
    %p104 = scmp.ne.s32.totalorder %s96, %s99
    %p105 = scmp.eq.s32.totalorder %s9, 0
    %p106 = por %p104, %p105
    %p107 = scmp.ne.s32.totalorder %s96, %s99
    %p108 = scmp.eq.s32.totalorder %s14, 13
    %p109 = por %p107, %p108
    %p110 = scmp.ne.s32.totalorder %s99, %s100
    %p111 = scmp.eq.s32.totalorder %s14, 0
    %p112 = por %p110, %p111
    %p113 = scmp.ne.s32.totalorder %s99, %s100
    %p114 = scmp.eq.s32.totalorder %s15, 13
    %p115 = por %p113, %p114
    %p117 = scmp.ne.s32.totalorder %s100, %s116
    %p118 = scmp.eq.s32.totalorder %s15, 0
    %p119 = por %p117, %p118
    %s120 = ssub.s32 %s17, %s31
    %s121 = ssub.s32 %s18, %s27
    %s122 = sor.u32 %s120, %s121
    %s123 = ssub.s32 %s16, %s35
    %s124 = sor.u32 %s122, %s123
    %p125 = scmp.eq.s32.totalorder %s124, 0
    %s127 = sadd.s32 %s126, 1
    %s128 = scalar_select %p125, %s126, %s127
    %p131 = pneg %p125
    %p132 = scmp.eq.s32.totalorder %s9, 13
    %p133 = por %p131, %p132
    %p134 = scmp.ne.s32.totalorder %s126, %s129
    %p135 = scmp.eq.s32.totalorder %s9, 0
    %p136 = por %p134, %p135
    %p137 = scmp.ne.s32.totalorder %s126, %s129
    %p138 = scmp.eq.s32.totalorder %s14, 13
    %p139 = por %p137, %p138
    %p140 = scmp.ne.s32.totalorder %s129, %s130
    %p141 = scmp.eq.s32.totalorder %s14, 0
    %p142 = por %p140, %p141
    %p143 = scmp.ne.s32.totalorder %s129, %s130
    %p144 = scmp.eq.s32.totalorder %s15, 13
    %p145 = por %p143, %p144
    %p147 = scmp.ne.s32.totalorder %s130, %s146
    %p148 = scmp.eq.s32.totalorder %s15, 0
    %p149 = por %p147, %p148
    %p150 = scmp.le.s32.totalorder 1, %s9
    %p151 = scmp.lt.s32.totalorder %s9, 15
    %p152 = pnand %p150, %p151
    %p153 = pneg %p152
    // Predicated region
    $region9: #{conv3x3_s1.1} parent=5 // pred_check
      _
    $region10: #{conv3x3_s1.1} parent=5 // pred_check_branch
      %155 = sbr.rel (%p152) target = $region12
    $region11: #{conv3x3_s1.1} parent=5 // pred_region
      %s156 = ssub.s32 %s9, 1
      // Predicated region
      $region13: #{conv3x3_s1.1} parent=11 // pred_check
        %p157 = pneg %p112
      $region14: #{conv3x3_s1.1} parent=11 // pred_check_branch
        %159 = sbr.rel (%p157) target = $region16
      $region15: #{conv3x3_s1.1} parent=11 // pred_region
        %p160 = scmp.lt.s32.totalorder %s19, 0
        %s161 = scalar_select %p160, %s19, 0
        %s162 = smul.addr %s161, 4
        %s163 = scalar_lea.vmem %s2, %s162
      $region16: #{conv3x3_s1.1} parent=11 // pred_fallthru
        _
    $region12: #{conv3x3_s1.1} parent=5 // pred_fallthru
      _
    %p164 = scmp.lt.s32.totalorder %s9, 14
    // Predicated region
    $region17: #{conv3x3_s1.1} parent=5 // pred_check
      %p165 = pneg %p164
    $region18: #{conv3x3_s1.1} parent=5 // pred_check_branch
      %167 = sbr.rel (%p165) target = $region20
    $region19: #{conv3x3_s1.1} parent=5 // pred_region
      // Predicated region
      $region21: #{conv3x3_s1.1} parent=19 // pred_check
        %p168 = pneg %p50
      $region22: #{conv3x3_s1.1} parent=19 // pred_check_branch
        %170 = sbr.rel (%p168) target = $region24
      $region23: #{conv3x3_s1.1} parent=19 // pred_region
        %s171 = smul.u32 16, %s18
        %p172 = scmp.lt.s32.totalorder %s17, 1
        %s173 = scalar_select %p172, %s17, 1
        %p174 = scmp.lt.s32.totalorder %s171, 127
        %s175 = scalar_select %p174, %s171, 127
        %s176 = smul.addr %s175, 15
        %s177 = smul.addr %s173, 1920
        %s178 = sadd.s32 %s176, %s177
        %s179 = smul.addr %s178, 4
        %s180 = scalar_lea.vmem %s0, %s179
        %s181 = smul.u32 16, %s18
      $region24: #{conv3x3_s1.1} parent=19 // pred_fallthru
        _
      // Predicated region
      $region25: #{conv3x3_s1.1} parent=19 // pred_check
        %p182 = pneg %p80
      $region26: #{conv3x3_s1.1} parent=19 // pred_check_branch
        %184 = sbr.rel (%p182) target = $region28
      $region27: #{conv3x3_s1.1} parent=19 // pred_region
        %s185 = sadd.s32 %s18, 1
        %s186 = smul.u32 16, %s185
        %p187 = scmp.lt.s32.totalorder %s17, 1
        %s188 = scalar_select %p187, %s17, 1
        %p189 = scmp.lt.s32.totalorder %s186, 127
        %s190 = scalar_select %p189, %s186, 127
        %s191 = smul.addr %s190, 15
        %s192 = smul.addr %s188, 1920
        %s193 = sadd.s32 %s191, %s192
        %s194 = smul.addr %s193, 4
        %s195 = scalar_lea.vmem %s1, %s194
        %s196 = sadd.s32 %s18, 1
        %s197 = smul.u32 16, %s196
      $region28: #{conv3x3_s1.1} parent=19 // pred_fallthru
        _
    $region20: #{conv3x3_s1.1} parent=5 // pred_fallthru
      _
    %p198 = scmp.le.s32.totalorder 1, %s9
    %p199 = scmp.lt.s32.totalorder %s9, 15
    %p200 = pnand %p198, %p199
    %p201 = pneg %p200
    // Predicated region
    $region29: #{conv3x3_s1.1} parent=5 // pred_check
      _
    $region30: #{conv3x3_s1.1} parent=5 // pred_check_branch
      %203 = sbr.rel (%p200) target = $region32
    $region31: #{conv3x3_s1.1} parent=5 // pred_region
      %s204 = ssub.s32 %s9, 1
      %s205 = smul.u32 16, %s21
      %p206 = scmp.lt.s32.totalorder %s20, 1
      %s207 = scalar_select %p206, %s20, 1
      %p208 = scmp.lt.s32.totalorder %s205, 127
      %s209 = scalar_select %p208, %s205, 127
      %s210 = smul.addr %s209, 15
      %s211 = smul.addr %s207, 1920
      %s212 = sadd.s32 %s210, %s211
      %s213 = smul.addr %s212, 4
      %s214 = scalar_lea.vmem %s0, %s213
      %p215 = pneg %p56
      %p216 = pneg %p53
      %s217 = sadd.s32 %s21, 1
      %s218 = smul.u32 16, %s217
      %p219 = scmp.lt.s32.totalorder %s20, 1
      %s220 = scalar_select %p219, %s20, 1
      %p221 = scmp.lt.s32.totalorder %s218, 127
      %s222 = scalar_select %p221, %s218, 127
      %s223 = smul.addr %s222, 15
      %s224 = smul.addr %s220, 1920
      %s225 = sadd.s32 %s223, %s224
      %s226 = smul.addr %s225, 4
      %s227 = scalar_lea.vmem %s1, %s226
      %p228 = pneg %p86
      %p229 = pneg %p83
      %p230 = scmp.lt.s32.totalorder %s19, 0
      %s231 = scalar_select %p230, %s19, 0
      %s232 = smul.addr %s231, 4
      %s233 = scalar_lea.vmem %s2, %s232
      %p234 = pneg %p112
      %p235 = pneg %p109
      %p236 = pneg %p142
      %p237 = pneg %p139
      %s238 = smul.u32 16, %s21
      %p239 = scmp.lt.s32.totalorder %s20, 1
      %s240 = scalar_select %p239, %s20, 1
      %p241 = scmp.lt.s32.totalorder %s238, 111
      %s242 = scalar_select %p241, %s238, 111
      %p243 = scmp.lt.s32.totalorder %s19, 0
      %s244 = scalar_select %p243, %s19, 0
      %s245 = smul.addr %s242, 14
      %s246 = sadd.s32 %s244, %s245
      %s247 = smul.addr %s240, 1568
      %s248 = sadd.s32 %s246, %s247
      %s249 = smul.addr %s248, 4
      %s250 = scalar_lea.vmem %s3, %s249
      %s251 = smul.u32 16, %s21
      %p252 = scmp.lt.s32.totalorder %s20, 1
      %s253 = scalar_select %p252, %s20, 1
      %p254 = scmp.lt.s32.totalorder %s251, 127
      %s255 = scalar_select %p254, %s251, 127
      %s256 = smul.addr %s255, 15
      %s257 = smul.addr %s253, 1920
      %s258 = sadd.s32 %s256, %s257
      %s259 = smul.addr %s258, 4
      %s260 = scalar_lea.vmem %s0, %s259
      %s261 = smul.u32 16, %s21
      %s262 = sadd.s32 %s21, 1
      %s263 = smul.u32 16, %s262
      %p264 = scmp.lt.s32.totalorder %s20, 1
      %s265 = scalar_select %p264, %s20, 1
      %p266 = scmp.lt.s32.totalorder %s263, 127
      %s267 = scalar_select %p266, %s263, 127
      %s268 = smul.addr %s267, 15
      %s269 = smul.addr %s265, 1920
      %s270 = sadd.s32 %s268, %s269
      %s271 = smul.addr %s270, 4
      %s272 = scalar_lea.vmem %s1, %s271
      %s273 = sadd.s32 %s21, 1
      %s274 = smul.u32 16, %s273
      %p275 = scmp.lt.s32.totalorder %s19, 0
      %s276 = scalar_select %p275, %s19, 0
      %s277 = smul.addr %s276, 4
      %s278 = scalar_lea.vmem %s2, %s277
      %s279 = smul.u32 16, %s21
      %p280 = scmp.lt.s32.totalorder %s20, 1
      %s281 = scalar_select %p280, %s20, 1
      %p282 = scmp.lt.s32.totalorder %s279, 111
      %s283 = scalar_select %p282, %s279, 111
      %p284 = scmp.lt.s32.totalorder %s19, 0
      %s285 = scalar_select %p284, %s19, 0
      %s286 = smul.addr %s283, 14
      %s287 = sadd.s32 %s285, %s286
      %s288 = smul.addr %s281, 1568
      %s289 = sadd.s32 %s287, %s288
      %s290 = smul.addr %s289, 4
      %s291 = scalar_lea.vmem %s3, %s290
      %s292 = smul.u32 16, %s21
      %v294 = vld [vmem:[%s260] sm:$0xf]
      %v295 = vld [vmem:[%s260 + $0x4] sm:$0xf]
      %v296 = vld [vmem:[%s260 + $0x8] sm:$0xf]
      %v297 = vld [vmem:[%s260 + $0xc] sm:$0xf]
      %v298 = vld [vmem:[%s260 + $0x10] sm:$0xf]
      %v299 = vld [vmem:[%s260 + $0x14] sm:$0xf]
      %v300 = vld [vmem:[%s260 + $0x18] sm:$0xf]
      %v301 = vld [vmem:[%s260 + $0x1c] sm:$0xf]
      %v302 = vld [vmem:[%s260 + $0x20] sm:$0xf]
      %v303 = vld [vmem:[%s260 + $0x24] sm:$0xf]
      %v304 = vld [vmem:[%s260 + $0x28] sm:$0xf]
      %v305 = vld [vmem:[%s260 + $0x2c] sm:$0xf]
      %v306 = vld [vmem:[%s260 + $0x30] sm:$0xf]
      %v307 = vld [vmem:[%s260 + $0x34] sm:$0xf]
      %v308 = vld [vmem:[%s260 + $0x38] sm:$0x1]
      %v309 = vld [vmem:[%s260 + $0x3c] sm:$0xf]
      %v310 = vld [vmem:[%s260 + $0x40] sm:$0xf]
      %v311 = vld [vmem:[%s260 + $0x44] sm:$0xf]
      %v312 = vld [vmem:[%s260 + $0x48] sm:$0xf]
      %v313 = vld [vmem:[%s260 + $0x4c] sm:$0xf]
      %v314 = vld [vmem:[%s260 + $0x50] sm:$0xf]
      %v315 = vld [vmem:[%s260 + $0x54] sm:$0xf]
      %v316 = vld [vmem:[%s260 + $0x58] sm:$0xf]
      %v317 = vld [vmem:[%s260 + $0x5c] sm:$0xf]
      %v318 = vld [vmem:[%s260 + $0x60] sm:$0xf]
      %v319 = vld [vmem:[%s260 + $0x64] sm:$0xf]
      %v320 = vld [vmem:[%s260 + $0x68] sm:$0xf]
      %v321 = vld [vmem:[%s260 + $0x6c] sm:$0xf]
      %v322 = vld [vmem:[%s260 + $0x70] sm:$0xf]
      %v323 = vld [vmem:[%s260 + $0x74] sm:$0x1]
      %v324 = vld [vmem:[%s260 + $0x78] sm:$0xf]
      %v325 = vld [vmem:[%s260 + $0x7c] sm:$0xf]
      %v326 = vld [vmem:[%s260 + $0x80] sm:$0xf]
      %v327 = vld [vmem:[%s260 + $0x84] sm:$0xf]
      %v328 = vld [vmem:[%s260 + $0x88] sm:$0xf]
      %v329 = vld [vmem:[%s260 + $0x8c] sm:$0xf]
      %v330 = vld [vmem:[%s260 + $0x90] sm:$0xf]
      %v331 = vld [vmem:[%s260 + $0x94] sm:$0xf]
      %v332 = vld [vmem:[%s260 + $0x98] sm:$0xf]
      %v333 = vld [vmem:[%s260 + $0x9c] sm:$0xf]
      %v334 = vld [vmem:[%s260 + $0xa0] sm:$0xf]
      %v335 = vld [vmem:[%s260 + $0xa4] sm:$0xf]
      %v336 = vld [vmem:[%s260 + $0xa8] sm:$0xf]
      %v337 = vld [vmem:[%s260 + $0xac] sm:$0xf]
      %v338 = vld [vmem:[%s260 + $0xb0] sm:$0x1]
      %v339 = vld [vmem:[%s260 + $0xb4] sm:$0xf]
      %v340 = vld [vmem:[%s260 + $0xb8] sm:$0xf]
      %v341 = vld [vmem:[%s260 + $0xbc] sm:$0xf]
      %v342 = vld [vmem:[%s260 + $0xc0] sm:$0xf]
      %v343 = vld [vmem:[%s260 + $0xc4] sm:$0xf]
      %v344 = vld [vmem:[%s260 + $0xc8] sm:$0xf]
      %v345 = vld [vmem:[%s260 + $0xcc] sm:$0xf]
      %v346 = vld [vmem:[%s260 + $0xd0] sm:$0xf]
      %v347 = vld [vmem:[%s260 + $0xd4] sm:$0xf]
      %v348 = vld [vmem:[%s260 + $0xd8] sm:$0xf]
      %v349 = vld [vmem:[%s260 + $0xdc] sm:$0xf]
      %v350 = vld [vmem:[%s260 + $0xe0] sm:$0xf]
      %v351 = vld [vmem:[%s260 + $0xe4] sm:$0xf]
      %v352 = vld [vmem:[%s260 + $0xe8] sm:$0xf]
      %v353 = vld [vmem:[%s260 + $0xec] sm:$0x1]
      %v354 = vld [vmem:[%s260 + $0xf0] sm:$0xf]
      %v355 = vld [vmem:[%s260 + $0xf4] sm:$0xf]
      %v356 = vld [vmem:[%s260 + $0xf8] sm:$0xf]
      %v357 = vld [vmem:[%s260 + $0xfc] sm:$0xf]
      %v358 = vld [vmem:[%s260 + $0x100] sm:$0xf]
      %v359 = vld [vmem:[%s260 + $0x104] sm:$0xf]
      %v360 = vld [vmem:[%s260 + $0x108] sm:$0xf]
      %v361 = vld [vmem:[%s260 + $0x10c] sm:$0xf]
      %v362 = vld [vmem:[%s260 + $0x110] sm:$0xf]
      %v363 = vld [vmem:[%s260 + $0x114] sm:$0xf]
      %v364 = vld [vmem:[%s260 + $0x118] sm:$0xf]
      %v365 = vld [vmem:[%s260 + $0x11c] sm:$0xf]
      %v366 = vld [vmem:[%s260 + $0x120] sm:$0xf]
      %v367 = vld [vmem:[%s260 + $0x124] sm:$0xf]
      %v368 = vld [vmem:[%s260 + $0x128] sm:$0x1]
      %v369 = vld [vmem:[%s260 + $0x12c] sm:$0xf]
      %v370 = vld [vmem:[%s260 + $0x130] sm:$0xf]
      %v371 = vld [vmem:[%s260 + $0x134] sm:$0xf]
      %v372 = vld [vmem:[%s260 + $0x138] sm:$0xf]
      %v373 = vld [vmem:[%s260 + $0x13c] sm:$0xf]
      %v374 = vld [vmem:[%s260 + $0x140] sm:$0xf]
      %v375 = vld [vmem:[%s260 + $0x144] sm:$0xf]
      %v376 = vld [vmem:[%s260 + $0x148] sm:$0xf]
      %v377 = vld [vmem:[%s260 + $0x14c] sm:$0xf]
      %v378 = vld [vmem:[%s260 + $0x150] sm:$0xf]
      %v379 = vld [vmem:[%s260 + $0x154] sm:$0xf]
      %v380 = vld [vmem:[%s260 + $0x158] sm:$0xf]
      %v381 = vld [vmem:[%s260 + $0x15c] sm:$0xf]
      %v382 = vld [vmem:[%s260 + $0x160] sm:$0xf]
      %v383 = vld [vmem:[%s260 + $0x164] sm:$0x1]
      %v384 = vld [vmem:[%s260 + $0x168] sm:$0xf]
      %v385 = vld [vmem:[%s260 + $0x16c] sm:$0xf]
      %v386 = vld [vmem:[%s260 + $0x170] sm:$0xf]
      %v387 = vld [vmem:[%s260 + $0x174] sm:$0xf]
      %v388 = vld [vmem:[%s260 + $0x178] sm:$0xf]
      %v389 = vld [vmem:[%s260 + $0x17c] sm:$0xf]
      %v390 = vld [vmem:[%s260 + $0x180] sm:$0xf]
      %v391 = vld [vmem:[%s260 + $0x184] sm:$0xf]
      %v392 = vld [vmem:[%s260 + $0x188] sm:$0xf]
      %v393 = vld [vmem:[%s260 + $0x18c] sm:$0xf]
      %v394 = vld [vmem:[%s260 + $0x190] sm:$0xf]
      %v395 = vld [vmem:[%s260 + $0x194] sm:$0xf]
      %v396 = vld [vmem:[%s260 + $0x198] sm:$0xf]
      %v397 = vld [vmem:[%s260 + $0x19c] sm:$0xf]
      %v398 = vld [vmem:[%s260 + $0x1a0] sm:$0x1]
      %v399 = vld [vmem:[%s260 + $0x1a4] sm:$0xf]
      %v400 = vld [vmem:[%s260 + $0x1a8] sm:$0xf]
      %v401 = vld [vmem:[%s260 + $0x1ac] sm:$0xf]
      %v402 = vld [vmem:[%s260 + $0x1b0] sm:$0xf]
      %v403 = vld [vmem:[%s260 + $0x1b4] sm:$0xf]
      %v404 = vld [vmem:[%s260 + $0x1b8] sm:$0xf]
      %v405 = vld [vmem:[%s260 + $0x1bc] sm:$0xf]
      %v406 = vld [vmem:[%s260 + $0x1c0] sm:$0xf]
      %v407 = vld [vmem:[%s260 + $0x1c4] sm:$0xf]
      %v408 = vld [vmem:[%s260 + $0x1c8] sm:$0xf]
      %v409 = vld [vmem:[%s260 + $0x1cc] sm:$0xf]
      %v410 = vld [vmem:[%s260 + $0x1d0] sm:$0xf]
      %v411 = vld [vmem:[%s260 + $0x1d4] sm:$0xf]
      %v412 = vld [vmem:[%s260 + $0x1d8] sm:$0xf]
      %v413 = vld [vmem:[%s260 + $0x1dc] sm:$0x1]
      %v414 = vld [vmem:[%s260 + $0x1e0] sm:$0xf]
      %v415 = vld [vmem:[%s260 + $0x1e4] sm:$0xf]
      %v416 = vld [vmem:[%s260 + $0x1e8] sm:$0xf]
      %v417 = vld [vmem:[%s260 + $0x1ec] sm:$0xf]
      %v418 = vld [vmem:[%s260 + $0x1f0] sm:$0xf]
      %v419 = vld [vmem:[%s260 + $0x1f4] sm:$0xf]
      %v420 = vld [vmem:[%s260 + $0x1f8] sm:$0xf]
      %v421 = vld [vmem:[%s260 + $0x1fc] sm:$0xf]
      %v422 = vld [vmem:[%s260 + $0x200] sm:$0xf]
      %v423 = vld [vmem:[%s260 + $0x204] sm:$0xf]
      %v424 = vld [vmem:[%s260 + $0x208] sm:$0xf]
      %v425 = vld [vmem:[%s260 + $0x20c] sm:$0xf]
      %v426 = vld [vmem:[%s260 + $0x210] sm:$0xf]
      %v427 = vld [vmem:[%s260 + $0x214] sm:$0xf]
      %v428 = vld [vmem:[%s260 + $0x218] sm:$0x1]
      %v429 = vld [vmem:[%s260 + $0x21c] sm:$0xf]
      %v430 = vld [vmem:[%s260 + $0x220] sm:$0xf]
      %v431 = vld [vmem:[%s260 + $0x224] sm:$0xf]
      %v432 = vld [vmem:[%s260 + $0x228] sm:$0xf]
      %v433 = vld [vmem:[%s260 + $0x22c] sm:$0xf]
      %v434 = vld [vmem:[%s260 + $0x230] sm:$0xf]
      %v435 = vld [vmem:[%s260 + $0x234] sm:$0xf]
      %v436 = vld [vmem:[%s260 + $0x238] sm:$0xf]
      %v437 = vld [vmem:[%s260 + $0x23c] sm:$0xf]
      %v438 = vld [vmem:[%s260 + $0x240] sm:$0xf]
      %v439 = vld [vmem:[%s260 + $0x244] sm:$0xf]
      %v440 = vld [vmem:[%s260 + $0x248] sm:$0xf]
      %v441 = vld [vmem:[%s260 + $0x24c] sm:$0xf]
      %v442 = vld [vmem:[%s260 + $0x250] sm:$0xf]
      %v443 = vld [vmem:[%s260 + $0x254] sm:$0x1]
      %v444 = vld [vmem:[%s260 + $0x258] sm:$0xf]
      %v445 = vld [vmem:[%s260 + $0x25c] sm:$0xf]
      %v446 = vld [vmem:[%s260 + $0x260] sm:$0xf]
      %v447 = vld [vmem:[%s260 + $0x264] sm:$0xf]
      %v448 = vld [vmem:[%s260 + $0x268] sm:$0xf]
      %v449 = vld [vmem:[%s260 + $0x26c] sm:$0xf]
      %v450 = vld [vmem:[%s260 + $0x270] sm:$0xf]
      %v451 = vld [vmem:[%s260 + $0x274] sm:$0xf]
      %v452 = vld [vmem:[%s260 + $0x278] sm:$0xf]
      %v453 = vld [vmem:[%s260 + $0x27c] sm:$0xf]
      %v454 = vld [vmem:[%s260 + $0x280] sm:$0xf]
      %v455 = vld [vmem:[%s260 + $0x284] sm:$0xf]
      %v456 = vld [vmem:[%s260 + $0x288] sm:$0xf]
      %v457 = vld [vmem:[%s260 + $0x28c] sm:$0xf]
      %v458 = vld [vmem:[%s260 + $0x290] sm:$0x1]
      %v459 = vld [vmem:[%s260 + $0x294] sm:$0xf]
      %v460 = vld [vmem:[%s260 + $0x298] sm:$0xf]
      %v461 = vld [vmem:[%s260 + $0x29c] sm:$0xf]
      %v462 = vld [vmem:[%s260 + $0x2a0] sm:$0xf]
      %v463 = vld [vmem:[%s260 + $0x2a4] sm:$0xf]
      %v464 = vld [vmem:[%s260 + $0x2a8] sm:$0xf]
      %v465 = vld [vmem:[%s260 + $0x2ac] sm:$0xf]
      %v466 = vld [vmem:[%s260 + $0x2b0] sm:$0xf]
      %v467 = vld [vmem:[%s260 + $0x2b4] sm:$0xf]
      %v468 = vld [vmem:[%s260 + $0x2b8] sm:$0xf]
      %v469 = vld [vmem:[%s260 + $0x2bc] sm:$0xf]
      %v470 = vld [vmem:[%s260 + $0x2c0] sm:$0xf]
      %v471 = vld [vmem:[%s260 + $0x2c4] sm:$0xf]
      %v472 = vld [vmem:[%s260 + $0x2c8] sm:$0xf]
      %v473 = vld [vmem:[%s260 + $0x2cc] sm:$0x1]
      %v474 = vld [vmem:[%s260 + $0x2d0] sm:$0xf]
      %v475 = vld [vmem:[%s260 + $0x2d4] sm:$0xf]
      %v476 = vld [vmem:[%s260 + $0x2d8] sm:$0xf]
      %v477 = vld [vmem:[%s260 + $0x2dc] sm:$0xf]
      %v478 = vld [vmem:[%s260 + $0x2e0] sm:$0xf]
      %v479 = vld [vmem:[%s260 + $0x2e4] sm:$0xf]
      %v480 = vld [vmem:[%s260 + $0x2e8] sm:$0xf]
      %v481 = vld [vmem:[%s260 + $0x2ec] sm:$0xf]
      %v482 = vld [vmem:[%s260 + $0x2f0] sm:$0xf]
      %v483 = vld [vmem:[%s260 + $0x2f4] sm:$0xf]
      %v484 = vld [vmem:[%s260 + $0x2f8] sm:$0xf]
      %v485 = vld [vmem:[%s260 + $0x2fc] sm:$0xf]
      %v486 = vld [vmem:[%s260 + $0x300] sm:$0xf]
      %v487 = vld [vmem:[%s260 + $0x304] sm:$0xf]
      %v488 = vld [vmem:[%s260 + $0x308] sm:$0x1]
      %v489 = vld [vmem:[%s260 + $0x30c] sm:$0xf]
      %v490 = vld [vmem:[%s260 + $0x310] sm:$0xf]
      %v491 = vld [vmem:[%s260 + $0x314] sm:$0xf]
      %v492 = vld [vmem:[%s260 + $0x318] sm:$0xf]
      %v493 = vld [vmem:[%s260 + $0x31c] sm:$0xf]
      %v494 = vld [vmem:[%s260 + $0x320] sm:$0xf]
      %v495 = vld [vmem:[%s260 + $0x324] sm:$0xf]
      %v496 = vld [vmem:[%s260 + $0x328] sm:$0xf]
      %v497 = vld [vmem:[%s260 + $0x32c] sm:$0xf]
      %v498 = vld [vmem:[%s260 + $0x330] sm:$0xf]
      %v499 = vld [vmem:[%s260 + $0x334] sm:$0xf]
      %v500 = vld [vmem:[%s260 + $0x338] sm:$0xf]
      %v501 = vld [vmem:[%s260 + $0x33c] sm:$0xf]
      %v502 = vld [vmem:[%s260 + $0x340] sm:$0xf]
      %v503 = vld [vmem:[%s260 + $0x344] sm:$0x1]
      %v504 = vld [vmem:[%s260 + $0x348] sm:$0xf]
      %v505 = vld [vmem:[%s260 + $0x34c] sm:$0xf]
      %v506 = vld [vmem:[%s260 + $0x350] sm:$0xf]
      %v507 = vld [vmem:[%s260 + $0x354] sm:$0xf]
      %v508 = vld [vmem:[%s260 + $0x358] sm:$0xf]
      %v509 = vld [vmem:[%s260 + $0x35c] sm:$0xf]
      %v510 = vld [vmem:[%s260 + $0x360] sm:$0xf]
      %v511 = vld [vmem:[%s260 + $0x364] sm:$0xf]
      %v512 = vld [vmem:[%s260 + $0x368] sm:$0xf]
      %v513 = vld [vmem:[%s260 + $0x36c] sm:$0xf]
      %v514 = vld [vmem:[%s260 + $0x370] sm:$0xf]
      %v515 = vld [vmem:[%s260 + $0x374] sm:$0xf]
      %v516 = vld [vmem:[%s260 + $0x378] sm:$0xf]
      %v517 = vld [vmem:[%s260 + $0x37c] sm:$0xf]
      %v518 = vld [vmem:[%s260 + $0x380] sm:$0x1]
      %v519 = vld [vmem:[%s260 + $0x384] sm:$0xf]
      %v520 = vld [vmem:[%s260 + $0x388] sm:$0xf]
      %v521 = vld [vmem:[%s260 + $0x38c] sm:$0xf]
      %v522 = vld [vmem:[%s260 + $0x390] sm:$0xf]
      %v523 = vld [vmem:[%s260 + $0x394] sm:$0xf]
      %v524 = vld [vmem:[%s260 + $0x398] sm:$0xf]
      %v525 = vld [vmem:[%s260 + $0x39c] sm:$0xf]
      %v526 = vld [vmem:[%s260 + $0x3a0] sm:$0xf]
      %v527 = vld [vmem:[%s260 + $0x3a4] sm:$0xf]
      %v528 = vld [vmem:[%s260 + $0x3a8] sm:$0xf]
      %v529 = vld [vmem:[%s260 + $0x3ac] sm:$0xf]
      %v530 = vld [vmem:[%s260 + $0x3b0] sm:$0xf]
      %v531 = vld [vmem:[%s260 + $0x3b4] sm:$0xf]
      %v532 = vld [vmem:[%s260 + $0x3b8] sm:$0xf]
      %v533 = vld [vmem:[%s260 + $0x3bc] sm:$0x1]
      %vm534 = vcmask 60416
      %535 = vst.msk [vmem:[#allocation2] sm:$0xf] %vm534, %v294
      %536 = vst.msk [vmem:[#allocation2 + $0x4] sm:$0xf] %vm534, %v295
      %537 = vst.msk [vmem:[#allocation2 + $0x8] sm:$0xf] %vm534, %v296
      %538 = vst.msk [vmem:[#allocation2 + $0xc] sm:$0xf] %vm534, %v297
      %539 = vst.msk [vmem:[#allocation2 + $0x10] sm:$0xf] %vm534, %v298
      %540 = vst.msk [vmem:[#allocation2 + $0x14] sm:$0xf] %vm534, %v299
      %541 = vst.msk [vmem:[#allocation2 + $0x18] sm:$0xf] %vm534, %v300
      %542 = vst.msk [vmem:[#allocation2 + $0x1c] sm:$0xf] %vm534, %v301
      %543 = vst.msk [vmem:[#allocation2 + $0x20] sm:$0xf] %vm534, %v302
      %544 = vst.msk [vmem:[#allocation2 + $0x24] sm:$0xf] %vm534, %v303
      %545 = vst.msk [vmem:[#allocation2 + $0x28] sm:$0xf] %vm534, %v304
      %546 = vst.msk [vmem:[#allocation2 + $0x2c] sm:$0xf] %vm534, %v305
      %547 = vst.msk [vmem:[#allocation2 + $0x30] sm:$0xf] %vm534, %v306
      %548 = vst.msk [vmem:[#allocation2 + $0x34] sm:$0xf] %vm534, %v307
      %vm549 = vcmask 57344
      %550 = vst.msk [vmem:[#allocation2 + $0x38] sm:$0x1] %vm549, %v308
      %551 = vst.msk [vmem:[#allocation2 + $0x3c] sm:$0xf] %vm534, %v309
      %552 = vst.msk [vmem:[#allocation2 + $0x40] sm:$0xf] %vm534, %v310
      %553 = vst.msk [vmem:[#allocation2 + $0x44] sm:$0xf] %vm534, %v311
      %554 = vst.msk [vmem:[#allocation2 + $0x48] sm:$0xf] %vm534, %v312
      %555 = vst.msk [vmem:[#allocation2 + $0x4c] sm:$0xf] %vm534, %v313
      %556 = vst.msk [vmem:[#allocation2 + $0x50] sm:$0xf] %vm534, %v314
      %557 = vst.msk [vmem:[#allocation2 + $0x54] sm:$0xf] %vm534, %v315
      %558 = vst.msk [vmem:[#allocation2 + $0x58] sm:$0xf] %vm534, %v316
      %559 = vst.msk [vmem:[#allocation2 + $0x5c] sm:$0xf] %vm534, %v317
      %560 = vst.msk [vmem:[#allocation2 + $0x60] sm:$0xf] %vm534, %v318
      %561 = vst.msk [vmem:[#allocation2 + $0x64] sm:$0xf] %vm534, %v319
      %562 = vst.msk [vmem:[#allocation2 + $0x68] sm:$0xf] %vm534, %v320
      %563 = vst.msk [vmem:[#allocation2 + $0x6c] sm:$0xf] %vm534, %v321
      %564 = vst.msk [vmem:[#allocation2 + $0x70] sm:$0xf] %vm534, %v322
      %565 = vst.msk [vmem:[#allocation2 + $0x74] sm:$0x1] %vm549, %v323
      %566 = vst.msk [vmem:[#allocation2 + $0x78] sm:$0xf] %vm534, %v324
      %567 = vst.msk [vmem:[#allocation2 + $0x7c] sm:$0xf] %vm534, %v325
      %568 = vst.msk [vmem:[#allocation2 + $0x80] sm:$0xf] %vm534, %v326
      %569 = vst.msk [vmem:[#allocation2 + $0x84] sm:$0xf] %vm534, %v327
      %570 = vst.msk [vmem:[#allocation2 + $0x88] sm:$0xf] %vm534, %v328
      %571 = vst.msk [vmem:[#allocation2 + $0x8c] sm:$0xf] %vm534, %v329
      %572 = vst.msk [vmem:[#allocation2 + $0x90] sm:$0xf] %vm534, %v330
      %573 = vst.msk [vmem:[#allocation2 + $0x94] sm:$0xf] %vm534, %v331
      %574 = vst.msk [vmem:[#allocation2 + $0x98] sm:$0xf] %vm534, %v332
      %575 = vst.msk [vmem:[#allocation2 + $0x9c] sm:$0xf] %vm534, %v333
      %576 = vst.msk [vmem:[#allocation2 + $0xa0] sm:$0xf] %vm534, %v334
      %577 = vst.msk [vmem:[#allocation2 + $0xa4] sm:$0xf] %vm534, %v335
      %578 = vst.msk [vmem:[#allocation2 + $0xa8] sm:$0xf] %vm534, %v336
      %579 = vst.msk [vmem:[#allocation2 + $0xac] sm:$0xf] %vm534, %v337
      %580 = vst.msk [vmem:[#allocation2 + $0xb0] sm:$0x1] %vm549, %v338
      %581 = vst.msk [vmem:[#allocation2 + $0xb4] sm:$0xf] %vm534, %v339
      %582 = vst.msk [vmem:[#allocation2 + $0xb8] sm:$0xf] %vm534, %v340
      %583 = vst.msk [vmem:[#allocation2 + $0xbc] sm:$0xf] %vm534, %v341
      %584 = vst.msk [vmem:[#allocation2 + $0xc0] sm:$0xf] %vm534, %v342
      %585 = vst.msk [vmem:[#allocation2 + $0xc4] sm:$0xf] %vm534, %v343
      %586 = vst.msk [vmem:[#allocation2 + $0xc8] sm:$0xf] %vm534, %v344
      %587 = vst.msk [vmem:[#allocation2 + $0xcc] sm:$0xf] %vm534, %v345
      %588 = vst.msk [vmem:[#allocation2 + $0xd0] sm:$0xf] %vm534, %v346
      %589 = vst.msk [vmem:[#allocation2 + $0xd4] sm:$0xf] %vm534, %v347
      %590 = vst.msk [vmem:[#allocation2 + $0xd8] sm:$0xf] %vm534, %v348
      %591 = vst.msk [vmem:[#allocation2 + $0xdc] sm:$0xf] %vm534, %v349
      %592 = vst.msk [vmem:[#allocation2 + $0xe0] sm:$0xf] %vm534, %v350
      %593 = vst.msk [vmem:[#allocation2 + $0xe4] sm:$0xf] %vm534, %v351
      %594 = vst.msk [vmem:[#allocation2 + $0xe8] sm:$0xf] %vm534, %v352
      %595 = vst.msk [vmem:[#allocation2 + $0xec] sm:$0x1] %vm549, %v353
      %596 = vst.msk [vmem:[#allocation2 + $0xf0] sm:$0xf] %vm534, %v354
      %597 = vst.msk [vmem:[#allocation2 + $0xf4] sm:$0xf] %vm534, %v355
      %598 = vst.msk [vmem:[#allocation2 + $0xf8] sm:$0xf] %vm534, %v356
      %599 = vst.msk [vmem:[#allocation2 + $0xfc] sm:$0xf] %vm534, %v357
      %600 = vst.msk [vmem:[#allocation2 + $0x100] sm:$0xf] %vm534, %v358
      %601 = vst.msk [vmem:[#allocation2 + $0x104] sm:$0xf] %vm534, %v359
      %602 = vst.msk [vmem:[#allocation2 + $0x108] sm:$0xf] %vm534, %v360
      %603 = vst.msk [vmem:[#allocation2 + $0x10c] sm:$0xf] %vm534, %v361
      %604 = vst.msk [vmem:[#allocation2 + $0x110] sm:$0xf] %vm534, %v362
      %605 = vst.msk [vmem:[#allocation2 + $0x114] sm:$0xf] %vm534, %v363
      %606 = vst.msk [vmem:[#allocation2 + $0x118] sm:$0xf] %vm534, %v364
      %607 = vst.msk [vmem:[#allocation2 + $0x11c] sm:$0xf] %vm534, %v365
      %608 = vst.msk [vmem:[#allocation2 + $0x120] sm:$0xf] %vm534, %v366
      %609 = vst.msk [vmem:[#allocation2 + $0x124] sm:$0xf] %vm534, %v367
      %610 = vst.msk [vmem:[#allocation2 + $0x128] sm:$0x1] %vm549, %v368
      %611 = vst.msk [vmem:[#allocation2 + $0x12c] sm:$0xf] %vm534, %v369
      %612 = vst.msk [vmem:[#allocation2 + $0x130] sm:$0xf] %vm534, %v370
      %613 = vst.msk [vmem:[#allocation2 + $0x134] sm:$0xf] %vm534, %v371
      %614 = vst.msk [vmem:[#allocation2 + $0x138] sm:$0xf] %vm534, %v372
      %615 = vst.msk [vmem:[#allocation2 + $0x13c] sm:$0xf] %vm534, %v373
      %616 = vst.msk [vmem:[#allocation2 + $0x140] sm:$0xf] %vm534, %v374
      %617 = vst.msk [vmem:[#allocation2 + $0x144] sm:$0xf] %vm534, %v375
      %618 = vst.msk [vmem:[#allocation2 + $0x148] sm:$0xf] %vm534, %v376
      %619 = vst.msk [vmem:[#allocation2 + $0x14c] sm:$0xf] %vm534, %v377
      %620 = vst.msk [vmem:[#allocation2 + $0x150] sm:$0xf] %vm534, %v378
      %621 = vst.msk [vmem:[#allocation2 + $0x154] sm:$0xf] %vm534, %v379
      %622 = vst.msk [vmem:[#allocation2 + $0x158] sm:$0xf] %vm534, %v380
      %623 = vst.msk [vmem:[#allocation2 + $0x15c] sm:$0xf] %vm534, %v381
      %624 = vst.msk [vmem:[#allocation2 + $0x160] sm:$0xf] %vm534, %v382
      %625 = vst.msk [vmem:[#allocation2 + $0x164] sm:$0x1] %vm549, %v383
      %626 = vst.msk [vmem:[#allocation2 + $0x168] sm:$0xf] %vm534, %v384
      %627 = vst.msk [vmem:[#allocation2 + $0x16c] sm:$0xf] %vm534, %v385
      %628 = vst.msk [vmem:[#allocation2 + $0x170] sm:$0xf] %vm534, %v386
      %629 = vst.msk [vmem:[#allocation2 + $0x174] sm:$0xf] %vm534, %v387
      %630 = vst.msk [vmem:[#allocation2 + $0x178] sm:$0xf] %vm534, %v388
      %631 = vst.msk [vmem:[#allocation2 + $0x17c] sm:$0xf] %vm534, %v389
      %632 = vst.msk [vmem:[#allocation2 + $0x180] sm:$0xf] %vm534, %v390
      %633 = vst.msk [vmem:[#allocation2 + $0x184] sm:$0xf] %vm534, %v391
      %634 = vst.msk [vmem:[#allocation2 + $0x188] sm:$0xf] %vm534, %v392
      %635 = vst.msk [vmem:[#allocation2 + $0x18c] sm:$0xf] %vm534, %v393
      %636 = vst.msk [vmem:[#allocation2 + $0x190] sm:$0xf] %vm534, %v394
      %637 = vst.msk [vmem:[#allocation2 + $0x194] sm:$0xf] %vm534, %v395
      %638 = vst.msk [vmem:[#allocation2 + $0x198] sm:$0xf] %vm534, %v396
      %639 = vst.msk [vmem:[#allocation2 + $0x19c] sm:$0xf] %vm534, %v397
      %640 = vst.msk [vmem:[#allocation2 + $0x1a0] sm:$0x1] %vm549, %v398
      %641 = vst.msk [vmem:[#allocation2 + $0x1a4] sm:$0xf] %vm534, %v399
      %642 = vst.msk [vmem:[#allocation2 + $0x1a8] sm:$0xf] %vm534, %v400
      %643 = vst.msk [vmem:[#allocation2 + $0x1ac] sm:$0xf] %vm534, %v401
      %644 = vst.msk [vmem:[#allocation2 + $0x1b0] sm:$0xf] %vm534, %v402
      %645 = vst.msk [vmem:[#allocation2 + $0x1b4] sm:$0xf] %vm534, %v403
      %646 = vst.msk [vmem:[#allocation2 + $0x1b8] sm:$0xf] %vm534, %v404
      %647 = vst.msk [vmem:[#allocation2 + $0x1bc] sm:$0xf] %vm534, %v405
      %648 = vst.msk [vmem:[#allocation2 + $0x1c0] sm:$0xf] %vm534, %v406
      %649 = vst.msk [vmem:[#allocation2 + $0x1c4] sm:$0xf] %vm534, %v407
      %650 = vst.msk [vmem:[#allocation2 + $0x1c8] sm:$0xf] %vm534, %v408
      %651 = vst.msk [vmem:[#allocation2 + $0x1cc] sm:$0xf] %vm534, %v409
      %652 = vst.msk [vmem:[#allocation2 + $0x1d0] sm:$0xf] %vm534, %v410
      %653 = vst.msk [vmem:[#allocation2 + $0x1d4] sm:$0xf] %vm534, %v411
      %654 = vst.msk [vmem:[#allocation2 + $0x1d8] sm:$0xf] %vm534, %v412
      %655 = vst.msk [vmem:[#allocation2 + $0x1dc] sm:$0x1] %vm549, %v413
      %656 = vst.msk [vmem:[#allocation2 + $0x1e0] sm:$0xf] %vm534, %v414
      %657 = vst.msk [vmem:[#allocation2 + $0x1e4] sm:$0xf] %vm534, %v415
      %658 = vst.msk [vmem:[#allocation2 + $0x1e8] sm:$0xf] %vm534, %v416
      %659 = vst.msk [vmem:[#allocation2 + $0x1ec] sm:$0xf] %vm534, %v417
      %660 = vst.msk [vmem:[#allocation2 + $0x1f0] sm:$0xf] %vm534, %v418
      %661 = vst.msk [vmem:[#allocation2 + $0x1f4] sm:$0xf] %vm534, %v419
      %662 = vst.msk [vmem:[#allocation2 + $0x1f8] sm:$0xf] %vm534, %v420
      %663 = vst.msk [vmem:[#allocation2 + $0x1fc] sm:$0xf] %vm534, %v421
      %664 = vst.msk [vmem:[#allocation2 + $0x200] sm:$0xf] %vm534, %v422
      %665 = vst.msk [vmem:[#allocation2 + $0x204] sm:$0xf] %vm534, %v423
      %666 = vst.msk [vmem:[#allocation2 + $0x208] sm:$0xf] %vm534, %v424
      %667 = vst.msk [vmem:[#allocation2 + $0x20c] sm:$0xf] %vm534, %v425
      %668 = vst.msk [vmem:[#allocation2 + $0x210] sm:$0xf] %vm534, %v426
      %669 = vst.msk [vmem:[#allocation2 + $0x214] sm:$0xf] %vm534, %v427
      %670 = vst.msk [vmem:[#allocation2 + $0x218] sm:$0x1] %vm549, %v428
      %671 = vst.msk [vmem:[#allocation2 + $0x21c] sm:$0xf] %vm534, %v429
      %672 = vst.msk [vmem:[#allocation2 + $0x220] sm:$0xf] %vm534, %v430
      %673 = vst.msk [vmem:[#allocation2 + $0x224] sm:$0xf] %vm534, %v431
      %674 = vst.msk [vmem:[#allocation2 + $0x228] sm:$0xf] %vm534, %v432
      %675 = vst.msk [vmem:[#allocation2 + $0x22c] sm:$0xf] %vm534, %v433
      %676 = vst.msk [vmem:[#allocation2 + $0x230] sm:$0xf] %vm534, %v434
      %677 = vst.msk [vmem:[#allocation2 + $0x234] sm:$0xf] %vm534, %v435
      %678 = vst.msk [vmem:[#allocation2 + $0x238] sm:$0xf] %vm534, %v436
      %679 = vst.msk [vmem:[#allocation2 + $0x23c] sm:$0xf] %vm534, %v437
      %680 = vst.msk [vmem:[#allocation2 + $0x240] sm:$0xf] %vm534, %v438
      %681 = vst.msk [vmem:[#allocation2 + $0x244] sm:$0xf] %vm534, %v439
      %682 = vst.msk [vmem:[#allocation2 + $0x248] sm:$0xf] %vm534, %v440
      %683 = vst.msk [vmem:[#allocation2 + $0x24c] sm:$0xf] %vm534, %v441
      %684 = vst.msk [vmem:[#allocation2 + $0x250] sm:$0xf] %vm534, %v442
      %685 = vst.msk [vmem:[#allocation2 + $0x254] sm:$0x1] %vm549, %v443
      %686 = vst.msk [vmem:[#allocation2 + $0x258] sm:$0xf] %vm534, %v444
      %687 = vst.msk [vmem:[#allocation2 + $0x25c] sm:$0xf] %vm534, %v445
      %688 = vst.msk [vmem:[#allocation2 + $0x260] sm:$0xf] %vm534, %v446
      %689 = vst.msk [vmem:[#allocation2 + $0x264] sm:$0xf] %vm534, %v447
      %690 = vst.msk [vmem:[#allocation2 + $0x268] sm:$0xf] %vm534, %v448
      %691 = vst.msk [vmem:[#allocation2 + $0x26c] sm:$0xf] %vm534, %v449
      %692 = vst.msk [vmem:[#allocation2 + $0x270] sm:$0xf] %vm534, %v450
      %693 = vst.msk [vmem:[#allocation2 + $0x274] sm:$0xf] %vm534, %v451
      %694 = vst.msk [vmem:[#allocation2 + $0x278] sm:$0xf] %vm534, %v452
      %695 = vst.msk [vmem:[#allocation2 + $0x27c] sm:$0xf] %vm534, %v453
      %696 = vst.msk [vmem:[#allocation2 + $0x280] sm:$0xf] %vm534, %v454
      %697 = vst.msk [vmem:[#allocation2 + $0x284] sm:$0xf] %vm534, %v455
      %698 = vst.msk [vmem:[#allocation2 + $0x288] sm:$0xf] %vm534, %v456
      %699 = vst.msk [vmem:[#allocation2 + $0x28c] sm:$0xf] %vm534, %v457
      %700 = vst.msk [vmem:[#allocation2 + $0x290] sm:$0x1] %vm549, %v458
      %701 = vst.msk [vmem:[#allocation2 + $0x294] sm:$0xf] %vm534, %v459
      %702 = vst.msk [vmem:[#allocation2 + $0x298] sm:$0xf] %vm534, %v460
      %703 = vst.msk [vmem:[#allocation2 + $0x29c] sm:$0xf] %vm534, %v461
      %704 = vst.msk [vmem:[#allocation2 + $0x2a0] sm:$0xf] %vm534, %v462
      %705 = vst.msk [vmem:[#allocation2 + $0x2a4] sm:$0xf] %vm534, %v463
      %706 = vst.msk [vmem:[#allocation2 + $0x2a8] sm:$0xf] %vm534, %v464
      %707 = vst.msk [vmem:[#allocation2 + $0x2ac] sm:$0xf] %vm534, %v465
      %708 = vst.msk [vmem:[#allocation2 + $0x2b0] sm:$0xf] %vm534, %v466
      %709 = vst.msk [vmem:[#allocation2 + $0x2b4] sm:$0xf] %vm534, %v467
      %710 = vst.msk [vmem:[#allocation2 + $0x2b8] sm:$0xf] %vm534, %v468
      %711 = vst.msk [vmem:[#allocation2 + $0x2bc] sm:$0xf] %vm534, %v469
      %712 = vst.msk [vmem:[#allocation2 + $0x2c0] sm:$0xf] %vm534, %v470
      %713 = vst.msk [vmem:[#allocation2 + $0x2c4] sm:$0xf] %vm534, %v471
      %714 = vst.msk [vmem:[#allocation2 + $0x2c8] sm:$0xf] %vm534, %v472
      %715 = vst.msk [vmem:[#allocation2 + $0x2cc] sm:$0x1] %vm549, %v473
      %716 = vst.msk [vmem:[#allocation2 + $0x2d0] sm:$0xf] %vm534, %v474
      %717 = vst.msk [vmem:[#allocation2 + $0x2d4] sm:$0xf] %vm534, %v475
      %718 = vst.msk [vmem:[#allocation2 + $0x2d8] sm:$0xf] %vm534, %v476
      %719 = vst.msk [vmem:[#allocation2 + $0x2dc] sm:$0xf] %vm534, %v477
      %720 = vst.msk [vmem:[#allocation2 + $0x2e0] sm:$0xf] %vm534, %v478
      %721 = vst.msk [vmem:[#allocation2 + $0x2e4] sm:$0xf] %vm534, %v479
      %722 = vst.msk [vmem:[#allocation2 + $0x2e8] sm:$0xf] %vm534, %v480
      %723 = vst.msk [vmem:[#allocation2 + $0x2ec] sm:$0xf] %vm534, %v481
      %724 = vst.msk [vmem:[#allocation2 + $0x2f0] sm:$0xf] %vm534, %v482
      %725 = vst.msk [vmem:[#allocation2 + $0x2f4] sm:$0xf] %vm534, %v483
      %726 = vst.msk [vmem:[#allocation2 + $0x2f8] sm:$0xf] %vm534, %v484
      %727 = vst.msk [vmem:[#allocation2 + $0x2fc] sm:$0xf] %vm534, %v485
      %728 = vst.msk [vmem:[#allocation2 + $0x300] sm:$0xf] %vm534, %v486
      %729 = vst.msk [vmem:[#allocation2 + $0x304] sm:$0xf] %vm534, %v487
      %730 = vst.msk [vmem:[#allocation2 + $0x308] sm:$0x1] %vm549, %v488
      %731 = vst.msk [vmem:[#allocation2 + $0x30c] sm:$0xf] %vm534, %v489
      %732 = vst.msk [vmem:[#allocation2 + $0x310] sm:$0xf] %vm534, %v490
      %733 = vst.msk [vmem:[#allocation2 + $0x314] sm:$0xf] %vm534, %v491
      %734 = vst.msk [vmem:[#allocation2 + $0x318] sm:$0xf] %vm534, %v492
      %735 = vst.msk [vmem:[#allocation2 + $0x31c] sm:$0xf] %vm534, %v493
      %736 = vst.msk [vmem:[#allocation2 + $0x320] sm:$0xf] %vm534, %v494
      %737 = vst.msk [vmem:[#allocation2 + $0x324] sm:$0xf] %vm534, %v495
      %738 = vst.msk [vmem:[#allocation2 + $0x328] sm:$0xf] %vm534, %v496
      %739 = vst.msk [vmem:[#allocation2 + $0x32c] sm:$0xf] %vm534, %v497
      %740 = vst.msk [vmem:[#allocation2 + $0x330] sm:$0xf] %vm534, %v498
      %741 = vst.msk [vmem:[#allocation2 + $0x334] sm:$0xf] %vm534, %v499
      %742 = vst.msk [vmem:[#allocation2 + $0x338] sm:$0xf] %vm534, %v500
      %743 = vst.msk [vmem:[#allocation2 + $0x33c] sm:$0xf] %vm534, %v501
      %744 = vst.msk [vmem:[#allocation2 + $0x340] sm:$0xf] %vm534, %v502
      %745 = vst.msk [vmem:[#allocation2 + $0x344] sm:$0x1] %vm549, %v503
      %746 = vst.msk [vmem:[#allocation2 + $0x348] sm:$0xf] %vm534, %v504
      %747 = vst.msk [vmem:[#allocation2 + $0x34c] sm:$0xf] %vm534, %v505
      %748 = vst.msk [vmem:[#allocation2 + $0x350] sm:$0xf] %vm534, %v506
      %749 = vst.msk [vmem:[#allocation2 + $0x354] sm:$0xf] %vm534, %v507
      %750 = vst.msk [vmem:[#allocation2 + $0x358] sm:$0xf] %vm534, %v508
      %751 = vst.msk [vmem:[#allocation2 + $0x35c] sm:$0xf] %vm534, %v509
      %752 = vst.msk [vmem:[#allocation2 + $0x360] sm:$0xf] %vm534, %v510
      %753 = vst.msk [vmem:[#allocation2 + $0x364] sm:$0xf] %vm534, %v511
      %754 = vst.msk [vmem:[#allocation2 + $0x368] sm:$0xf] %vm534, %v512
      %755 = vst.msk [vmem:[#allocation2 + $0x36c] sm:$0xf] %vm534, %v513
      %756 = vst.msk [vmem:[#allocation2 + $0x370] sm:$0xf] %vm534, %v514
      %757 = vst.msk [vmem:[#allocation2 + $0x374] sm:$0xf] %vm534, %v515
      %758 = vst.msk [vmem:[#allocation2 + $0x378] sm:$0xf] %vm534, %v516
      %759 = vst.msk [vmem:[#allocation2 + $0x37c] sm:$0xf] %vm534, %v517
      %760 = vst.msk [vmem:[#allocation2 + $0x380] sm:$0x1] %vm549, %v518
      %761 = vst.msk [vmem:[#allocation2 + $0x384] sm:$0xf] %vm534, %v519
      %762 = vst.msk [vmem:[#allocation2 + $0x388] sm:$0xf] %vm534, %v520
      %763 = vst.msk [vmem:[#allocation2 + $0x38c] sm:$0xf] %vm534, %v521
      %764 = vst.msk [vmem:[#allocation2 + $0x390] sm:$0xf] %vm534, %v522
      %765 = vst.msk [vmem:[#allocation2 + $0x394] sm:$0xf] %vm534, %v523
      %766 = vst.msk [vmem:[#allocation2 + $0x398] sm:$0xf] %vm534, %v524
      %767 = vst.msk [vmem:[#allocation2 + $0x39c] sm:$0xf] %vm534, %v525
      %768 = vst.msk [vmem:[#allocation2 + $0x3a0] sm:$0xf] %vm534, %v526
      %769 = vst.msk [vmem:[#allocation2 + $0x3a4] sm:$0xf] %vm534, %v527
      %770 = vst.msk [vmem:[#allocation2 + $0x3a8] sm:$0xf] %vm534, %v528
      %771 = vst.msk [vmem:[#allocation2 + $0x3ac] sm:$0xf] %vm534, %v529
      %772 = vst.msk [vmem:[#allocation2 + $0x3b0] sm:$0xf] %vm534, %v530
      %773 = vst.msk [vmem:[#allocation2 + $0x3b4] sm:$0xf] %vm534, %v531
      %774 = vst.msk [vmem:[#allocation2 + $0x3b8] sm:$0xf] %vm534, %v532
      %775 = vst.msk [vmem:[#allocation2 + $0x3bc] sm:$0x1] %vm549, %v533
      %v776 = vld [vmem:[%s272] sm:$0xf]
      %v777 = vld [vmem:[%s272 + $0x4] sm:$0xf]
      %v778 = vld [vmem:[%s272 + $0x8] sm:$0xf]
      %v779 = vld [vmem:[%s272 + $0xc] sm:$0xf]
      %v780 = vld [vmem:[%s272 + $0x10] sm:$0xf]
      %v781 = vld [vmem:[%s272 + $0x14] sm:$0xf]
      %v782 = vld [vmem:[%s272 + $0x18] sm:$0xf]
      %v783 = vld [vmem:[%s272 + $0x1c] sm:$0xf]
      %v784 = vld [vmem:[%s272 + $0x20] sm:$0xf]
      %v785 = vld [vmem:[%s272 + $0x24] sm:$0xf]
      %v786 = vld [vmem:[%s272 + $0x28] sm:$0xf]
      %v787 = vld [vmem:[%s272 + $0x2c] sm:$0xf]
      %v788 = vld [vmem:[%s272 + $0x30] sm:$0xf]
      %v789 = vld [vmem:[%s272 + $0x34] sm:$0xf]
      %v790 = vld [vmem:[%s272 + $0x38] sm:$0x1]
      %v791 = vld [vmem:[%s272 + $0x3c] sm:$0xf]
      %v792 = vld [vmem:[%s272 + $0x40] sm:$0xf]
      %v793 = vld [vmem:[%s272 + $0x44] sm:$0xf]
      %v794 = vld [vmem:[%s272 + $0x48] sm:$0xf]
      %v795 = vld [vmem:[%s272 + $0x4c] sm:$0xf]
      %v796 = vld [vmem:[%s272 + $0x50] sm:$0xf]
      %v797 = vld [vmem:[%s272 + $0x54] sm:$0xf]
      %v798 = vld [vmem:[%s272 + $0x58] sm:$0xf]
      %v799 = vld [vmem:[%s272 + $0x5c] sm:$0xf]
      %v800 = vld [vmem:[%s272 + $0x60] sm:$0xf]
      %v801 = vld [vmem:[%s272 + $0x64] sm:$0xf]
      %v802 = vld [vmem:[%s272 + $0x68] sm:$0xf]
      %v803 = vld [vmem:[%s272 + $0x6c] sm:$0xf]
      %v804 = vld [vmem:[%s272 + $0x70] sm:$0xf]
      %v805 = vld [vmem:[%s272 + $0x74] sm:$0x1]
      %v806 = vld [vmem:[%s272 + $0x78] sm:$0xf]
      %v807 = vld [vmem:[%s272 + $0x7c] sm:$0xf]
      %v808 = vld [vmem:[%s272 + $0x80] sm:$0xf]
      %v809 = vld [vmem:[%s272 + $0x84] sm:$0xf]
      %v810 = vld [vmem:[%s272 + $0x88] sm:$0xf]
      %v811 = vld [vmem:[%s272 + $0x8c] sm:$0xf]
      %v812 = vld [vmem:[%s272 + $0x90] sm:$0xf]
      %v813 = vld [vmem:[%s272 + $0x94] sm:$0xf]
      %v814 = vld [vmem:[%s272 + $0x98] sm:$0xf]
      %v815 = vld [vmem:[%s272 + $0x9c] sm:$0xf]
      %v816 = vld [vmem:[%s272 + $0xa0] sm:$0xf]
      %v817 = vld [vmem:[%s272 + $0xa4] sm:$0xf]
      %v818 = vld [vmem:[%s272 + $0xa8] sm:$0xf]
      %v819 = vld [vmem:[%s272 + $0xac] sm:$0xf]
      %v820 = vld [vmem:[%s272 + $0xb0] sm:$0x1]
      %v821 = vld [vmem:[%s272 + $0xb4] sm:$0xf]
      %v822 = vld [vmem:[%s272 + $0xb8] sm:$0xf]
      %v823 = vld [vmem:[%s272 + $0xbc] sm:$0xf]
      %v824 = vld [vmem:[%s272 + $0xc0] sm:$0xf]
      %v825 = vld [vmem:[%s272 + $0xc4] sm:$0xf]
      %v826 = vld [vmem:[%s272 + $0xc8] sm:$0xf]
      %v827 = vld [vmem:[%s272 + $0xcc] sm:$0xf]
      %v828 = vld [vmem:[%s272 + $0xd0] sm:$0xf]
      %v829 = vld [vmem:[%s272 + $0xd4] sm:$0xf]
      %v830 = vld [vmem:[%s272 + $0xd8] sm:$0xf]
      %v831 = vld [vmem:[%s272 + $0xdc] sm:$0xf]
      %v832 = vld [vmem:[%s272 + $0xe0] sm:$0xf]
      %v833 = vld [vmem:[%s272 + $0xe4] sm:$0xf]
      %v834 = vld [vmem:[%s272 + $0xe8] sm:$0xf]
      %v835 = vld [vmem:[%s272 + $0xec] sm:$0x1]
      %v836 = vld [vmem:[%s272 + $0xf0] sm:$0xf]
      %v837 = vld [vmem:[%s272 + $0xf4] sm:$0xf]
      %v838 = vld [vmem:[%s272 + $0xf8] sm:$0xf]
      %v839 = vld [vmem:[%s272 + $0xfc] sm:$0xf]
      %v840 = vld [vmem:[%s272 + $0x100] sm:$0xf]
      %v841 = vld [vmem:[%s272 + $0x104] sm:$0xf]
      %v842 = vld [vmem:[%s272 + $0x108] sm:$0xf]
      %v843 = vld [vmem:[%s272 + $0x10c] sm:$0xf]
      %v844 = vld [vmem:[%s272 + $0x110] sm:$0xf]
      %v845 = vld [vmem:[%s272 + $0x114] sm:$0xf]
      %v846 = vld [vmem:[%s272 + $0x118] sm:$0xf]
      %v847 = vld [vmem:[%s272 + $0x11c] sm:$0xf]
      %v848 = vld [vmem:[%s272 + $0x120] sm:$0xf]
      %v849 = vld [vmem:[%s272 + $0x124] sm:$0xf]
      %v850 = vld [vmem:[%s272 + $0x128] sm:$0x1]
      %v851 = vld [vmem:[%s272 + $0x12c] sm:$0xf]
      %v852 = vld [vmem:[%s272 + $0x130] sm:$0xf]
      %v853 = vld [vmem:[%s272 + $0x134] sm:$0xf]
      %v854 = vld [vmem:[%s272 + $0x138] sm:$0xf]
      %v855 = vld [vmem:[%s272 + $0x13c] sm:$0xf]
      %v856 = vld [vmem:[%s272 + $0x140] sm:$0xf]
      %v857 = vld [vmem:[%s272 + $0x144] sm:$0xf]
      %v858 = vld [vmem:[%s272 + $0x148] sm:$0xf]
      %v859 = vld [vmem:[%s272 + $0x14c] sm:$0xf]
      %v860 = vld [vmem:[%s272 + $0x150] sm:$0xf]
      %v861 = vld [vmem:[%s272 + $0x154] sm:$0xf]
      %v862 = vld [vmem:[%s272 + $0x158] sm:$0xf]
      %v863 = vld [vmem:[%s272 + $0x15c] sm:$0xf]
      %v864 = vld [vmem:[%s272 + $0x160] sm:$0xf]
      %v865 = vld [vmem:[%s272 + $0x164] sm:$0x1]
      %v866 = vld [vmem:[%s272 + $0x168] sm:$0xf]
      %v867 = vld [vmem:[%s272 + $0x16c] sm:$0xf]
      %v868 = vld [vmem:[%s272 + $0x170] sm:$0xf]
      %v869 = vld [vmem:[%s272 + $0x174] sm:$0xf]
      %v870 = vld [vmem:[%s272 + $0x178] sm:$0xf]
      %v871 = vld [vmem:[%s272 + $0x17c] sm:$0xf]
      %v872 = vld [vmem:[%s272 + $0x180] sm:$0xf]
      %v873 = vld [vmem:[%s272 + $0x184] sm:$0xf]
      %v874 = vld [vmem:[%s272 + $0x188] sm:$0xf]
      %v875 = vld [vmem:[%s272 + $0x18c] sm:$0xf]
      %v876 = vld [vmem:[%s272 + $0x190] sm:$0xf]
      %v877 = vld [vmem:[%s272 + $0x194] sm:$0xf]
      %v878 = vld [vmem:[%s272 + $0x198] sm:$0xf]
      %v879 = vld [vmem:[%s272 + $0x19c] sm:$0xf]
      %v880 = vld [vmem:[%s272 + $0x1a0] sm:$0x1]
      %v881 = vld [vmem:[%s272 + $0x1a4] sm:$0xf]
      %v882 = vld [vmem:[%s272 + $0x1a8] sm:$0xf]
      %v883 = vld [vmem:[%s272 + $0x1ac] sm:$0xf]
      %v884 = vld [vmem:[%s272 + $0x1b0] sm:$0xf]
      %v885 = vld [vmem:[%s272 + $0x1b4] sm:$0xf]
      %v886 = vld [vmem:[%s272 + $0x1b8] sm:$0xf]
      %v887 = vld [vmem:[%s272 + $0x1bc] sm:$0xf]
      %v888 = vld [vmem:[%s272 + $0x1c0] sm:$0xf]
      %v889 = vld [vmem:[%s272 + $0x1c4] sm:$0xf]
      %v890 = vld [vmem:[%s272 + $0x1c8] sm:$0xf]
      %v891 = vld [vmem:[%s272 + $0x1cc] sm:$0xf]
      %v892 = vld [vmem:[%s272 + $0x1d0] sm:$0xf]
      %v893 = vld [vmem:[%s272 + $0x1d4] sm:$0xf]
      %v894 = vld [vmem:[%s272 + $0x1d8] sm:$0xf]
      %v895 = vld [vmem:[%s272 + $0x1dc] sm:$0x1]
      %v896 = vld [vmem:[%s272 + $0x1e0] sm:$0xf]
      %v897 = vld [vmem:[%s272 + $0x1e4] sm:$0xf]
      %v898 = vld [vmem:[%s272 + $0x1e8] sm:$0xf]
      %v899 = vld [vmem:[%s272 + $0x1ec] sm:$0xf]
      %v900 = vld [vmem:[%s272 + $0x1f0] sm:$0xf]
      %v901 = vld [vmem:[%s272 + $0x1f4] sm:$0xf]
      %v902 = vld [vmem:[%s272 + $0x1f8] sm:$0xf]
      %v903 = vld [vmem:[%s272 + $0x1fc] sm:$0xf]
      %v904 = vld [vmem:[%s272 + $0x200] sm:$0xf]
      %v905 = vld [vmem:[%s272 + $0x204] sm:$0xf]
      %v906 = vld [vmem:[%s272 + $0x208] sm:$0xf]
      %v907 = vld [vmem:[%s272 + $0x20c] sm:$0xf]
      %v908 = vld [vmem:[%s272 + $0x210] sm:$0xf]
      %v909 = vld [vmem:[%s272 + $0x214] sm:$0xf]
      %v910 = vld [vmem:[%s272 + $0x218] sm:$0x1]
      %v911 = vld [vmem:[%s272 + $0x21c] sm:$0xf]
      %v912 = vld [vmem:[%s272 + $0x220] sm:$0xf]
      %v913 = vld [vmem:[%s272 + $0x224] sm:$0xf]
      %v914 = vld [vmem:[%s272 + $0x228] sm:$0xf]
      %v915 = vld [vmem:[%s272 + $0x22c] sm:$0xf]
      %v916 = vld [vmem:[%s272 + $0x230] sm:$0xf]
      %v917 = vld [vmem:[%s272 + $0x234] sm:$0xf]
      %v918 = vld [vmem:[%s272 + $0x238] sm:$0xf]
      %v919 = vld [vmem:[%s272 + $0x23c] sm:$0xf]
      %v920 = vld [vmem:[%s272 + $0x240] sm:$0xf]
      %v921 = vld [vmem:[%s272 + $0x244] sm:$0xf]
      %v922 = vld [vmem:[%s272 + $0x248] sm:$0xf]
      %v923 = vld [vmem:[%s272 + $0x24c] sm:$0xf]
      %v924 = vld [vmem:[%s272 + $0x250] sm:$0xf]
      %v925 = vld [vmem:[%s272 + $0x254] sm:$0x1]
      %v926 = vld [vmem:[%s272 + $0x258] sm:$0xf]
      %v927 = vld [vmem:[%s272 + $0x25c] sm:$0xf]
      %v928 = vld [vmem:[%s272 + $0x260] sm:$0xf]
      %v929 = vld [vmem:[%s272 + $0x264] sm:$0xf]
      %v930 = vld [vmem:[%s272 + $0x268] sm:$0xf]
      %v931 = vld [vmem:[%s272 + $0x26c] sm:$0xf]
      %v932 = vld [vmem:[%s272 + $0x270] sm:$0xf]
      %v933 = vld [vmem:[%s272 + $0x274] sm:$0xf]
      %v934 = vld [vmem:[%s272 + $0x278] sm:$0xf]
      %v935 = vld [vmem:[%s272 + $0x27c] sm:$0xf]
      %v936 = vld [vmem:[%s272 + $0x280] sm:$0xf]
      %v937 = vld [vmem:[%s272 + $0x284] sm:$0xf]
      %v938 = vld [vmem:[%s272 + $0x288] sm:$0xf]
      %v939 = vld [vmem:[%s272 + $0x28c] sm:$0xf]
      %v940 = vld [vmem:[%s272 + $0x290] sm:$0x1]
      %v941 = vld [vmem:[%s272 + $0x294] sm:$0xf]
      %v942 = vld [vmem:[%s272 + $0x298] sm:$0xf]
      %v943 = vld [vmem:[%s272 + $0x29c] sm:$0xf]
      %v944 = vld [vmem:[%s272 + $0x2a0] sm:$0xf]
      %v945 = vld [vmem:[%s272 + $0x2a4] sm:$0xf]
      %v946 = vld [vmem:[%s272 + $0x2a8] sm:$0xf]
      %v947 = vld [vmem:[%s272 + $0x2ac] sm:$0xf]
      %v948 = vld [vmem:[%s272 + $0x2b0] sm:$0xf]
      %v949 = vld [vmem:[%s272 + $0x2b4] sm:$0xf]
      %v950 = vld [vmem:[%s272 + $0x2b8] sm:$0xf]
      %v951 = vld [vmem:[%s272 + $0x2bc] sm:$0xf]
      %v952 = vld [vmem:[%s272 + $0x2c0] sm:$0xf]
      %v953 = vld [vmem:[%s272 + $0x2c4] sm:$0xf]
      %v954 = vld [vmem:[%s272 + $0x2c8] sm:$0xf]
      %v955 = vld [vmem:[%s272 + $0x2cc] sm:$0x1]
      %v956 = vld [vmem:[%s272 + $0x2d0] sm:$0xf]
      %v957 = vld [vmem:[%s272 + $0x2d4] sm:$0xf]
      %v958 = vld [vmem:[%s272 + $0x2d8] sm:$0xf]
      %v959 = vld [vmem:[%s272 + $0x2dc] sm:$0xf]
      %v960 = vld [vmem:[%s272 + $0x2e0] sm:$0xf]
      %v961 = vld [vmem:[%s272 + $0x2e4] sm:$0xf]
      %v962 = vld [vmem:[%s272 + $0x2e8] sm:$0xf]
      %v963 = vld [vmem:[%s272 + $0x2ec] sm:$0xf]
      %v964 = vld [vmem:[%s272 + $0x2f0] sm:$0xf]
      %v965 = vld [vmem:[%s272 + $0x2f4] sm:$0xf]
      %v966 = vld [vmem:[%s272 + $0x2f8] sm:$0xf]
      %v967 = vld [vmem:[%s272 + $0x2fc] sm:$0xf]
      %v968 = vld [vmem:[%s272 + $0x300] sm:$0xf]
      %v969 = vld [vmem:[%s272 + $0x304] sm:$0xf]
      %v970 = vld [vmem:[%s272 + $0x308] sm:$0x1]
      %v971 = vld [vmem:[%s272 + $0x30c] sm:$0xf]
      %v972 = vld [vmem:[%s272 + $0x310] sm:$0xf]
      %v973 = vld [vmem:[%s272 + $0x314] sm:$0xf]
      %v974 = vld [vmem:[%s272 + $0x318] sm:$0xf]
      %v975 = vld [vmem:[%s272 + $0x31c] sm:$0xf]
      %v976 = vld [vmem:[%s272 + $0x320] sm:$0xf]
      %v977 = vld [vmem:[%s272 + $0x324] sm:$0xf]
      %v978 = vld [vmem:[%s272 + $0x328] sm:$0xf]
      %v979 = vld [vmem:[%s272 + $0x32c] sm:$0xf]
      %v980 = vld [vmem:[%s272 + $0x330] sm:$0xf]
      %v981 = vld [vmem:[%s272 + $0x334] sm:$0xf]
      %v982 = vld [vmem:[%s272 + $0x338] sm:$0xf]
      %v983 = vld [vmem:[%s272 + $0x33c] sm:$0xf]
      %v984 = vld [vmem:[%s272 + $0x340] sm:$0xf]
      %v985 = vld [vmem:[%s272 + $0x344] sm:$0x1]
      %v986 = vld [vmem:[%s272 + $0x348] sm:$0xf]
      %v987 = vld [vmem:[%s272 + $0x34c] sm:$0xf]
      %v988 = vld [vmem:[%s272 + $0x350] sm:$0xf]
      %v989 = vld [vmem:[%s272 + $0x354] sm:$0xf]
      %v990 = vld [vmem:[%s272 + $0x358] sm:$0xf]
      %v991 = vld [vmem:[%s272 + $0x35c] sm:$0xf]
      %v992 = vld [vmem:[%s272 + $0x360] sm:$0xf]
      %v993 = vld [vmem:[%s272 + $0x364] sm:$0xf]
      %v994 = vld [vmem:[%s272 + $0x368] sm:$0xf]
      %v995 = vld [vmem:[%s272 + $0x36c] sm:$0xf]
      %v996 = vld [vmem:[%s272 + $0x370] sm:$0xf]
      %v997 = vld [vmem:[%s272 + $0x374] sm:$0xf]
      %v998 = vld [vmem:[%s272 + $0x378] sm:$0xf]
      %v999 = vld [vmem:[%s272 + $0x37c] sm:$0xf]
      %v1000 = vld [vmem:[%s272 + $0x380] sm:$0x1]
      %v1001 = vld [vmem:[%s272 + $0x384] sm:$0xf]
      %v1002 = vld [vmem:[%s272 + $0x388] sm:$0xf]
      %v1003 = vld [vmem:[%s272 + $0x38c] sm:$0xf]
      %v1004 = vld [vmem:[%s272 + $0x390] sm:$0xf]
      %v1005 = vld [vmem:[%s272 + $0x394] sm:$0xf]
      %v1006 = vld [vmem:[%s272 + $0x398] sm:$0xf]
      %v1007 = vld [vmem:[%s272 + $0x39c] sm:$0xf]
      %v1008 = vld [vmem:[%s272 + $0x3a0] sm:$0xf]
      %v1009 = vld [vmem:[%s272 + $0x3a4] sm:$0xf]
      %v1010 = vld [vmem:[%s272 + $0x3a8] sm:$0xf]
      %v1011 = vld [vmem:[%s272 + $0x3ac] sm:$0xf]
      %v1012 = vld [vmem:[%s272 + $0x3b0] sm:$0xf]
      %v1013 = vld [vmem:[%s272 + $0x3b4] sm:$0xf]
      %v1014 = vld [vmem:[%s272 + $0x3b8] sm:$0xf]
      %v1015 = vld [vmem:[%s272 + $0x3bc] sm:$0x1]
      %s1016 = scalar_lea.vmem [#allocation2], 960
      %1017 = vst.msk [vmem:[%s1016] sm:$0xf] %vm534, %v776
      %1018 = vst.msk [vmem:[%s1016 + $0x4] sm:$0xf] %vm534, %v777
      %1019 = vst.msk [vmem:[%s1016 + $0x8] sm:$0xf] %vm534, %v778
      %1020 = vst.msk [vmem:[%s1016 + $0xc] sm:$0xf] %vm534, %v779
      %1021 = vst.msk [vmem:[%s1016 + $0x10] sm:$0xf] %vm534, %v780
      %1022 = vst.msk [vmem:[%s1016 + $0x14] sm:$0xf] %vm534, %v781
      %1023 = vst.msk [vmem:[%s1016 + $0x18] sm:$0xf] %vm534, %v782
      %1024 = vst.msk [vmem:[%s1016 + $0x1c] sm:$0xf] %vm534, %v783
      %1025 = vst.msk [vmem:[%s1016 + $0x20] sm:$0xf] %vm534, %v784
      %1026 = vst.msk [vmem:[%s1016 + $0x24] sm:$0xf] %vm534, %v785
      %1027 = vst.msk [vmem:[%s1016 + $0x28] sm:$0xf] %vm534, %v786
      %1028 = vst.msk [vmem:[%s1016 + $0x2c] sm:$0xf] %vm534, %v787
      %1029 = vst.msk [vmem:[%s1016 + $0x30] sm:$0xf] %vm534, %v788
      %1030 = vst.msk [vmem:[%s1016 + $0x34] sm:$0xf] %vm534, %v789
      %1031 = vst.msk [vmem:[%s1016 + $0x38] sm:$0x1] %vm549, %v790
      %1032 = vst.msk [vmem:[%s1016 + $0x3c] sm:$0xf] %vm534, %v791
      %1033 = vst.msk [vmem:[%s1016 + $0x40] sm:$0xf] %vm534, %v792
      %1034 = vst.msk [vmem:[%s1016 + $0x44] sm:$0xf] %vm534, %v793
      %1035 = vst.msk [vmem:[%s1016 + $0x48] sm:$0xf] %vm534, %v794
      %1036 = vst.msk [vmem:[%s1016 + $0x4c] sm:$0xf] %vm534, %v795
      %1037 = vst.msk [vmem:[%s1016 + $0x50] sm:$0xf] %vm534, %v796
      %1038 = vst.msk [vmem:[%s1016 + $0x54] sm:$0xf] %vm534, %v797
      %1039 = vst.msk [vmem:[%s1016 + $0x58] sm:$0xf] %vm534, %v798
      %1040 = vst.msk [vmem:[%s1016 + $0x5c] sm:$0xf] %vm534, %v799
      %1041 = vst.msk [vmem:[%s1016 + $0x60] sm:$0xf] %vm534, %v800
      %1042 = vst.msk [vmem:[%s1016 + $0x64] sm:$0xf] %vm534, %v801
      %1043 = vst.msk [vmem:[%s1016 + $0x68] sm:$0xf] %vm534, %v802
      %1044 = vst.msk [vmem:[%s1016 + $0x6c] sm:$0xf] %vm534, %v803
      %1045 = vst.msk [vmem:[%s1016 + $0x70] sm:$0xf] %vm534, %v804
      %1046 = vst.msk [vmem:[%s1016 + $0x74] sm:$0x1] %vm549, %v805
      %1047 = vst.msk [vmem:[%s1016 + $0x78] sm:$0xf] %vm534, %v806
      %1048 = vst.msk [vmem:[%s1016 + $0x7c] sm:$0xf] %vm534, %v807
      %1049 = vst.msk [vmem:[%s1016 + $0x80] sm:$0xf] %vm534, %v808
      %1050 = vst.msk [vmem:[%s1016 + $0x84] sm:$0xf] %vm534, %v809
      %1051 = vst.msk [vmem:[%s1016 + $0x88] sm:$0xf] %vm534, %v810
      %1052 = vst.msk [vmem:[%s1016 + $0x8c] sm:$0xf] %vm534, %v811
      %1053 = vst.msk [vmem:[%s1016 + $0x90] sm:$0xf] %vm534, %v812
      %1054 = vst.msk [vmem:[%s1016 + $0x94] sm:$0xf] %vm534, %v813
      %1055 = vst.msk [vmem:[%s1016 + $0x98] sm:$0xf] %vm534, %v814
      %1056 = vst.msk [vmem:[%s1016 + $0x9c] sm:$0xf] %vm534, %v815
      %1057 = vst.msk [vmem:[%s1016 + $0xa0] sm:$0xf] %vm534, %v816
      %1058 = vst.msk [vmem:[%s1016 + $0xa4] sm:$0xf] %vm534, %v817
      %1059 = vst.msk [vmem:[%s1016 + $0xa8] sm:$0xf] %vm534, %v818
      %1060 = vst.msk [vmem:[%s1016 + $0xac] sm:$0xf] %vm534, %v819
      %1061 = vst.msk [vmem:[%s1016 + $0xb0] sm:$0x1] %vm549, %v820
      %1062 = vst.msk [vmem:[%s1016 + $0xb4] sm:$0xf] %vm534, %v821
      %1063 = vst.msk [vmem:[%s1016 + $0xb8] sm:$0xf] %vm534, %v822
      %1064 = vst.msk [vmem:[%s1016 + $0xbc] sm:$0xf] %vm534, %v823
      %1065 = vst.msk [vmem:[%s1016 + $0xc0] sm:$0xf] %vm534, %v824
      %1066 = vst.msk [vmem:[%s1016 + $0xc4] sm:$0xf] %vm534, %v825
      %1067 = vst.msk [vmem:[%s1016 + $0xc8] sm:$0xf] %vm534, %v826
      %1068 = vst.msk [vmem:[%s1016 + $0xcc] sm:$0xf] %vm534, %v827
      %1069 = vst.msk [vmem:[%s1016 + $0xd0] sm:$0xf] %vm534, %v828
      %1070 = vst.msk [vmem:[%s1016 + $0xd4] sm:$0xf] %vm534, %v829
      %1071 = vst.msk [vmem:[%s1016 + $0xd8] sm:$0xf] %vm534, %v830
      %1072 = vst.msk [vmem:[%s1016 + $0xdc] sm:$0xf] %vm534, %v831
      %1073 = vst.msk [vmem:[%s1016 + $0xe0] sm:$0xf] %vm534, %v832
      %1074 = vst.msk [vmem:[%s1016 + $0xe4] sm:$0xf] %vm534, %v833
      %1075 = vst.msk [vmem:[%s1016 + $0xe8] sm:$0xf] %vm534, %v834
      %1076 = vst.msk [vmem:[%s1016 + $0xec] sm:$0x1] %vm549, %v835
      %1077 = vst.msk [vmem:[%s1016 + $0xf0] sm:$0xf] %vm534, %v836
      %1078 = vst.msk [vmem:[%s1016 + $0xf4] sm:$0xf] %vm534, %v837
      %1079 = vst.msk [vmem:[%s1016 + $0xf8] sm:$0xf] %vm534, %v838
      %1080 = vst.msk [vmem:[%s1016 + $0xfc] sm:$0xf] %vm534, %v839
      %1081 = vst.msk [vmem:[%s1016 + $0x100] sm:$0xf] %vm534, %v840
      %1082 = vst.msk [vmem:[%s1016 + $0x104] sm:$0xf] %vm534, %v841
      %1083 = vst.msk [vmem:[%s1016 + $0x108] sm:$0xf] %vm534, %v842
      %1084 = vst.msk [vmem:[%s1016 + $0x10c] sm:$0xf] %vm534, %v843
      %1085 = vst.msk [vmem:[%s1016 + $0x110] sm:$0xf] %vm534, %v844
      %1086 = vst.msk [vmem:[%s1016 + $0x114] sm:$0xf] %vm534, %v845
      %1087 = vst.msk [vmem:[%s1016 + $0x118] sm:$0xf] %vm534, %v846
      %1088 = vst.msk [vmem:[%s1016 + $0x11c] sm:$0xf] %vm534, %v847
      %1089 = vst.msk [vmem:[%s1016 + $0x120] sm:$0xf] %vm534, %v848
      %1090 = vst.msk [vmem:[%s1016 + $0x124] sm:$0xf] %vm534, %v849
      %1091 = vst.msk [vmem:[%s1016 + $0x128] sm:$0x1] %vm549, %v850
      %1092 = vst.msk [vmem:[%s1016 + $0x12c] sm:$0xf] %vm534, %v851
      %1093 = vst.msk [vmem:[%s1016 + $0x130] sm:$0xf] %vm534, %v852
      %1094 = vst.msk [vmem:[%s1016 + $0x134] sm:$0xf] %vm534, %v853
      %1095 = vst.msk [vmem:[%s1016 + $0x138] sm:$0xf] %vm534, %v854
      %1096 = vst.msk [vmem:[%s1016 + $0x13c] sm:$0xf] %vm534, %v855
      %1097 = vst.msk [vmem:[%s1016 + $0x140] sm:$0xf] %vm534, %v856
      %1098 = vst.msk [vmem:[%s1016 + $0x144] sm:$0xf] %vm534, %v857
      %1099 = vst.msk [vmem:[%s1016 + $0x148] sm:$0xf] %vm534, %v858
      %1100 = vst.msk [vmem:[%s1016 + $0x14c] sm:$0xf] %vm534, %v859
      %1101 = vst.msk [vmem:[%s1016 + $0x150] sm:$0xf] %vm534, %v860
      %1102 = vst.msk [vmem:[%s1016 + $0x154] sm:$0xf] %vm534, %v861
      %1103 = vst.msk [vmem:[%s1016 + $0x158] sm:$0xf] %vm534, %v862
      %1104 = vst.msk [vmem:[%s1016 + $0x15c] sm:$0xf] %vm534, %v863
      %1105 = vst.msk [vmem:[%s1016 + $0x160] sm:$0xf] %vm534, %v864
      %1106 = vst.msk [vmem:[%s1016 + $0x164] sm:$0x1] %vm549, %v865
      %1107 = vst.msk [vmem:[%s1016 + $0x168] sm:$0xf] %vm534, %v866
      %1108 = vst.msk [vmem:[%s1016 + $0x16c] sm:$0xf] %vm534, %v867
      %1109 = vst.msk [vmem:[%s1016 + $0x170] sm:$0xf] %vm534, %v868
      %1110 = vst.msk [vmem:[%s1016 + $0x174] sm:$0xf] %vm534, %v869
      %1111 = vst.msk [vmem:[%s1016 + $0x178] sm:$0xf] %vm534, %v870
      %1112 = vst.msk [vmem:[%s1016 + $0x17c] sm:$0xf] %vm534, %v871
      %1113 = vst.msk [vmem:[%s1016 + $0x180] sm:$0xf] %vm534, %v872
      %1114 = vst.msk [vmem:[%s1016 + $0x184] sm:$0xf] %vm534, %v873
      %1115 = vst.msk [vmem:[%s1016 + $0x188] sm:$0xf] %vm534, %v874
      %1116 = vst.msk [vmem:[%s1016 + $0x18c] sm:$0xf] %vm534, %v875
      %1117 = vst.msk [vmem:[%s1016 + $0x190] sm:$0xf] %vm534, %v876
      %1118 = vst.msk [vmem:[%s1016 + $0x194] sm:$0xf] %vm534, %v877
      %1119 = vst.msk [vmem:[%s1016 + $0x198] sm:$0xf] %vm534, %v878
      %1120 = vst.msk [vmem:[%s1016 + $0x19c] sm:$0xf] %vm534, %v879
      %1121 = vst.msk [vmem:[%s1016 + $0x1a0] sm:$0x1] %vm549, %v880
      %1122 = vst.msk [vmem:[%s1016 + $0x1a4] sm:$0xf] %vm534, %v881
      %1123 = vst.msk [vmem:[%s1016 + $0x1a8] sm:$0xf] %vm534, %v882
      %1124 = vst.msk [vmem:[%s1016 + $0x1ac] sm:$0xf] %vm534, %v883
      %1125 = vst.msk [vmem:[%s1016 + $0x1b0] sm:$0xf] %vm534, %v884
      %1126 = vst.msk [vmem:[%s1016 + $0x1b4] sm:$0xf] %vm534, %v885
      %1127 = vst.msk [vmem:[%s1016 + $0x1b8] sm:$0xf] %vm534, %v886
      %1128 = vst.msk [vmem:[%s1016 + $0x1bc] sm:$0xf] %vm534, %v887
      %1129 = vst.msk [vmem:[%s1016 + $0x1c0] sm:$0xf] %vm534, %v888
      %1130 = vst.msk [vmem:[%s1016 + $0x1c4] sm:$0xf] %vm534, %v889
      %1131 = vst.msk [vmem:[%s1016 + $0x1c8] sm:$0xf] %vm534, %v890
      %1132 = vst.msk [vmem:[%s1016 + $0x1cc] sm:$0xf] %vm534, %v891
      %1133 = vst.msk [vmem:[%s1016 + $0x1d0] sm:$0xf] %vm534, %v892
      %1134 = vst.msk [vmem:[%s1016 + $0x1d4] sm:$0xf] %vm534, %v893
      %1135 = vst.msk [vmem:[%s1016 + $0x1d8] sm:$0xf] %vm534, %v894
      %1136 = vst.msk [vmem:[%s1016 + $0x1dc] sm:$0x1] %vm549, %v895
      %1137 = vst.msk [vmem:[%s1016 + $0x1e0] sm:$0xf] %vm534, %v896
      %1138 = vst.msk [vmem:[%s1016 + $0x1e4] sm:$0xf] %vm534, %v897
      %1139 = vst.msk [vmem:[%s1016 + $0x1e8] sm:$0xf] %vm534, %v898
      %1140 = vst.msk [vmem:[%s1016 + $0x1ec] sm:$0xf] %vm534, %v899
      %1141 = vst.msk [vmem:[%s1016 + $0x1f0] sm:$0xf] %vm534, %v900
      %1142 = vst.msk [vmem:[%s1016 + $0x1f4] sm:$0xf] %vm534, %v901
      %1143 = vst.msk [vmem:[%s1016 + $0x1f8] sm:$0xf] %vm534, %v902
      %1144 = vst.msk [vmem:[%s1016 + $0x1fc] sm:$0xf] %vm534, %v903
      %1145 = vst.msk [vmem:[%s1016 + $0x200] sm:$0xf] %vm534, %v904
      %1146 = vst.msk [vmem:[%s1016 + $0x204] sm:$0xf] %vm534, %v905
      %1147 = vst.msk [vmem:[%s1016 + $0x208] sm:$0xf] %vm534, %v906
      %1148 = vst.msk [vmem:[%s1016 + $0x20c] sm:$0xf] %vm534, %v907
      %1149 = vst.msk [vmem:[%s1016 + $0x210] sm:$0xf] %vm534, %v908
      %1150 = vst.msk [vmem:[%s1016 + $0x214] sm:$0xf] %vm534, %v909
      %1151 = vst.msk [vmem:[%s1016 + $0x218] sm:$0x1] %vm549, %v910
      %1152 = vst.msk [vmem:[%s1016 + $0x21c] sm:$0xf] %vm534, %v911
      %1153 = vst.msk [vmem:[%s1016 + $0x220] sm:$0xf] %vm534, %v912
      %1154 = vst.msk [vmem:[%s1016 + $0x224] sm:$0xf] %vm534, %v913
      %1155 = vst.msk [vmem:[%s1016 + $0x228] sm:$0xf] %vm534, %v914
      %1156 = vst.msk [vmem:[%s1016 + $0x22c] sm:$0xf] %vm534, %v915
      %1157 = vst.msk [vmem:[%s1016 + $0x230] sm:$0xf] %vm534, %v916
      %1158 = vst.msk [vmem:[%s1016 + $0x234] sm:$0xf] %vm534, %v917
      %1159 = vst.msk [vmem:[%s1016 + $0x238] sm:$0xf] %vm534, %v918
      %1160 = vst.msk [vmem:[%s1016 + $0x23c] sm:$0xf] %vm534, %v919
      %1161 = vst.msk [vmem:[%s1016 + $0x240] sm:$0xf] %vm534, %v920
      %1162 = vst.msk [vmem:[%s1016 + $0x244] sm:$0xf] %vm534, %v921
      %1163 = vst.msk [vmem:[%s1016 + $0x248] sm:$0xf] %vm534, %v922
      %1164 = vst.msk [vmem:[%s1016 + $0x24c] sm:$0xf] %vm534, %v923
      %1165 = vst.msk [vmem:[%s1016 + $0x250] sm:$0xf] %vm534, %v924
      %1166 = vst.msk [vmem:[%s1016 + $0x254] sm:$0x1] %vm549, %v925
      %1167 = vst.msk [vmem:[%s1016 + $0x258] sm:$0xf] %vm534, %v926
      %1168 = vst.msk [vmem:[%s1016 + $0x25c] sm:$0xf] %vm534, %v927
      %1169 = vst.msk [vmem:[%s1016 + $0x260] sm:$0xf] %vm534, %v928
      %1170 = vst.msk [vmem:[%s1016 + $0x264] sm:$0xf] %vm534, %v929
      %1171 = vst.msk [vmem:[%s1016 + $0x268] sm:$0xf] %vm534, %v930
      %1172 = vst.msk [vmem:[%s1016 + $0x26c] sm:$0xf] %vm534, %v931
      %1173 = vst.msk [vmem:[%s1016 + $0x270] sm:$0xf] %vm534, %v932
      %1174 = vst.msk [vmem:[%s1016 + $0x274] sm:$0xf] %vm534, %v933
      %1175 = vst.msk [vmem:[%s1016 + $0x278] sm:$0xf] %vm534, %v934
      %1176 = vst.msk [vmem:[%s1016 + $0x27c] sm:$0xf] %vm534, %v935
      %1177 = vst.msk [vmem:[%s1016 + $0x280] sm:$0xf] %vm534, %v936
      %1178 = vst.msk [vmem:[%s1016 + $0x284] sm:$0xf] %vm534, %v937
      %1179 = vst.msk [vmem:[%s1016 + $0x288] sm:$0xf] %vm534, %v938
      %1180 = vst.msk [vmem:[%s1016 + $0x28c] sm:$0xf] %vm534, %v939
      %1181 = vst.msk [vmem:[%s1016 + $0x290] sm:$0x1] %vm549, %v940
      %1182 = vst.msk [vmem:[%s1016 + $0x294] sm:$0xf] %vm534, %v941
      %1183 = vst.msk [vmem:[%s1016 + $0x298] sm:$0xf] %vm534, %v942
      %1184 = vst.msk [vmem:[%s1016 + $0x29c] sm:$0xf] %vm534, %v943
      %1185 = vst.msk [vmem:[%s1016 + $0x2a0] sm:$0xf] %vm534, %v944
      %1186 = vst.msk [vmem:[%s1016 + $0x2a4] sm:$0xf] %vm534, %v945
      %1187 = vst.msk [vmem:[%s1016 + $0x2a8] sm:$0xf] %vm534, %v946
      %1188 = vst.msk [vmem:[%s1016 + $0x2ac] sm:$0xf] %vm534, %v947
      %1189 = vst.msk [vmem:[%s1016 + $0x2b0] sm:$0xf] %vm534, %v948
      %1190 = vst.msk [vmem:[%s1016 + $0x2b4] sm:$0xf] %vm534, %v949
      %1191 = vst.msk [vmem:[%s1016 + $0x2b8] sm:$0xf] %vm534, %v950
      %1192 = vst.msk [vmem:[%s1016 + $0x2bc] sm:$0xf] %vm534, %v951
      %1193 = vst.msk [vmem:[%s1016 + $0x2c0] sm:$0xf] %vm534, %v952
      %1194 = vst.msk [vmem:[%s1016 + $0x2c4] sm:$0xf] %vm534, %v953
      %1195 = vst.msk [vmem:[%s1016 + $0x2c8] sm:$0xf] %vm534, %v954
      %1196 = vst.msk [vmem:[%s1016 + $0x2cc] sm:$0x1] %vm549, %v955
      %1197 = vst.msk [vmem:[%s1016 + $0x2d0] sm:$0xf] %vm534, %v956
      %1198 = vst.msk [vmem:[%s1016 + $0x2d4] sm:$0xf] %vm534, %v957
      %1199 = vst.msk [vmem:[%s1016 + $0x2d8] sm:$0xf] %vm534, %v958
      %1200 = vst.msk [vmem:[%s1016 + $0x2dc] sm:$0xf] %vm534, %v959
      %1201 = vst.msk [vmem:[%s1016 + $0x2e0] sm:$0xf] %vm534, %v960
      %1202 = vst.msk [vmem:[%s1016 + $0x2e4] sm:$0xf] %vm534, %v961
      %1203 = vst.msk [vmem:[%s1016 + $0x2e8] sm:$0xf] %vm534, %v962
      %1204 = vst.msk [vmem:[%s1016 + $0x2ec] sm:$0xf] %vm534, %v963
      %1205 = vst.msk [vmem:[%s1016 + $0x2f0] sm:$0xf] %vm534, %v964
      %1206 = vst.msk [vmem:[%s1016 + $0x2f4] sm:$0xf] %vm534, %v965
      %1207 = vst.msk [vmem:[%s1016 + $0x2f8] sm:$0xf] %vm534, %v966
      %1208 = vst.msk [vmem:[%s1016 + $0x2fc] sm:$0xf] %vm534, %v967
      %1209 = vst.msk [vmem:[%s1016 + $0x300] sm:$0xf] %vm534, %v968
      %1210 = vst.msk [vmem:[%s1016 + $0x304] sm:$0xf] %vm534, %v969
      %1211 = vst.msk [vmem:[%s1016 + $0x308] sm:$0x1] %vm549, %v970
      %1212 = vst.msk [vmem:[%s1016 + $0x30c] sm:$0xf] %vm534, %v971
      %1213 = vst.msk [vmem:[%s1016 + $0x310] sm:$0xf] %vm534, %v972
      %1214 = vst.msk [vmem:[%s1016 + $0x314] sm:$0xf] %vm534, %v973
      %1215 = vst.msk [vmem:[%s1016 + $0x318] sm:$0xf] %vm534, %v974
      %1216 = vst.msk [vmem:[%s1016 + $0x31c] sm:$0xf] %vm534, %v975
      %1217 = vst.msk [vmem:[%s1016 + $0x320] sm:$0xf] %vm534, %v976
      %1218 = vst.msk [vmem:[%s1016 + $0x324] sm:$0xf] %vm534, %v977
      %1219 = vst.msk [vmem:[%s1016 + $0x328] sm:$0xf] %vm534, %v978
      %1220 = vst.msk [vmem:[%s1016 + $0x32c] sm:$0xf] %vm534, %v979
      %1221 = vst.msk [vmem:[%s1016 + $0x330] sm:$0xf] %vm534, %v980
      %1222 = vst.msk [vmem:[%s1016 + $0x334] sm:$0xf] %vm534, %v981
      %1223 = vst.msk [vmem:[%s1016 + $0x338] sm:$0xf] %vm534, %v982
      %1224 = vst.msk [vmem:[%s1016 + $0x33c] sm:$0xf] %vm534, %v983
      %1225 = vst.msk [vmem:[%s1016 + $0x340] sm:$0xf] %vm534, %v984
      %1226 = vst.msk [vmem:[%s1016 + $0x344] sm:$0x1] %vm549, %v985
      %1227 = vst.msk [vmem:[%s1016 + $0x348] sm:$0xf] %vm534, %v986
      %1228 = vst.msk [vmem:[%s1016 + $0x34c] sm:$0xf] %vm534, %v987
      %1229 = vst.msk [vmem:[%s1016 + $0x350] sm:$0xf] %vm534, %v988
      %1230 = vst.msk [vmem:[%s1016 + $0x354] sm:$0xf] %vm534, %v989
      %1231 = vst.msk [vmem:[%s1016 + $0x358] sm:$0xf] %vm534, %v990
      %1232 = vst.msk [vmem:[%s1016 + $0x35c] sm:$0xf] %vm534, %v991
      %1233 = vst.msk [vmem:[%s1016 + $0x360] sm:$0xf] %vm534, %v992
      %1234 = vst.msk [vmem:[%s1016 + $0x364] sm:$0xf] %vm534, %v993
      %1235 = vst.msk [vmem:[%s1016 + $0x368] sm:$0xf] %vm534, %v994
      %1236 = vst.msk [vmem:[%s1016 + $0x36c] sm:$0xf] %vm534, %v995
      %1237 = vst.msk [vmem:[%s1016 + $0x370] sm:$0xf] %vm534, %v996
      %1238 = vst.msk [vmem:[%s1016 + $0x374] sm:$0xf] %vm534, %v997
      %1239 = vst.msk [vmem:[%s1016 + $0x378] sm:$0xf] %vm534, %v998
      %1240 = vst.msk [vmem:[%s1016 + $0x37c] sm:$0xf] %vm534, %v999
      %1241 = vst.msk [vmem:[%s1016 + $0x380] sm:$0x1] %vm549, %v1000
      %1242 = vst.msk [vmem:[%s1016 + $0x384] sm:$0xf] %vm534, %v1001
      %1243 = vst.msk [vmem:[%s1016 + $0x388] sm:$0xf] %vm534, %v1002
      %1244 = vst.msk [vmem:[%s1016 + $0x38c] sm:$0xf] %vm534, %v1003
      %1245 = vst.msk [vmem:[%s1016 + $0x390] sm:$0xf] %vm534, %v1004
      %1246 = vst.msk [vmem:[%s1016 + $0x394] sm:$0xf] %vm534, %v1005
      %1247 = vst.msk [vmem:[%s1016 + $0x398] sm:$0xf] %vm534, %v1006
      %1248 = vst.msk [vmem:[%s1016 + $0x39c] sm:$0xf] %vm534, %v1007
      %1249 = vst.msk [vmem:[%s1016 + $0x3a0] sm:$0xf] %vm534, %v1008
      %1250 = vst.msk [vmem:[%s1016 + $0x3a4] sm:$0xf] %vm534, %v1009
      %1251 = vst.msk [vmem:[%s1016 + $0x3a8] sm:$0xf] %vm534, %v1010
      %1252 = vst.msk [vmem:[%s1016 + $0x3ac] sm:$0xf] %vm534, %v1011
      %1253 = vst.msk [vmem:[%s1016 + $0x3b0] sm:$0xf] %vm534, %v1012
      %1254 = vst.msk [vmem:[%s1016 + $0x3b4] sm:$0xf] %vm534, %v1013
      %1255 = vst.msk [vmem:[%s1016 + $0x3b8] sm:$0xf] %vm534, %v1014
      %1256 = vst.msk [vmem:[%s1016 + $0x3bc] sm:$0x1] %vm549, %v1015
      loop: start=0, step=1, limit=16
      $region33: #{conv3x3_s1.1} parent=31 // loop_pre_header
        _
      $region34: #{conv3x3_s1.1} parent=31 // loop_header
        %s1258 = sphi 0, %s1262
        %p1259 = scmp.ge.s32.totalorder %s1258, 16
      $region35: #{conv3x3_s1.1} parent=31 // loop_header_branch
        %1261 = sbr.rel (%p1259) target = $region39
      $region36: #{conv3x3_s1.1} parent=31 // loop_body
        %s1263 = smul.u32 %s1258, 15
        %s1264 = smul.addr %s1263, 4
        %s1265 = scalar_lea.vmem [#allocation2], %s1264
        %v1266 = vld [vmem:[%s1265] sm:$0xf]
        %v1267 = vld [vmem:[%s1265 + $0x4] sm:$0xf]
        %v1268 = vld [vmem:[%s1265 + $0x8] sm:$0xf]
        %v1269 = vld [vmem:[%s1265 + $0xc] sm:$0xf]
        %v1270 = vld [vmem:[%s1265 + $0x10] sm:$0xf]
        %v1271 = vld [vmem:[%s1265 + $0x14] sm:$0xf]
        %v1272 = vld [vmem:[%s1265 + $0x18] sm:$0xf]
        %v1273 = vld [vmem:[%s1265 + $0x1c] sm:$0xf]
        %v1274 = vld [vmem:[%s1265 + $0x20] sm:$0xf]
        %v1275 = vld [vmem:[%s1265 + $0x24] sm:$0xf]
        %v1276 = vld [vmem:[%s1265 + $0x28] sm:$0xf]
        %v1277 = vld [vmem:[%s1265 + $0x2c] sm:$0xf]
        %v1278 = vld [vmem:[%s1265 + $0x30] sm:$0xf]
        %v1279 = vld [vmem:[%s1265 + $0x34] sm:$0xf]
        %v1280 = vld [vmem:[%s278] sm:$0xf]
        %v1281 = vld [vmem:[%s1265 + $0x38] sm:$0x1]
        %s1282 = scalar_lea.vmem %s278, 4
        %v1283 = vld [vmem:[%s1282] sm:$0xf]
        %v1299 = vunpack.c.l.b16 %v1266
        %v1300 = vunpack.c.l.b16 %v1267
        %v1301 = vunpack.c.l.b16 %v1268
        %v1302 = vunpack.c.l.b16 %v1269
        %v1303 = vunpack.c.l.b16 %v1270
        %v1304 = vunpack.c.l.b16 %v1271
        %v1305 = vunpack.c.l.b16 %v1272
        %v1306 = vunpack.c.l.b16 %v1273
        %v1307 = vunpack.c.l.b16 %v1274
        %v1308 = vunpack.c.l.b16 %v1275
        %v1309 = vunpack.c.l.b16 %v1276
        %v1310 = vunpack.c.l.b16 %v1277
        %v1311 = vunpack.c.l.b16 %v1278
        %v1312 = vunpack.c.l.b16 %v1279
        %v1313 = vunpack.c.l.b16 %v1281
        %v1314 = vpack.c.b16 %v1300, %v1299
        %v1315 = vpack.c.b16 %v1302, %v1301
        %v1316 = vpack.c.b16 %v1304, %v1303
        %v1317 = vpack.c.b16 %v1306, %v1305
        %v1318 = vpack.c.b16 %v1308, %v1307
        %v1319 = vpack.c.b16 %v1310, %v1309
        %v1320 = vpack.c.b16 %v1312, %v1311
        %v1321 = vpack.c.b16 %v1313, %v1313
        %vm1322 = vsmask.f32 7424
        %v1324 = vshrl.u32 %v1314, 16
        %v1326 = vshll.u32 %v1314, 16
        %v1328 = vrot.slane %v1326, 1
        %v1329 = vor.u32 %v1324, %v1328
        %v1331 = vshll.u32 %v1315, 16
        %v1333 = vrot.slane %v1331, 1
        %v1334 = vsel %vm1322, %v1329, %v1333
        %v1335 = vshrl.u32 %v1315, 16
        %v1337 = vor.u32 %v1335, %v1333
        %v1339 = vshll.u32 %v1316, 16
        %v1341 = vrot.slane %v1339, 1
        %v1342 = vsel %vm1322, %v1337, %v1341
        %v1343 = vshrl.u32 %v1316, 16
        %v1345 = vor.u32 %v1343, %v1341
        %v1347 = vshll.u32 %v1317, 16
        %v1349 = vrot.slane %v1347, 1
        %v1350 = vsel %vm1322, %v1345, %v1349
        %v1351 = vshrl.u32 %v1317, 16
        %v1353 = vor.u32 %v1351, %v1349
        %v1355 = vshll.u32 %v1318, 16
        %v1357 = vrot.slane %v1355, 1
        %v1358 = vsel %vm1322, %v1353, %v1357
        %v1359 = vshrl.u32 %v1318, 16
        %v1361 = vor.u32 %v1359, %v1357
        %v1363 = vshll.u32 %v1319, 16
        %v1365 = vrot.slane %v1363, 1
        %v1366 = vsel %vm1322, %v1361, %v1365
        %v1367 = vshrl.u32 %v1319, 16
        %v1369 = vor.u32 %v1367, %v1365
        %v1371 = vshll.u32 %v1320, 16
        %v1373 = vrot.slane %v1371, 1
        %v1374 = vsel %vm1322, %v1369, %v1373
        %v1375 = vshrl.u32 %v1320, 16
        %v1377 = vor.u32 %v1375, %v1373
        %v1379 = vshll.u32 %v1321, 16
        %v1381 = vrot.slane %v1379, 1
        %v1382 = vsel %vm1322, %v1377, %v1381
        %vm1383 = vcmask 64512
        %v1385 = vsel %vm1383, %v1334, 0
        %v1388 = vsel %vm1383, %v1342, 0
        %v1391 = vsel %vm1383, %v1350, 0
        %v1394 = vsel %vm1383, %v1358, 0
        %v1397 = vsel %vm1383, %v1366, 0
        %v1400 = vsel %vm1383, %v1374, 0
        %v1403 = vsel %vm1383, %v1382, 0
        %vm1405 = vcmask 1043456
        %v1407 = vsel %vm1405, %v1283, 0
        %1409 = vmatpush.bf16.msra.mxu0 0
        %1410 = vmatpush.bf16.msra.mxu0 0
        %1411 = vmatpush.bf16.msra.mxu0 0
        %1412 = vmatpush.bf16.msra.mxu0 0
        %1413 = vmatpush.bf16.msra.mxu0 0
        %1414 = vmatpush.bf16.msra.mxu0 0
        %1415 = vmatpush.bf16.msra.mxu0 0
        %1416 = vmatpush.bf16.msra.mxu0 %v1407
        %1417 = vmatmul.bf16.gmra.mxu0 %v1385
        %v1418 = vpop.f32.mrf.mxu0
        %v1419 = vadd.f32 0.0, %v1418
        %v1420 = vpop.f32.mrf.mxu0
        %v1421 = vadd.f32 0.0, %v1420
        %1422 = vmatmul.bf16.gmra.mxu0 %v1388
        %v1423 = vpop.f32.mrf.mxu0
        %v1424 = vadd.f32 0.0, %v1423
        %v1425 = vpop.f32.mrf.mxu0
        %v1426 = vadd.f32 0.0, %v1425
        %1427 = vmatmul.bf16.gmra.mxu0 %v1391
        %v1428 = vpop.f32.mrf.mxu0
        %v1429 = vadd.f32 0.0, %v1428
        %v1430 = vpop.f32.mrf.mxu0
        %v1431 = vadd.f32 0.0, %v1430
        %1432 = vmatmul.bf16.gmra.mxu0 %v1394
        %v1433 = vpop.f32.mrf.mxu0
        %v1434 = vadd.f32 0.0, %v1433
        %v1435 = vpop.f32.mrf.mxu0
        %v1436 = vadd.f32 0.0, %v1435
        %1437 = vmatmul.bf16.gmra.mxu0 %v1397
        %v1438 = vpop.f32.mrf.mxu0
        %v1439 = vadd.f32 0.0, %v1438
        %v1440 = vpop.f32.mrf.mxu0
        %v1441 = vadd.f32 0.0, %v1440
        %1442 = vmatmul.bf16.gmra.mxu0 %v1400
        %v1443 = vpop.f32.mrf.mxu0
        %v1444 = vadd.f32 0.0, %v1443
        %v1445 = vpop.f32.mrf.mxu0
        %v1446 = vadd.f32 0.0, %v1445
        %1447 = vmatmul.bf16.gmra.mxu0 %v1403
        %v1448 = vpop.f32.mrf.mxu0
        %v1449 = vadd.f32 0.0, %v1448
        %v1450 = vpop.f32.mrf.mxu0
        %v1451 = vadd.f32 0.0, %v1450
        %1452 = vdwg.mxu0
        %v1453 = vsel %vm1383, %v1314, 0
        %v1455 = vsel %vm1383, %v1315, 0
        %v1457 = vsel %vm1383, %v1316, 0
        %v1459 = vsel %vm1383, %v1317, 0
        %v1461 = vsel %vm1383, %v1318, 0
        %v1463 = vsel %vm1383, %v1319, 0
        %v1465 = vsel %vm1383, %v1320, 0
        %v1468 = vsel %vm1405, %v1280, 0
        %1470 = vmatpush.bf16.msra.mxu0 0
        %1471 = vmatpush.bf16.msra.mxu0 0
        %1472 = vmatpush.bf16.msra.mxu0 0
        %1473 = vmatpush.bf16.msra.mxu0 0
        %1474 = vmatpush.bf16.msra.mxu0 0
        %1475 = vmatpush.bf16.msra.mxu0 0
        %1476 = vmatpush.bf16.msra.mxu0 0
        %1477 = vmatpush.bf16.msra.mxu0 %v1468
        %1478 = vmatmul.bf16.gmra.mxu0 %v1453
        %v1479 = vpop.f32.mrf.mxu0
        %v1480 = vadd.f32 %v1419, %v1479
        %v1481 = vpop.f32.mrf.mxu0
        %v1482 = vadd.f32 %v1421, %v1481
        %1483 = vmatmul.bf16.gmra.mxu0 %v1455
        %v1484 = vpop.f32.mrf.mxu0
        %v1485 = vadd.f32 %v1424, %v1484
        %v1486 = vpop.f32.mrf.mxu0
        %v1487 = vadd.f32 %v1426, %v1486
        %1488 = vmatmul.bf16.gmra.mxu0 %v1457
        %v1489 = vpop.f32.mrf.mxu0
        %v1490 = vadd.f32 %v1429, %v1489
        %v1491 = vpop.f32.mrf.mxu0
        %v1492 = vadd.f32 %v1431, %v1491
        %1493 = vmatmul.bf16.gmra.mxu0 %v1459
        %v1494 = vpop.f32.mrf.mxu0
        %v1495 = vadd.f32 %v1434, %v1494
        %v1496 = vpop.f32.mrf.mxu0
        %v1497 = vadd.f32 %v1436, %v1496
        %1498 = vmatmul.bf16.gmra.mxu0 %v1461
        %v1499 = vpop.f32.mrf.mxu0
        %v1500 = vadd.f32 %v1439, %v1499
        %v1501 = vpop.f32.mrf.mxu0
        %v1502 = vadd.f32 %v1441, %v1501
        %1503 = vmatmul.bf16.gmra.mxu0 %v1463
        %v1504 = vpop.f32.mrf.mxu0
        %v1505 = vadd.f32 %v1444, %v1504
        %v1506 = vpop.f32.mrf.mxu0
        %v1507 = vadd.f32 %v1446, %v1506
        %1508 = vmatmul.bf16.gmra.mxu0 %v1465
        %v1509 = vpop.f32.mrf.mxu0
        %v1510 = vadd.f32 %v1449, %v1509
        %v1511 = vpop.f32.mrf.mxu0
        %v1512 = vadd.f32 %v1451, %v1511
        %1513 = vdwg.mxu0
        %v1514 = vld [vmem:[%s1265] sm:$0xe]
        %s1515 = scalar_lea.vmem %s278, 8
        %v1516 = vld [vmem:[%s1515] sm:$0xf]
        %v1518 = vunpack.c.l.b16 %v1514
        %v1519 = vpack.c.b16 %v1300, %v1518
        %vm1520 = vcmask 1046528
        %v1521 = vrot.slane %v1519, 1
        %v1522 = vrot.slane %v1315, 1
        %v1523 = vsel %vm1520, %v1521, %v1522
        %v1524 = vrot.slane %v1316, 1
        %v1525 = vsel %vm1520, %v1522, %v1524
        %v1526 = vrot.slane %v1317, 1
        %v1527 = vsel %vm1520, %v1524, %v1526
        %v1528 = vrot.slane %v1318, 1
        %v1529 = vsel %vm1520, %v1526, %v1528
        %v1530 = vrot.slane %v1319, 1
        %v1531 = vsel %vm1520, %v1528, %v1530
        %v1532 = vrot.slane %v1320, 1
        %v1533 = vsel %vm1520, %v1530, %v1532
        %v1534 = vrot.slane %v1321, 1
        %v1535 = vsel %vm1520, %v1532, %v1534
        %v1537 = vsel %vm1383, %v1523, 0
        %v1540 = vsel %vm1383, %v1525, 0
        %v1543 = vsel %vm1383, %v1527, 0
        %v1546 = vsel %vm1383, %v1529, 0
        %v1549 = vsel %vm1383, %v1531, 0
        %v1552 = vsel %vm1383, %v1533, 0
        %v1555 = vsel %vm1383, %v1535, 0
        %v1558 = vsel %vm1405, %v1516, 0
        %1560 = vmatpush.bf16.msra.mxu0 0
        %1561 = vmatpush.bf16.msra.mxu0 0
        %1562 = vmatpush.bf16.msra.mxu0 0
        %1563 = vmatpush.bf16.msra.mxu0 0
        %1564 = vmatpush.bf16.msra.mxu0 0
        %1565 = vmatpush.bf16.msra.mxu0 0
        %1566 = vmatpush.bf16.msra.mxu0 0
        %1567 = vmatpush.bf16.msra.mxu0 %v1558
        %1568 = vmatmul.bf16.gmra.mxu0 %v1537
        %v1569 = vpop.f32.mrf.mxu0
        %v1570 = vadd.f32 0.0, %v1569
        %v1571 = vpop.f32.mrf.mxu0
        %v1572 = vadd.f32 0.0, %v1571
        %1573 = vmatmul.bf16.gmra.mxu0 %v1540
        %v1574 = vpop.f32.mrf.mxu0
        %v1575 = vadd.f32 0.0, %v1574
        %v1576 = vpop.f32.mrf.mxu0
        %v1577 = vadd.f32 0.0, %v1576
        %1578 = vmatmul.bf16.gmra.mxu0 %v1543
        %v1579 = vpop.f32.mrf.mxu0
        %v1580 = vadd.f32 0.0, %v1579
        %v1581 = vpop.f32.mrf.mxu0
        %v1582 = vadd.f32 0.0, %v1581
        %1583 = vmatmul.bf16.gmra.mxu0 %v1546
        %v1584 = vpop.f32.mrf.mxu0
        %v1585 = vadd.f32 0.0, %v1584
        %v1586 = vpop.f32.mrf.mxu0
        %v1587 = vadd.f32 0.0, %v1586
        %1588 = vmatmul.bf16.gmra.mxu0 %v1549
        %v1589 = vpop.f32.mrf.mxu0
        %v1590 = vadd.f32 0.0, %v1589
        %v1591 = vpop.f32.mrf.mxu0
        %v1592 = vadd.f32 0.0, %v1591
        %1593 = vmatmul.bf16.gmra.mxu0 %v1552
        %v1594 = vpop.f32.mrf.mxu0
        %v1595 = vadd.f32 0.0, %v1594
        %v1596 = vpop.f32.mrf.mxu0
        %v1597 = vadd.f32 0.0, %v1596
        %1598 = vmatmul.bf16.gmra.mxu0 %v1555
        %v1599 = vpop.f32.mrf.mxu0
        %v1600 = vadd.f32 0.0, %v1599
        %v1601 = vpop.f32.mrf.mxu0
        %v1602 = vadd.f32 0.0, %v1601
        %1603 = vdwg.mxu0
        %v1604 = vadd.f32 %v1480, %v1570
        %v1605 = vadd.f32 %v1482, %v1572
        %v1606 = vadd.f32 %v1485, %v1575
        %v1607 = vadd.f32 %v1487, %v1577
        %v1608 = vadd.f32 %v1490, %v1580
        %v1609 = vadd.f32 %v1492, %v1582
        %v1610 = vadd.f32 %v1495, %v1585
        %v1611 = vadd.f32 %v1497, %v1587
        %v1612 = vadd.f32 %v1500, %v1590
        %v1613 = vadd.f32 %v1502, %v1592
        %v1614 = vadd.f32 %v1505, %v1595
        %v1615 = vadd.f32 %v1507, %v1597
        %v1616 = vadd.f32 %v1510, %v1600
        %v1617 = vadd.f32 %v1512, %v1602
        %s1618 = sadd.s32 %s1258, 1
        %s1619 = smul.u32 %s1618, 15
        %s1620 = smul.addr %s1619, 4
        %s1621 = scalar_lea.vmem [#allocation2], %s1620
        %v1622 = vld [vmem:[%s1621] sm:$0xf]
        %v1623 = vld [vmem:[%s1621 + $0x4] sm:$0xf]
        %v1624 = vld [vmem:[%s1621 + $0x8] sm:$0xf]
        %v1625 = vld [vmem:[%s1621 + $0xc] sm:$0xf]
        %v1626 = vld [vmem:[%s1621 + $0x10] sm:$0xf]
        %v1627 = vld [vmem:[%s1621 + $0x14] sm:$0xf]
        %v1628 = vld [vmem:[%s1621 + $0x18] sm:$0xf]
        %v1629 = vld [vmem:[%s1621 + $0x1c] sm:$0xf]
        %v1630 = vld [vmem:[%s1621 + $0x20] sm:$0xf]
        %v1631 = vld [vmem:[%s1621 + $0x24] sm:$0xf]
        %v1632 = vld [vmem:[%s1621 + $0x28] sm:$0xf]
        %v1633 = vld [vmem:[%s1621 + $0x2c] sm:$0xf]
        %v1634 = vld [vmem:[%s1621 + $0x30] sm:$0xf]
        %v1635 = vld [vmem:[%s1621 + $0x34] sm:$0xf]
        %s1636 = scalar_lea.vmem %s278, 12
        %v1637 = vld [vmem:[%s1636] sm:$0xf]
        %v1652 = vunpack.c.l.b16 %v1622
        %v1653 = vunpack.c.l.b16 %v1623
        %v1654 = vunpack.c.l.b16 %v1624
        %v1655 = vunpack.c.l.b16 %v1625
        %v1656 = vunpack.c.l.b16 %v1626
        %v1657 = vunpack.c.l.b16 %v1627
        %v1658 = vunpack.c.l.b16 %v1628
        %v1659 = vunpack.c.l.b16 %v1629
        %v1660 = vunpack.c.l.b16 %v1630
        %v1661 = vunpack.c.l.b16 %v1631
        %v1662 = vunpack.c.l.b16 %v1632
        %v1663 = vunpack.c.l.b16 %v1633
        %v1664 = vunpack.c.l.b16 %v1634
        %v1665 = vunpack.c.l.b16 %v1635
        %v1666 = vpack.c.b16 %v1653, %v1652
        %v1667 = vpack.c.b16 %v1655, %v1654
        %v1668 = vpack.c.b16 %v1657, %v1656
        %v1669 = vpack.c.b16 %v1659, %v1658
        %v1670 = vpack.c.b16 %v1661, %v1660
        %v1671 = vpack.c.b16 %v1663, %v1662
        %v1672 = vpack.c.b16 %v1665, %v1664
        %v1674 = vsel %vm1383, %v1666, 0
        %v1677 = vsel %vm1383, %v1667, 0
        %v1680 = vsel %vm1383, %v1668, 0
        %v1683 = vsel %vm1383, %v1669, 0
        %v1686 = vsel %vm1383, %v1670, 0
        %v1689 = vsel %vm1383, %v1671, 0
        %v1692 = vsel %vm1383, %v1672, 0
        %v1695 = vsel %vm1405, %v1637, 0
        %1697 = vmatpush.bf16.msra.mxu0 0
        %1698 = vmatpush.bf16.msra.mxu0 0
        %1699 = vmatpush.bf16.msra.mxu0 0
        %1700 = vmatpush.bf16.msra.mxu0 0
        %1701 = vmatpush.bf16.msra.mxu0 0
        %1702 = vmatpush.bf16.msra.mxu0 0
        %1703 = vmatpush.bf16.msra.mxu0 0
        %1704 = vmatpush.bf16.msra.mxu0 %v1695
        %1705 = vmatmul.bf16.gmra.mxu0 %v1674
        %v1706 = vpop.f32.mrf.mxu0
        %v1707 = vadd.f32 0.0, %v1706
        %v1708 = vpop.f32.mrf.mxu0
        %v1709 = vadd.f32 0.0, %v1708
        %1710 = vmatmul.bf16.gmra.mxu0 %v1677
        %v1711 = vpop.f32.mrf.mxu0
        %v1712 = vadd.f32 0.0, %v1711
        %v1713 = vpop.f32.mrf.mxu0
        %v1714 = vadd.f32 0.0, %v1713
        %1715 = vmatmul.bf16.gmra.mxu0 %v1680
        %v1716 = vpop.f32.mrf.mxu0
        %v1717 = vadd.f32 0.0, %v1716
        %v1718 = vpop.f32.mrf.mxu0
        %v1719 = vadd.f32 0.0, %v1718
        %1720 = vmatmul.bf16.gmra.mxu0 %v1683
        %v1721 = vpop.f32.mrf.mxu0
        %v1722 = vadd.f32 0.0, %v1721
        %v1723 = vpop.f32.mrf.mxu0
        %v1724 = vadd.f32 0.0, %v1723
        %1725 = vmatmul.bf16.gmra.mxu0 %v1686
        %v1726 = vpop.f32.mrf.mxu0
        %v1727 = vadd.f32 0.0, %v1726
        %v1728 = vpop.f32.mrf.mxu0
        %v1729 = vadd.f32 0.0, %v1728
        %1730 = vmatmul.bf16.gmra.mxu0 %v1689
        %v1731 = vpop.f32.mrf.mxu0
        %v1732 = vadd.f32 0.0, %v1731
        %v1733 = vpop.f32.mrf.mxu0
        %v1734 = vadd.f32 0.0, %v1733
        %1735 = vmatmul.bf16.gmra.mxu0 %v1692
        %v1736 = vpop.f32.mrf.mxu0
        %v1737 = vadd.f32 0.0, %v1736
        %v1738 = vpop.f32.mrf.mxu0
        %v1739 = vadd.f32 0.0, %v1738
        %1740 = vdwg.mxu0
        %v1741 = vadd.f32 %v1604, %v1707
        %v1742 = vadd.f32 %v1605, %v1709
        %v1743 = vadd.f32 %v1606, %v1712
        %v1744 = vadd.f32 %v1607, %v1714
        %v1745 = vadd.f32 %v1608, %v1717
        %v1746 = vadd.f32 %v1609, %v1719
        %v1747 = vadd.f32 %v1610, %v1722
        %v1748 = vadd.f32 %v1611, %v1724
        %v1749 = vadd.f32 %v1612, %v1727
        %v1750 = vadd.f32 %v1613, %v1729
        %v1751 = vadd.f32 %v1614, %v1732
        %v1752 = vadd.f32 %v1615, %v1734
        %v1753 = vadd.f32 %v1616, %v1737
        %v1754 = vadd.f32 %v1617, %v1739
        %v1755 = vld [vmem:[%s1621] sm:$0xf]
        %v1756 = vld [vmem:[%s1621 + $0x4] sm:$0xf]
        %v1757 = vld [vmem:[%s1621 + $0x8] sm:$0xf]
        %v1758 = vld [vmem:[%s1621 + $0xc] sm:$0xf]
        %v1759 = vld [vmem:[%s1621 + $0x10] sm:$0xf]
        %v1760 = vld [vmem:[%s1621 + $0x14] sm:$0xf]
        %v1761 = vld [vmem:[%s1621 + $0x18] sm:$0xf]
        %v1762 = vld [vmem:[%s1621 + $0x1c] sm:$0xf]
        %v1763 = vld [vmem:[%s1621 + $0x20] sm:$0xf]
        %v1764 = vld [vmem:[%s1621 + $0x24] sm:$0xf]
        %v1765 = vld [vmem:[%s1621 + $0x28] sm:$0xf]
        %v1766 = vld [vmem:[%s1621 + $0x2c] sm:$0xf]
        %v1767 = vld [vmem:[%s1621 + $0x30] sm:$0xf]
        %v1768 = vld [vmem:[%s1621 + $0x34] sm:$0xf]
        %v1769 = vld [vmem:[%s1621 + $0x38] sm:$0x1]
        %s1770 = scalar_lea.vmem %s278, 16
        %v1771 = vld [vmem:[%s1770] sm:$0xf]
        %v1787 = vunpack.c.l.b16 %v1755
        %v1788 = vunpack.c.l.b16 %v1756
        %v1789 = vunpack.c.l.b16 %v1757
        %v1790 = vunpack.c.l.b16 %v1758
        %v1791 = vunpack.c.l.b16 %v1759
        %v1792 = vunpack.c.l.b16 %v1760
        %v1793 = vunpack.c.l.b16 %v1761
        %v1794 = vunpack.c.l.b16 %v1762
        %v1795 = vunpack.c.l.b16 %v1763
        %v1796 = vunpack.c.l.b16 %v1764
        %v1797 = vunpack.c.l.b16 %v1765
        %v1798 = vunpack.c.l.b16 %v1766
        %v1799 = vunpack.c.l.b16 %v1767
        %v1800 = vunpack.c.l.b16 %v1768
        %v1801 = vunpack.c.l.b16 %v1769
        %v1802 = vpack.c.b16 %v1788, %v1787
        %v1803 = vpack.c.b16 %v1790, %v1789
        %v1804 = vpack.c.b16 %v1792, %v1791
        %v1805 = vpack.c.b16 %v1794, %v1793
        %v1806 = vpack.c.b16 %v1796, %v1795
        %v1807 = vpack.c.b16 %v1798, %v1797
        %v1808 = vpack.c.b16 %v1800, %v1799
        %v1809 = vpack.c.b16 %v1801, %v1801
        %v1811 = vshrl.u32 %v1802, 16
        %v1813 = vshll.u32 %v1802, 16
        %v1815 = vrot.slane %v1813, 1
        %v1816 = vor.u32 %v1811, %v1815
        %v1818 = vshll.u32 %v1803, 16
        %v1820 = vrot.slane %v1818, 1
        %v1821 = vsel %vm1322, %v1816, %v1820
        %v1822 = vshrl.u32 %v1803, 16
        %v1824 = vor.u32 %v1822, %v1820
        %v1826 = vshll.u32 %v1804, 16
        %v1828 = vrot.slane %v1826, 1
        %v1829 = vsel %vm1322, %v1824, %v1828
        %v1830 = vshrl.u32 %v1804, 16
        %v1832 = vor.u32 %v1830, %v1828
        %v1834 = vshll.u32 %v1805, 16
        %v1836 = vrot.slane %v1834, 1
        %v1837 = vsel %vm1322, %v1832, %v1836
        %v1838 = vshrl.u32 %v1805, 16
        %v1840 = vor.u32 %v1838, %v1836
        %v1842 = vshll.u32 %v1806, 16
        %v1844 = vrot.slane %v1842, 1
        %v1845 = vsel %vm1322, %v1840, %v1844
        %v1846 = vshrl.u32 %v1806, 16
        %v1848 = vor.u32 %v1846, %v1844
        %v1850 = vshll.u32 %v1807, 16
        %v1852 = vrot.slane %v1850, 1
        %v1853 = vsel %vm1322, %v1848, %v1852
        %v1854 = vshrl.u32 %v1807, 16
        %v1856 = vor.u32 %v1854, %v1852
        %v1858 = vshll.u32 %v1808, 16
        %v1860 = vrot.slane %v1858, 1
        %v1861 = vsel %vm1322, %v1856, %v1860
        %v1862 = vshrl.u32 %v1808, 16
        %v1864 = vor.u32 %v1862, %v1860
        %v1866 = vshll.u32 %v1809, 16
        %v1868 = vrot.slane %v1866, 1
        %v1869 = vsel %vm1322, %v1864, %v1868
        %v1871 = vsel %vm1383, %v1821, 0
        %v1874 = vsel %vm1383, %v1829, 0
        %v1877 = vsel %vm1383, %v1837, 0
        %v1880 = vsel %vm1383, %v1845, 0
        %v1883 = vsel %vm1383, %v1853, 0
        %v1886 = vsel %vm1383, %v1861, 0
        %v1889 = vsel %vm1383, %v1869, 0
        %v1892 = vsel %vm1405, %v1771, 0
        %1894 = vmatpush.bf16.msra.mxu0 0
        %1895 = vmatpush.bf16.msra.mxu0 0
        %1896 = vmatpush.bf16.msra.mxu0 0
        %1897 = vmatpush.bf16.msra.mxu0 0
        %1898 = vmatpush.bf16.msra.mxu0 0
        %1899 = vmatpush.bf16.msra.mxu0 0
        %1900 = vmatpush.bf16.msra.mxu0 0
        %1901 = vmatpush.bf16.msra.mxu0 %v1892
        %1902 = vmatmul.bf16.gmra.mxu0 %v1871
        %v1903 = vpop.f32.mrf.mxu0
        %v1904 = vadd.f32 0.0, %v1903
        %v1905 = vpop.f32.mrf.mxu0
        %v1906 = vadd.f32 0.0, %v1905
        %1907 = vmatmul.bf16.gmra.mxu0 %v1874
        %v1908 = vpop.f32.mrf.mxu0
        %v1909 = vadd.f32 0.0, %v1908
        %v1910 = vpop.f32.mrf.mxu0
        %v1911 = vadd.f32 0.0, %v1910
        %1912 = vmatmul.bf16.gmra.mxu0 %v1877
        %v1913 = vpop.f32.mrf.mxu0
        %v1914 = vadd.f32 0.0, %v1913
        %v1915 = vpop.f32.mrf.mxu0
        %v1916 = vadd.f32 0.0, %v1915
        %1917 = vmatmul.bf16.gmra.mxu0 %v1880
        %v1918 = vpop.f32.mrf.mxu0
        %v1919 = vadd.f32 0.0, %v1918
        %v1920 = vpop.f32.mrf.mxu0
        %v1921 = vadd.f32 0.0, %v1920
        %1922 = vmatmul.bf16.gmra.mxu0 %v1883
        %v1923 = vpop.f32.mrf.mxu0
        %v1924 = vadd.f32 0.0, %v1923
        %v1925 = vpop.f32.mrf.mxu0
        %v1926 = vadd.f32 0.0, %v1925
        %1927 = vmatmul.bf16.gmra.mxu0 %v1886
        %v1928 = vpop.f32.mrf.mxu0
        %v1929 = vadd.f32 0.0, %v1928
        %v1930 = vpop.f32.mrf.mxu0
        %v1931 = vadd.f32 0.0, %v1930
        %1932 = vmatmul.bf16.gmra.mxu0 %v1889
        %v1933 = vpop.f32.mrf.mxu0
        %v1934 = vadd.f32 0.0, %v1933
        %v1935 = vpop.f32.mrf.mxu0
        %v1936 = vadd.f32 0.0, %v1935
        %1937 = vdwg.mxu0
        %v1938 = vadd.f32 %v1741, %v1904
        %v1939 = vadd.f32 %v1742, %v1906
        %v1940 = vadd.f32 %v1743, %v1909
        %v1941 = vadd.f32 %v1744, %v1911
        %v1942 = vadd.f32 %v1745, %v1914
        %v1943 = vadd.f32 %v1746, %v1916
        %v1944 = vadd.f32 %v1747, %v1919
        %v1945 = vadd.f32 %v1748, %v1921
        %v1946 = vadd.f32 %v1749, %v1924
        %v1947 = vadd.f32 %v1750, %v1926
        %v1948 = vadd.f32 %v1751, %v1929
        %v1949 = vadd.f32 %v1752, %v1931
        %v1950 = vadd.f32 %v1753, %v1934
        %v1951 = vadd.f32 %v1754, %v1936
        %v1952 = vld [vmem:[%s1621] sm:$0xe]
        %s1953 = scalar_lea.vmem %s278, 20
        %v1954 = vld [vmem:[%s1953] sm:$0xf]
        %v1956 = vunpack.c.l.b16 %v1952
        %v1957 = vpack.c.b16 %v1788, %v1956
        %v1958 = vrot.slane %v1957, 1
        %v1959 = vrot.slane %v1803, 1
        %v1960 = vsel %vm1520, %v1958, %v1959
        %v1961 = vrot.slane %v1804, 1
        %v1962 = vsel %vm1520, %v1959, %v1961
        %v1963 = vrot.slane %v1805, 1
        %v1964 = vsel %vm1520, %v1961, %v1963
        %v1965 = vrot.slane %v1806, 1
        %v1966 = vsel %vm1520, %v1963, %v1965
        %v1967 = vrot.slane %v1807, 1
        %v1968 = vsel %vm1520, %v1965, %v1967
        %v1969 = vrot.slane %v1808, 1
        %v1970 = vsel %vm1520, %v1967, %v1969
        %v1971 = vrot.slane %v1809, 1
        %v1972 = vsel %vm1520, %v1969, %v1971
        %v1974 = vsel %vm1383, %v1960, 0
        %v1977 = vsel %vm1383, %v1962, 0
        %v1980 = vsel %vm1383, %v1964, 0
        %v1983 = vsel %vm1383, %v1966, 0
        %v1986 = vsel %vm1383, %v1968, 0
        %v1989 = vsel %vm1383, %v1970, 0
        %v1992 = vsel %vm1383, %v1972, 0
        %v1995 = vsel %vm1405, %v1954, 0
        %1997 = vmatpush.bf16.msra.mxu0 0
        %1998 = vmatpush.bf16.msra.mxu0 0
        %1999 = vmatpush.bf16.msra.mxu0 0
        %2000 = vmatpush.bf16.msra.mxu0 0
        %2001 = vmatpush.bf16.msra.mxu0 0
        %2002 = vmatpush.bf16.msra.mxu0 0
        %2003 = vmatpush.bf16.msra.mxu0 0
        %2004 = vmatpush.bf16.msra.mxu0 %v1995
        %2005 = vmatmul.bf16.gmra.mxu0 %v1974
        %v2006 = vpop.f32.mrf.mxu0
        %v2007 = vadd.f32 0.0, %v2006
        %v2008 = vpop.f32.mrf.mxu0
        %v2009 = vadd.f32 0.0, %v2008
        %2010 = vmatmul.bf16.gmra.mxu0 %v1977
        %v2011 = vpop.f32.mrf.mxu0
        %v2012 = vadd.f32 0.0, %v2011
        %v2013 = vpop.f32.mrf.mxu0
        %v2014 = vadd.f32 0.0, %v2013
        %2015 = vmatmul.bf16.gmra.mxu0 %v1980
        %v2016 = vpop.f32.mrf.mxu0
        %v2017 = vadd.f32 0.0, %v2016
        %v2018 = vpop.f32.mrf.mxu0
        %v2019 = vadd.f32 0.0, %v2018
        %2020 = vmatmul.bf16.gmra.mxu0 %v1983
        %v2021 = vpop.f32.mrf.mxu0
        %v2022 = vadd.f32 0.0, %v2021
        %v2023 = vpop.f32.mrf.mxu0
        %v2024 = vadd.f32 0.0, %v2023
        %2025 = vmatmul.bf16.gmra.mxu0 %v1986
        %v2026 = vpop.f32.mrf.mxu0
        %v2027 = vadd.f32 0.0, %v2026
        %v2028 = vpop.f32.mrf.mxu0
        %v2029 = vadd.f32 0.0, %v2028
        %2030 = vmatmul.bf16.gmra.mxu0 %v1989
        %v2031 = vpop.f32.mrf.mxu0
        %v2032 = vadd.f32 0.0, %v2031
        %v2033 = vpop.f32.mrf.mxu0
        %v2034 = vadd.f32 0.0, %v2033
        %2035 = vmatmul.bf16.gmra.mxu0 %v1992
        %v2036 = vpop.f32.mrf.mxu0
        %v2037 = vadd.f32 0.0, %v2036
        %v2038 = vpop.f32.mrf.mxu0
        %v2039 = vadd.f32 0.0, %v2038
        %2040 = vdwg.mxu0
        %v2041 = vadd.f32 %v1938, %v2007
        %v2042 = vadd.f32 %v1939, %v2009
        %v2043 = vadd.f32 %v1940, %v2012
        %v2044 = vadd.f32 %v1941, %v2014
        %v2045 = vadd.f32 %v1942, %v2017
        %v2046 = vadd.f32 %v1943, %v2019
        %v2047 = vadd.f32 %v1944, %v2022
        %v2048 = vadd.f32 %v1945, %v2024
        %v2049 = vadd.f32 %v1946, %v2027
        %v2050 = vadd.f32 %v1947, %v2029
        %v2051 = vadd.f32 %v1948, %v2032
        %v2052 = vadd.f32 %v1949, %v2034
        %v2053 = vadd.f32 %v1950, %v2037
        %v2054 = vadd.f32 %v1951, %v2039
        %s2055 = sadd.s32 %s1258, 2
        %s2056 = smul.u32 %s2055, 15
        %s2057 = smul.addr %s2056, 4
        %s2058 = scalar_lea.vmem [#allocation2], %s2057
        %v2059 = vld [vmem:[%s2058] sm:$0xf]
        %v2060 = vld [vmem:[%s2058 + $0x4] sm:$0xf]
        %v2061 = vld [vmem:[%s2058 + $0x8] sm:$0xf]
        %v2062 = vld [vmem:[%s2058 + $0xc] sm:$0xf]
        %v2063 = vld [vmem:[%s2058 + $0x10] sm:$0xf]
        %v2064 = vld [vmem:[%s2058 + $0x14] sm:$0xf]
        %v2065 = vld [vmem:[%s2058 + $0x18] sm:$0xf]
        %v2066 = vld [vmem:[%s2058 + $0x1c] sm:$0xf]
        %v2067 = vld [vmem:[%s2058 + $0x20] sm:$0xf]
        %v2068 = vld [vmem:[%s2058 + $0x24] sm:$0xf]
        %v2069 = vld [vmem:[%s2058 + $0x28] sm:$0xf]
        %v2070 = vld [vmem:[%s2058 + $0x2c] sm:$0xf]
        %v2071 = vld [vmem:[%s2058 + $0x30] sm:$0xf]
        %v2072 = vld [vmem:[%s2058 + $0x34] sm:$0xf]
        %s2073 = scalar_lea.vmem %s278, 24
        %v2074 = vld [vmem:[%s2073] sm:$0xf]
        %v2089 = vunpack.c.l.b16 %v2059
        %v2090 = vunpack.c.l.b16 %v2060
        %v2091 = vunpack.c.l.b16 %v2061
        %v2092 = vunpack.c.l.b16 %v2062
        %v2093 = vunpack.c.l.b16 %v2063
        %v2094 = vunpack.c.l.b16 %v2064
        %v2095 = vunpack.c.l.b16 %v2065
        %v2096 = vunpack.c.l.b16 %v2066
        %v2097 = vunpack.c.l.b16 %v2067
        %v2098 = vunpack.c.l.b16 %v2068
        %v2099 = vunpack.c.l.b16 %v2069
        %v2100 = vunpack.c.l.b16 %v2070
        %v2101 = vunpack.c.l.b16 %v2071
        %v2102 = vunpack.c.l.b16 %v2072
        %v2103 = vpack.c.b16 %v2090, %v2089
        %v2104 = vpack.c.b16 %v2092, %v2091
        %v2105 = vpack.c.b16 %v2094, %v2093
        %v2106 = vpack.c.b16 %v2096, %v2095
        %v2107 = vpack.c.b16 %v2098, %v2097
        %v2108 = vpack.c.b16 %v2100, %v2099
        %v2109 = vpack.c.b16 %v2102, %v2101
        %v2111 = vsel %vm1383, %v2103, 0
        %v2114 = vsel %vm1383, %v2104, 0
        %v2117 = vsel %vm1383, %v2105, 0
        %v2120 = vsel %vm1383, %v2106, 0
        %v2123 = vsel %vm1383, %v2107, 0
        %v2126 = vsel %vm1383, %v2108, 0
        %v2129 = vsel %vm1383, %v2109, 0
        %v2132 = vsel %vm1405, %v2074, 0
        %2134 = vmatpush.bf16.msra.mxu0 0
        %2135 = vmatpush.bf16.msra.mxu0 0
        %2136 = vmatpush.bf16.msra.mxu0 0
        %2137 = vmatpush.bf16.msra.mxu0 0
        %2138 = vmatpush.bf16.msra.mxu0 0
        %2139 = vmatpush.bf16.msra.mxu0 0
        %2140 = vmatpush.bf16.msra.mxu0 0
        %2141 = vmatpush.bf16.msra.mxu0 %v2132
        %2142 = vmatmul.bf16.gmra.mxu0 %v2111
        %v2143 = vpop.f32.mrf.mxu0
        %v2144 = vadd.f32 0.0, %v2143
        %v2145 = vpop.f32.mrf.mxu0
        %v2146 = vadd.f32 0.0, %v2145
        %2147 = vmatmul.bf16.gmra.mxu0 %v2114
        %v2148 = vpop.f32.mrf.mxu0
        %v2149 = vadd.f32 0.0, %v2148
        %v2150 = vpop.f32.mrf.mxu0
        %v2151 = vadd.f32 0.0, %v2150
        %2152 = vmatmul.bf16.gmra.mxu0 %v2117
        %v2153 = vpop.f32.mrf.mxu0
        %v2154 = vadd.f32 0.0, %v2153
        %v2155 = vpop.f32.mrf.mxu0
        %v2156 = vadd.f32 0.0, %v2155
        %2157 = vmatmul.bf16.gmra.mxu0 %v2120
        %v2158 = vpop.f32.mrf.mxu0
        %v2159 = vadd.f32 0.0, %v2158
        %v2160 = vpop.f32.mrf.mxu0
        %v2161 = vadd.f32 0.0, %v2160
        %2162 = vmatmul.bf16.gmra.mxu0 %v2123
        %v2163 = vpop.f32.mrf.mxu0
        %v2164 = vadd.f32 0.0, %v2163
        %v2165 = vpop.f32.mrf.mxu0
        %v2166 = vadd.f32 0.0, %v2165
        %2167 = vmatmul.bf16.gmra.mxu0 %v2126
        %v2168 = vpop.f32.mrf.mxu0
        %v2169 = vadd.f32 0.0, %v2168
        %v2170 = vpop.f32.mrf.mxu0
        %v2171 = vadd.f32 0.0, %v2170
        %2172 = vmatmul.bf16.gmra.mxu0 %v2129
        %v2173 = vpop.f32.mrf.mxu0
        %v2174 = vadd.f32 0.0, %v2173
        %v2175 = vpop.f32.mrf.mxu0
        %v2176 = vadd.f32 0.0, %v2175
        %2177 = vdwg.mxu0
        %v2178 = vadd.f32 %v2041, %v2144
        %v2179 = vadd.f32 %v2042, %v2146
        %v2180 = vadd.f32 %v2043, %v2149
        %v2181 = vadd.f32 %v2044, %v2151
        %v2182 = vadd.f32 %v2045, %v2154
        %v2183 = vadd.f32 %v2046, %v2156
        %v2184 = vadd.f32 %v2047, %v2159
        %v2185 = vadd.f32 %v2048, %v2161
        %v2186 = vadd.f32 %v2049, %v2164
        %v2187 = vadd.f32 %v2050, %v2166
        %v2188 = vadd.f32 %v2051, %v2169
        %v2189 = vadd.f32 %v2052, %v2171
        %v2190 = vadd.f32 %v2053, %v2174
        %v2191 = vadd.f32 %v2054, %v2176
        %v2192 = vld [vmem:[%s2058] sm:$0xf]
        %v2193 = vld [vmem:[%s2058 + $0x4] sm:$0xf]
        %v2194 = vld [vmem:[%s2058 + $0x8] sm:$0xf]
        %v2195 = vld [vmem:[%s2058 + $0xc] sm:$0xf]
        %v2196 = vld [vmem:[%s2058 + $0x10] sm:$0xf]
        %v2197 = vld [vmem:[%s2058 + $0x14] sm:$0xf]
        %v2198 = vld [vmem:[%s2058 + $0x18] sm:$0xf]
        %v2199 = vld [vmem:[%s2058 + $0x1c] sm:$0xf]
        %v2200 = vld [vmem:[%s2058 + $0x20] sm:$0xf]
        %v2201 = vld [vmem:[%s2058 + $0x24] sm:$0xf]
        %v2202 = vld [vmem:[%s2058 + $0x28] sm:$0xf]
        %v2203 = vld [vmem:[%s2058 + $0x2c] sm:$0xf]
        %v2204 = vld [vmem:[%s2058 + $0x30] sm:$0xf]
        %v2205 = vld [vmem:[%s2058 + $0x34] sm:$0xf]
        %v2206 = vld [vmem:[%s2058 + $0x38] sm:$0x1]
        %s2207 = scalar_lea.vmem %s278, 28
        %v2208 = vld [vmem:[%s2207] sm:$0xf]
        %v2224 = vunpack.c.l.b16 %v2192
        %v2225 = vunpack.c.l.b16 %v2193
        %v2226 = vunpack.c.l.b16 %v2194
        %v2227 = vunpack.c.l.b16 %v2195
        %v2228 = vunpack.c.l.b16 %v2196
        %v2229 = vunpack.c.l.b16 %v2197
        %v2230 = vunpack.c.l.b16 %v2198
        %v2231 = vunpack.c.l.b16 %v2199
        %v2232 = vunpack.c.l.b16 %v2200
        %v2233 = vunpack.c.l.b16 %v2201
        %v2234 = vunpack.c.l.b16 %v2202
        %v2235 = vunpack.c.l.b16 %v2203
        %v2236 = vunpack.c.l.b16 %v2204
        %v2237 = vunpack.c.l.b16 %v2205
        %v2238 = vunpack.c.l.b16 %v2206
        %v2239 = vpack.c.b16 %v2225, %v2224
        %v2240 = vpack.c.b16 %v2227, %v2226
        %v2241 = vpack.c.b16 %v2229, %v2228
        %v2242 = vpack.c.b16 %v2231, %v2230
        %v2243 = vpack.c.b16 %v2233, %v2232
        %v2244 = vpack.c.b16 %v2235, %v2234
        %v2245 = vpack.c.b16 %v2237, %v2236
        %v2246 = vpack.c.b16 %v2238, %v2238
        %v2248 = vshrl.u32 %v2239, 16
        %v2250 = vshll.u32 %v2239, 16
        %v2252 = vrot.slane %v2250, 1
        %v2253 = vor.u32 %v2248, %v2252
        %v2255 = vshll.u32 %v2240, 16
        %v2257 = vrot.slane %v2255, 1
        %v2258 = vsel %vm1322, %v2253, %v2257
        %v2259 = vshrl.u32 %v2240, 16
        %v2261 = vor.u32 %v2259, %v2257
        %v2263 = vshll.u32 %v2241, 16
        %v2265 = vrot.slane %v2263, 1
        %v2266 = vsel %vm1322, %v2261, %v2265
        %v2267 = vshrl.u32 %v2241, 16
        %v2269 = vor.u32 %v2267, %v2265
        %v2271 = vshll.u32 %v2242, 16
        %v2273 = vrot.slane %v2271, 1
        %v2274 = vsel %vm1322, %v2269, %v2273
        %v2275 = vshrl.u32 %v2242, 16
        %v2277 = vor.u32 %v2275, %v2273
        %v2279 = vshll.u32 %v2243, 16
        %v2281 = vrot.slane %v2279, 1
        %v2282 = vsel %vm1322, %v2277, %v2281
        %v2283 = vshrl.u32 %v2243, 16
        %v2285 = vor.u32 %v2283, %v2281
        %v2287 = vshll.u32 %v2244, 16
        %v2289 = vrot.slane %v2287, 1
        %v2290 = vsel %vm1322, %v2285, %v2289
        %v2291 = vshrl.u32 %v2244, 16
        %v2293 = vor.u32 %v2291, %v2289
        %v2295 = vshll.u32 %v2245, 16
        %v2297 = vrot.slane %v2295, 1
        %v2298 = vsel %vm1322, %v2293, %v2297
        %v2299 = vshrl.u32 %v2245, 16
        %v2301 = vor.u32 %v2299, %v2297
        %v2303 = vshll.u32 %v2246, 16
        %v2305 = vrot.slane %v2303, 1
        %v2306 = vsel %vm1322, %v2301, %v2305
        %v2308 = vsel %vm1383, %v2258, 0
        %v2311 = vsel %vm1383, %v2266, 0
        %v2314 = vsel %vm1383, %v2274, 0
        %v2317 = vsel %vm1383, %v2282, 0
        %v2320 = vsel %vm1383, %v2290, 0
        %v2323 = vsel %vm1383, %v2298, 0
        %v2326 = vsel %vm1383, %v2306, 0
        %v2329 = vsel %vm1405, %v2208, 0
        %2331 = vmatpush.bf16.msra.mxu0 0
        %2332 = vmatpush.bf16.msra.mxu0 0
        %2333 = vmatpush.bf16.msra.mxu0 0
        %2334 = vmatpush.bf16.msra.mxu0 0
        %2335 = vmatpush.bf16.msra.mxu0 0
        %2336 = vmatpush.bf16.msra.mxu0 0
        %2337 = vmatpush.bf16.msra.mxu0 0
        %2338 = vmatpush.bf16.msra.mxu0 %v2329
        %2339 = vmatmul.bf16.gmra.mxu0 %v2308
        %v2340 = vpop.f32.mrf.mxu0
        %v2341 = vadd.f32 0.0, %v2340
        %v2342 = vpop.f32.mrf.mxu0
        %v2343 = vadd.f32 0.0, %v2342
        %2344 = vmatmul.bf16.gmra.mxu0 %v2311
        %v2345 = vpop.f32.mrf.mxu0
        %v2346 = vadd.f32 0.0, %v2345
        %v2347 = vpop.f32.mrf.mxu0
        %v2348 = vadd.f32 0.0, %v2347
        %2349 = vmatmul.bf16.gmra.mxu0 %v2314
        %v2350 = vpop.f32.mrf.mxu0
        %v2351 = vadd.f32 0.0, %v2350
        %v2352 = vpop.f32.mrf.mxu0
        %v2353 = vadd.f32 0.0, %v2352
        %2354 = vmatmul.bf16.gmra.mxu0 %v2317
        %v2355 = vpop.f32.mrf.mxu0
        %v2356 = vadd.f32 0.0, %v2355
        %v2357 = vpop.f32.mrf.mxu0
        %v2358 = vadd.f32 0.0, %v2357
        %2359 = vmatmul.bf16.gmra.mxu0 %v2320
        %v2360 = vpop.f32.mrf.mxu0
        %v2361 = vadd.f32 0.0, %v2360
        %v2362 = vpop.f32.mrf.mxu0
        %v2363 = vadd.f32 0.0, %v2362
        %2364 = vmatmul.bf16.gmra.mxu0 %v2323
        %v2365 = vpop.f32.mrf.mxu0
        %v2366 = vadd.f32 0.0, %v2365
        %v2367 = vpop.f32.mrf.mxu0
        %v2368 = vadd.f32 0.0, %v2367
        %2369 = vmatmul.bf16.gmra.mxu0 %v2326
        %v2370 = vpop.f32.mrf.mxu0
        %v2371 = vadd.f32 0.0, %v2370
        %v2372 = vpop.f32.mrf.mxu0
        %v2373 = vadd.f32 0.0, %v2372
        %2374 = vdwg.mxu0
        %v2375 = vadd.f32 %v2178, %v2341
        %v2376 = vadd.f32 %v2179, %v2343
        %v2377 = vadd.f32 %v2180, %v2346
        %v2378 = vadd.f32 %v2181, %v2348
        %v2379 = vadd.f32 %v2182, %v2351
        %v2380 = vadd.f32 %v2183, %v2353
        %v2381 = vadd.f32 %v2184, %v2356
        %v2382 = vadd.f32 %v2185, %v2358
        %v2383 = vadd.f32 %v2186, %v2361
        %v2384 = vadd.f32 %v2187, %v2363
        %v2385 = vadd.f32 %v2188, %v2366
        %v2386 = vadd.f32 %v2189, %v2368
        %v2387 = vadd.f32 %v2190, %v2371
        %v2388 = vadd.f32 %v2191, %v2373
        %v2389 = vld [vmem:[%s2058] sm:$0xe]
        %s2390 = scalar_lea.vmem %s278, 32
        %v2391 = vld [vmem:[%s2390] sm:$0xf]
        %v2393 = vunpack.c.l.b16 %v2389
        %v2394 = vpack.c.b16 %v2225, %v2393
        %v2395 = vrot.slane %v2394, 1
        %v2396 = vrot.slane %v2240, 1
        %v2397 = vsel %vm1520, %v2395, %v2396
        %v2398 = vrot.slane %v2241, 1
        %v2399 = vsel %vm1520, %v2396, %v2398
        %v2400 = vrot.slane %v2242, 1
        %v2401 = vsel %vm1520, %v2398, %v2400
        %v2402 = vrot.slane %v2243, 1
        %v2403 = vsel %vm1520, %v2400, %v2402
        %v2404 = vrot.slane %v2244, 1
        %v2405 = vsel %vm1520, %v2402, %v2404
        %v2406 = vrot.slane %v2245, 1
        %v2407 = vsel %vm1520, %v2404, %v2406
        %v2408 = vrot.slane %v2246, 1
        %v2409 = vsel %vm1520, %v2406, %v2408
        %v2411 = vsel %vm1383, %v2397, 0
        %v2414 = vsel %vm1383, %v2399, 0
        %v2417 = vsel %vm1383, %v2401, 0
        %v2420 = vsel %vm1383, %v2403, 0
        %v2423 = vsel %vm1383, %v2405, 0
        %v2426 = vsel %vm1383, %v2407, 0
        %v2429 = vsel %vm1383, %v2409, 0
        %v2432 = vsel %vm1405, %v2391, 0
        %2434 = vmatpush.bf16.msra.mxu0 0
        %2435 = vmatpush.bf16.msra.mxu0 0
        %2436 = vmatpush.bf16.msra.mxu0 0
        %2437 = vmatpush.bf16.msra.mxu0 0
        %2438 = vmatpush.bf16.msra.mxu0 0
        %2439 = vmatpush.bf16.msra.mxu0 0
        %2440 = vmatpush.bf16.msra.mxu0 0
        %2441 = vmatpush.bf16.msra.mxu0 %v2432
        %2442 = vmatmul.bf16.gmra.mxu0 %v2411
        %v2443 = vpop.f32.mrf.mxu0
        %v2444 = vadd.f32 0.0, %v2443
        %v2445 = vpop.f32.mrf.mxu0
        %v2446 = vadd.f32 0.0, %v2445
        %2447 = vmatmul.bf16.gmra.mxu0 %v2414
        %v2448 = vpop.f32.mrf.mxu0
        %v2449 = vadd.f32 0.0, %v2448
        %v2450 = vpop.f32.mrf.mxu0
        %v2451 = vadd.f32 0.0, %v2450
        %2452 = vmatmul.bf16.gmra.mxu0 %v2417
        %v2453 = vpop.f32.mrf.mxu0
        %v2454 = vadd.f32 0.0, %v2453
        %v2455 = vpop.f32.mrf.mxu0
        %v2456 = vadd.f32 0.0, %v2455
        %2457 = vmatmul.bf16.gmra.mxu0 %v2420
        %v2458 = vpop.f32.mrf.mxu0
        %v2459 = vadd.f32 0.0, %v2458
        %v2460 = vpop.f32.mrf.mxu0
        %v2461 = vadd.f32 0.0, %v2460
        %2462 = vmatmul.bf16.gmra.mxu0 %v2423
        %v2463 = vpop.f32.mrf.mxu0
        %v2464 = vadd.f32 0.0, %v2463
        %v2465 = vpop.f32.mrf.mxu0
        %v2466 = vadd.f32 0.0, %v2465
        %2467 = vmatmul.bf16.gmra.mxu0 %v2426
        %v2468 = vpop.f32.mrf.mxu0
        %v2469 = vadd.f32 0.0, %v2468
        %v2470 = vpop.f32.mrf.mxu0
        %v2471 = vadd.f32 0.0, %v2470
        %2472 = vmatmul.bf16.gmra.mxu0 %v2429
        %v2473 = vpop.f32.mrf.mxu0
        %v2474 = vadd.f32 0.0, %v2473
        %v2475 = vpop.f32.mrf.mxu0
        %v2476 = vadd.f32 0.0, %v2475
        %2477 = vdwg.mxu0
        %v2478 = vadd.f32 %v2375, %v2444
        %v2479 = vadd.f32 %v2376, %v2446
        %v2480 = vadd.f32 %v2377, %v2449
        %v2481 = vadd.f32 %v2378, %v2451
        %v2482 = vadd.f32 %v2379, %v2454
        %v2483 = vadd.f32 %v2380, %v2456
        %v2484 = vadd.f32 %v2381, %v2459
        %v2485 = vadd.f32 %v2382, %v2461
        %v2486 = vadd.f32 %v2383, %v2464
        %v2487 = vadd.f32 %v2384, %v2466
        %v2488 = vadd.f32 %v2385, %v2469
        %v2489 = vadd.f32 %v2386, %v2471
        %v2490 = vadd.f32 %v2387, %v2474
        %v2491 = vadd.f32 %v2388, %v2476
        %v2492 = vpack.c.bf16 %v2478, %v2478
        %v2493 = vpack.c.bf16 %v2479, %v2479
        %v2494 = vpack.c.bf16 %v2480, %v2480
        %v2495 = vpack.c.bf16 %v2481, %v2481
        %v2496 = vpack.c.bf16 %v2482, %v2482
        %v2497 = vpack.c.bf16 %v2483, %v2483
        %v2498 = vpack.c.bf16 %v2484, %v2484
        %v2499 = vpack.c.bf16 %v2485, %v2485
        %v2500 = vpack.c.bf16 %v2486, %v2486
        %v2501 = vpack.c.bf16 %v2487, %v2487
        %v2502 = vpack.c.bf16 %v2488, %v2488
        %v2503 = vpack.c.bf16 %v2489, %v2489
        %v2504 = vpack.c.bf16 %v2490, %v2490
        %v2505 = vpack.c.bf16 %v2491, %v2491
        %s2506 = smul.u32 %s1258, 14
        %s2507 = smul.addr %s2506, 4
        %s2508 = scalar_lea.vmem %s291, %s2507
        %vm2509 = vcmask 519168
        %2510 = vst.msk [vmem:[%s2508] sm:$0xf] %vm2509, %v2492
        %2511 = vst.msk [vmem:[%s2508 + $0x4] sm:$0xf] %vm2509, %v2493
        %2512 = vst.msk [vmem:[%s2508 + $0x8] sm:$0xf] %vm2509, %v2494
        %2513 = vst.msk [vmem:[%s2508 + $0xc] sm:$0xf] %vm2509, %v2495
        %2514 = vst.msk [vmem:[%s2508 + $0x10] sm:$0xf] %vm2509, %v2496
        %2515 = vst.msk [vmem:[%s2508 + $0x14] sm:$0xf] %vm2509, %v2497
        %2516 = vst.msk [vmem:[%s2508 + $0x18] sm:$0xf] %vm2509, %v2498
        %2517 = vst.msk [vmem:[%s2508 + $0x1c] sm:$0xf] %vm2509, %v2499
        %2518 = vst.msk [vmem:[%s2508 + $0x20] sm:$0xf] %vm2509, %v2500
        %2519 = vst.msk [vmem:[%s2508 + $0x24] sm:$0xf] %vm2509, %v2501
        %2520 = vst.msk [vmem:[%s2508 + $0x28] sm:$0xf] %vm2509, %v2502
        %2521 = vst.msk [vmem:[%s2508 + $0x2c] sm:$0xf] %vm2509, %v2503
        %2522 = vst.msk [vmem:[%s2508 + $0x30] sm:$0xf] %vm2509, %v2504
        %2523 = vst.msk [vmem:[%s2508 + $0x34] sm:$0xf] %vm2509, %v2505
      $region37: #{conv3x3_s1.1} parent=31 // loop_footer
        %s1262 = sadd.s32 1, %s1258
      $region38: #{conv3x3_s1.1} parent=31 // loop_footer_branch
        %1257 = sbr.rel target = $region34
      $region39: #{conv3x3_s1.1} parent=31 // loop_exit
        _
      %s2524 = smul.u32 16, %s21
      %p2525 = scmp.lt.s32.totalorder %s20, 1
      %s2526 = scalar_select %p2525, %s20, 1
      %p2527 = scmp.lt.s32.totalorder %s2524, 111
      %s2528 = scalar_select %p2527, %s2524, 111
      %p2529 = scmp.lt.s32.totalorder %s19, 0
      %s2530 = scalar_select %p2529, %s19, 0
      %s2531 = smul.addr %s2528, 14
      %s2532 = sadd.s32 %s2530, %s2531
      %s2533 = smul.addr %s2526, 1568
      %s2534 = sadd.s32 %s2532, %s2533
      %s2535 = smul.addr %s2534, 4
      %s2536 = scalar_lea.vmem %s3, %s2535
      // Predicated region
      $region40: #{conv3x3_s1.1} parent=31 // pred_check
        %p2537 = pneg %p139
      $region41: #{conv3x3_s1.1} parent=31 // pred_check_branch
        %2539 = sbr.rel (%p2537) target = $region43
      $region42: #{conv3x3_s1.1} parent=31 // pred_region
        %s2540 = smul.u32 16, %s21
      $region43: #{conv3x3_s1.1} parent=31 // pred_fallthru
        _
    $region32: #{conv3x3_s1.1} parent=5 // pred_fallthru
      _
    %p2541 = scmp.le.s32.totalorder 2, %s9
    // Predicated region
    $region44: #{conv3x3_s1.1} parent=5 // pred_check
      %p2542 = pneg %p2541
    $region45: #{conv3x3_s1.1} parent=5 // pred_check_branch
      %2544 = sbr.rel (%p2542) target = $region47
    $region46: #{conv3x3_s1.1} parent=5 // pred_region
      %s2545 = ssub.s32 %s9, 2
      // Predicated region
      $region48: #{conv3x3_s1.1} parent=46 // pred_check
        %p2546 = pneg %p145
      $region49: #{conv3x3_s1.1} parent=46 // pred_check_branch
        %2548 = sbr.rel (%p2546) target = $region51
      $region50: #{conv3x3_s1.1} parent=46 // pred_region
        %s2549 = smul.u32 16, %s24
        %p2550 = scmp.lt.s32.totalorder %s23, 1
        %s2551 = scalar_select %p2550, %s23, 1
        %p2552 = scmp.lt.s32.totalorder %s2549, 111
        %s2553 = scalar_select %p2552, %s2549, 111
        %p2554 = scmp.lt.s32.totalorder %s22, 0
        %s2555 = scalar_select %p2554, %s22, 0
        %s2556 = smul.addr %s2553, 14
        %s2557 = sadd.s32 %s2555, %s2556
        %s2558 = smul.addr %s2551, 1568
        %s2559 = sadd.s32 %s2557, %s2558
        %s2560 = smul.addr %s2559, 4
        %s2561 = scalar_lea.vmem %s3, %s2560
      $region51: #{conv3x3_s1.1} parent=46 // pred_fallthru
        _
    $region47: #{conv3x3_s1.1} parent=5 // pred_fallthru
      _
  $region6: #{conv3x3_s1.1} parent=0 // loop_footer
    %s13 = sadd.s32 1, %s9
  $region7: #{conv3x3_s1.1} parent=0 // loop_footer_branch
    %8 = sbr.rel target = $region3
  $region8: #{conv3x3_s1.1} parent=0 // loop_exit
    _

</llo_original>
